<compile_context>
chip_gen: v7x
topology: tpu7x:2x2x1
jax: 0.10.0
libtpu: 0.0.40
codegen_flags: <defaults>
</compile_context>

<pallas_src>
import functools

import numpy as np
import jax
import jax.numpy as jnp
from jax.experimental import pallas as pl
from jax.experimental.pallas import tpu as pltpu


_PAD = 8      # halo rows of the in-kernel scratch planes (aligned interiors)
_PAD_IN = 4   # halo rows pre-baked into the wrapper-padded input planes


# ----------------------------------------------------------------------------
# Host-side (wrapper) weight transforms: width-band matrices.
# Band[di][ic*ci + c, wo*co + o] = sum_dj sel[dj, ic, wo] * w[di, dj, c, o]
# ----------------------------------------------------------------------------
def _band_same(w_hwio, w_sp):
    """3x3 stride-1 conv, pad=1, along width -> (3, W*ci, W*co)."""
    kh, kw, ci, co = w_hwio.shape
    sel = np.zeros((kw, w_sp, w_sp), np.float32)
    for dj in range(kw):
        for wo in range(w_sp):
            ic = wo + dj - 1
            if 0 <= ic < w_sp:
                sel[dj, ic, wo] = 1.0
    band = jnp.einsum("jsw,djco->dscwo", jnp.asarray(sel), w_hwio)
    return band.reshape(kh, w_sp * ci, w_sp * co)


def _band_stride2(w_hwio, w_sp):
    """3x3 stride-2 conv, pad=1, along width -> (3, W*ci, (W//2)*co)."""
    kh, kw, ci, co = w_hwio.shape
    w_out = w_sp // 2
    sel = np.zeros((kw, w_sp, w_out), np.float32)
    for dj in range(kw):
        for wo in range(w_out):
            ic = 2 * wo + dj - 1
            if 0 <= ic < w_sp:
                sel[dj, ic, wo] = 1.0
    band = jnp.einsum("jsw,djco->dscwo", jnp.asarray(sel), w_hwio)
    return band.reshape(kh, w_sp * ci, w_out * co)


def _band_upsample(w_hwio, w_sp):
    """3x3 stride-1 conv, pad=1, applied to the 2x nearest-upsampled input with
    the W-direction upsample folded in: rows are half-res ((W//2)*ci) wide."""
    kh, kw, ci, co = w_hwio.shape
    w_in = w_sp // 2
    sel = np.zeros((kw, w_in, w_sp), np.float32)
    for dj in range(kw):
        for wo in range(w_sp):
            s_up = wo + dj - 1
            if 0 <= s_up < w_sp:
                sel[dj, s_up // 2, wo] = 1.0
    band = jnp.einsum("jsw,djco->dscwo", jnp.asarray(sel), w_hwio)
    return band.reshape(kh, w_in * ci, w_sp * co)


def _band_1x1(w_hwio, w_sp):
    """1x1 conv -> block-diagonal (W*ci, W*co)."""
    ci, co = w_hwio.shape[2], w_hwio.shape[3]
    sel = np.eye(w_sp, dtype=np.float32)
    band = jnp.einsum("sw,co->scwo", jnp.asarray(sel), w_hwio[0, 0])
    return band.reshape(w_sp * ci, w_sp * co)


# ----------------------------------------------------------------------------
# Fused Pallas kernel: whole generator forward for one batch element.
# Activation layout: even/odd row planes, each (rows=H/2, lanes=W*C), stored in
# padded scratch with zero halo rows so every +/-1-row tap is a plain slab load.
# ----------------------------------------------------------------------------
def _generator_kernel(
        x_ref,
        wb_enc, wb_down, wb_bott, wb_up2, wb_decu, wb_dece, wb_out,
        b_enc, b_down, b_bott, b_up, b_dec, b_out,
        o_ref,
        e1e, e1o, d1, u1e, u1o,
        *, Hh):
    f32 = jnp.float32
    bf16 = jnp.bfloat16
    T = _PAD       # interior start row of the scratch planes
    XT = _PAD_IN   # interior start row of the (pre-padded) input planes

    def conv_relu(taps, bias_ref):
        # taps: [(bf16 operand slab, weight ref, tap index), ...]
        op0, w0, i0 = taps[0]
        acc = jnp.dot(op0, w0[i0], preferred_element_type=f32)
        for op, w, i in taps[1:]:
            acc = acc + jnp.dot(op, w[i], preferred_element_type=f32)
        return jnp.maximum(acc + bias_ref[...], 0.0)

    # ---- halo zeroing: only the halos read by +/-1-row taps; interiors are
    # fully overwritten every step.  No program_id==0 guard (grid is parallel).
    def zero8(lanes):
        return jnp.zeros((_PAD, lanes), f32)

    e1e[T + Hh:2 * T + Hh, :] = zero8(e1e.shape[1])   # read via e1_even[m+1]
    e1o[0:T, :] = zero8(e1o.shape[1])                 # read via e1_odd[m-1]
    d1[0:T, :] = zero8(d1.shape[1])                   # read via d1/bt[m-1]
    d1[T + Hh:2 * T + Hh, :] = zero8(d1.shape[1])     # read via d1/bt[m+1]
    u1e[T + Hh:2 * T + Hh, :] = zero8(u1e.shape[1])   # read via u1_even[m+1]
    u1o[0:T, :] = zero8(u1o.shape[1])                 # read via u1_odd[m-1]

    # ---- input slabs (pre-padded planes; cast to bf16 exactly once) ---------
    xE0 = x_ref[0, XT:XT + Hh, :].astype(bf16)             # x_even[m]
    xEp1 = x_ref[0, XT + 1:XT + 1 + Hh, :].astype(bf16)    # x_even[m+1]
    xOm1 = x_ref[1, XT - 1:XT - 1 + Hh, :].astype(bf16)    # x_odd[m-1]
    xO0 = x_ref[1, XT:XT + Hh, :].astype(bf16)             # x_odd[m]

    # ---- encoder conv (3x3, s1) -> e1 planes (Hh, W*base) -------------------
    e1E = conv_relu([(xOm1, wb_enc, 0), (xE0, wb_enc, 1), (xO0, wb_enc, 2)],
                    b_enc)
    e1e[T:T + Hh, :] = e1E
    e1O = conv_relu([(xE0, wb_enc, 0), (xO0, wb_enc, 1), (xEp1, wb_enc, 2)],
                    b_enc)
    e1o[T:T + Hh, :] = e1O
    e1E0 = e1E.astype(bf16)
    e1O0 = e1O.astype(bf16)
    e1Om1 = e1o[T - 1:T - 1 + Hh, :].astype(bf16)
    e1Ep1 = e1e[T + 1:T + 1 + Hh, :].astype(bf16)

    # ---- down conv (3x3, s2) -> d1 (Hh, Wh*c2); taps are contiguous plane
    #      slabs (no stride-2 sublane gathers) --------------------------------
    d1v = conv_relu([(e1Om1, wb_down, 0), (e1E0, wb_down, 1),
                     (e1O0, wb_down, 2)], b_down)
    d1[T:T + Hh, :] = d1v

    # ---- bottleneck conv (3x3, s1, half res) -> bt (Hh, Wh*c2) --------------
    d1m1 = d1[T - 1:T - 1 + Hh, :].astype(bf16)
    d10 = d1v.astype(bf16)
    d1p1 = d1[T + 1:T + 1 + Hh, :].astype(bf16)
    btv = conv_relu([(d1m1, wb_bott, 0), (d10, wb_bott, 1),
                     (d1p1, wb_bott, 2)], b_bott)
    # Reuse the d1 buffer to hold bt (halos stay zero); the shifted reads below
    # are ordered after this store by the same-ref data dependence.
    d1[T:T + Hh, :] = btv

    # ---- up conv on the 2x nearest upsample of bt (even/odd output rows;
    #      W-upsample folded into wb_up2, H-upsample folded into the taps:
    #      even = W0 @ bt[m-1] + (W1+W2) @ bt[m];
    #      odd  = (W0+W1) @ bt[m] + W2 @ bt[m+1]) -----------------------------
    bt0 = btv.astype(bf16)
    btm1 = d1[T - 1:T - 1 + Hh, :].astype(bf16)
    btp1 = d1[T + 1:T + 1 + Hh, :].astype(bf16)
    u1E = conv_relu([(btm1, wb_up2, 0), (bt0, wb_up2, 1)], b_up)
    u1e[T:T + Hh, :] = u1E
    u1O = conv_relu([(bt0, wb_up2, 2), (btp1, wb_up2, 3)], b_up)
    u1o[T:T + Hh, :] = u1O
    u1E0 = u1E.astype(bf16)
    u1O0 = u1O.astype(bf16)
    u1Om1 = u1o[T - 1:T - 1 + Hh, :].astype(bf16)
    u1Ep1 = u1e[T + 1:T + 1 + Hh, :].astype(bf16)

    # ---- decoder conv (3x3, s1) with the skip concat folded into split
    #      weight bands: concat([u1, e1]) @ W == u1 @ Wu + e1 @ We ------------
    dcE = conv_relu([(u1Om1, wb_decu, 0), (u1E0, wb_decu, 1),
                     (u1O0, wb_decu, 2),
                     (e1Om1, wb_dece, 0), (e1E0, wb_dece, 1),
                     (e1O0, wb_dece, 2)], b_dec).astype(bf16)
    dcO = conv_relu([(u1E0, wb_decu, 0), (u1O0, wb_decu, 1),
                     (u1Ep1, wb_decu, 2),
                     (e1E0, wb_dece, 0), (e1O0, wb_dece, 1),
                     (e1Ep1, wb_dece, 2)], b_dec).astype(bf16)

    # ---- final 1x1 conv + the Generator's trailing ReLU (fused) -------------
    w_out = wb_out[...]
    outE = jnp.dot(dcE, w_out, preferred_element_type=f32)
    o_ref[0] = jnp.maximum(outE + b_out[...], 0.0).astype(o_ref.dtype)
    outO = jnp.dot(dcO, w_out, preferred_element_type=f32)
    o_ref[1] = jnp.maximum(outO + b_out[...], 0.0).astype(o_ref.dtype)


# ----------------------------------------------------------------------------
# Deterministic parameter init (synthetic weights — no checkpoint loading)
# ----------------------------------------------------------------------------
def init_generator_params(key, cin, base=8):
    def conv_init(k, kh, kw, ci, co):
        kw_, kb_ = jax.random.split(k)
        fan_in = kh * kw * ci
        scale = 1.0 / np.sqrt(fan_in)
        w = jax.random.normal(kw_, (kh, kw, ci, co), jnp.float32) * scale
        b = jax.random.normal(kb_, (co,), jnp.float32) * 0.01
        return w, b

    keys = jax.random.split(key, 6)
    return {
        "enc1": conv_init(keys[0], 3, 3, cin, base),           # keep res
        "down": conv_init(keys[1], 3, 3, base, 2 * base),      # stride 2
        "bott": conv_init(keys[2], 3, 3, 2 * base, 2 * base),
        "up":   conv_init(keys[3], 3, 3, 2 * base, base),      # after upsample
        "dec":  conv_init(keys[4], 3, 3, 2 * base, base),      # skip concat
        "out":  conv_init(keys[5], 1, 1, base, cin),           # retain shape
    }


# ----------------------------------------------------------------------------
# Generator forward: one fused pallas_call over the batch.
# ----------------------------------------------------------------------------
def generator_forward(params, x_nchw):
    N, C, H, W = x_nchw.shape
    assert H % 2 == 0 and W % 2 == 0
    base = params["enc1"][0].shape[3]
    cout = params["out"][0].shape[3]
    c2 = 2 * base
    Hh, Wh = H // 2, W // 2
    bf16 = jnp.bfloat16

    # Width-band weight matrices (fold kw taps, W-upsample, skip concat).
    wb_enc = _band_same(params["enc1"][0], W).astype(bf16)       # (3, W*C,   W*b)
    wb_down = _band_stride2(params["down"][0], W).astype(bf16)   # (3, W*b,   Wh*c2)
    wb_bott = _band_same(params["bott"][0], Wh).astype(bf16)     # (3, Wh*c2, Wh*c2)
    wb_up = _band_upsample(params["up"][0], W)                   # (3, Wh*c2, W*b) f32
    # Pre-summed kh taps for the even/odd upsample-conv rows.
    wb_up2 = jnp.stack([wb_up[0], wb_up[1] + wb_up[2],
                        wb_up[0] + wb_up[1], wb_up[2]], axis=0).astype(bf16)
    w_dec = params["dec"][0]
    wb_decu = _band_same(w_dec[:, :, :base, :], W).astype(bf16)  # (3, W*b, W*b)
    wb_dece = _band_same(w_dec[:, :, base:, :], W).astype(bf16)  # (3, W*b, W*b)
    wb_out = _band_1x1(params["out"][0], W).astype(bf16)         # (W*b, W*cout)

    # Biases tiled to the (W*C) lane layout (kept f32 for the epilogue).
    b_enc = jnp.tile(params["enc1"][1], W).reshape(1, W * base)
    b_down = jnp.tile(params["down"][1], Wh).reshape(1, Wh * c2)
    b_bott = jnp.tile(params["bott"][1], Wh).reshape(1, Wh * c2)
    b_up = jnp.tile(params["up"][1], W).reshape(1, W * base)
    b_dec = jnp.tile(params["dec"][1], W).reshape(1, W * base)
    b_out = jnp.tile(params["out"][1], W).reshape(1, W * cout)

    # NHWC, rows split into even/odd planes, H-halo zeros pre-baked so the
    # kernel never needs an input staging buffer.
    x = jnp.transpose(x_nchw, (0, 2, 3, 1)).reshape(N, H, W * C)
    x = x.reshape(N, Hh, 2, W * C).transpose(0, 2, 1, 3)       # (N, 2, Hh, W*C)
    x = jnp.pad(x, ((0, 0), (0, 0), (_PAD_IN, _PAD_IN), (0, 0)))
    x = x.reshape(2 * N, Hh + 2 * _PAD_IN, W * C)

    weights = (wb_enc, wb_down, wb_bott, wb_up2, wb_decu, wb_dece, wb_out,
               b_enc, b_down, b_bott, b_up, b_dec, b_out)

    def _const_spec(a):
        nd = a.ndim
        return pl.BlockSpec(a.shape, lambda b, _nd=nd: (0,) * _nd)

    kernel = functools.partial(_generator_kernel, Hh=Hh)
    out = pl.pallas_call(
        kernel,
        out_shape=jax.ShapeDtypeStruct((2 * N, Hh, W * cout), jnp.float32),
        grid_spec=pltpu.PrefetchScalarGridSpec(
            num_scalar_prefetch=0,
            grid=(N,),
            in_specs=[pl.BlockSpec((2, Hh + 2 * _PAD_IN, W * C),
                                   lambda b: (b, 0, 0))]
                     + [_const_spec(a) for a in weights],
            out_specs=pl.BlockSpec((2, Hh, W * cout), lambda b: (b, 0, 0)),
            scratch_shapes=[
                pltpu.VMEM((2 * _PAD + Hh, W * base), jnp.float32),   # e1 even
                pltpu.VMEM((2 * _PAD + Hh, W * base), jnp.float32),   # e1 odd
                pltpu.VMEM((2 * _PAD + Hh, Wh * c2), jnp.float32),    # d1 / bt
                pltpu.VMEM((2 * _PAD + Hh, W * base), jnp.float32),   # u1 even
                pltpu.VMEM((2 * _PAD + Hh, W * base), jnp.float32),   # u1 odd
            ]),
        compiler_params=pltpu.CompilerParams(
            dimension_semantics=("parallel",),
            vmem_limit_bytes=32 * 1024 * 1024),
    )(x, *weights)

    # (2N, Hh, W*cout): row-plane 2b = even output rows of image b, 2b+1 = odd.
    y = out.reshape(N, 2, Hh, W, cout).transpose(0, 2, 1, 3, 4)
    y = y.reshape(N, H, W, cout)
    return jnp.transpose(y, (0, 3, 1, 2))  # -> NCHW


# ----------------------------------------------------------------------------
# Plain-JAX reference (f32) for correctness checking.
# ----------------------------------------------------------------------------
def _reference_forward(params, x_nchw):
    dn = ("NHWC", "HWIO", "NHWC")

    def conv(x, wb, stride=1, pad=1):
        w, b = wb
        y = jax.lax.conv_general_dilated(
            x, w, (stride, stride), [(pad, pad), (pad, pad)],
            dimension_numbers=dn)
        return jnp.maximum(y + b, 0.0)

    x = jnp.transpose(x_nchw, (0, 2, 3, 1))
    e1 = conv(x, params["enc1"])
    d1 = conv(e1, params["down"], stride=2)
    bt = conv(d1, params["bott"])
    up = jnp.repeat(jnp.repeat(bt, 2, axis=1), 2, axis=2)
    u1 = conv(up, params["up"])
    cat = jnp.concatenate([u1, e1], axis=-1)
    dc = conv(cat, params["dec"])
    out = conv(dc, params["out"], pad=0)
    return jnp.transpose(out, (0, 3, 1, 2))


if __name__ == "__main__":
    key = jax.random.PRNGKey(0)
    k_params, k_input = jax.random.split(key)

    N, C, H, W = 2, 4, 16, 16
    x = jax.random.normal(k_input, (N, C, H, W), jnp.float32)
    params = init_generator_params(k_params, cin=C, base=8)

    fwd = jax.jit(functools.partial(generator_forward, params))
    y = jax.block_until_ready(fwd(x))

    assert y.shape == (N, C, H, W), y.shape
    assert bool(jnp.all(y >= 0.0)), "trailing ReLU violated"

    # Correctness vs plain-JAX f32 reference (kernel matmuls run in bf16).
    y_ref = _reference_forward(params, x)
    num = jnp.sqrt(jnp.sum((y - y_ref) ** 2))
    den = jnp.sqrt(jnp.sum(y_ref ** 2)) + 1e-8
    rel = float(num / den)
    assert rel < 3e-2, f"relative L2 error too large: {rel}"

    print("KERNEL_OK")
</pallas_src>

<mosaic_0001>
module attributes {stable_mosaic.version = 11 : i64} {
  func.func @_generator_kernel(%arg0: i32, %arg1: memref<2x16x64xf32, #tpu.memory_space<vmem>>, %arg2: memref<3x64x128xbf16, #tpu.memory_space<vmem>>, %arg3: memref<3x128x128xbf16, #tpu.memory_space<vmem>>, %arg4: memref<3x128x128xbf16, #tpu.memory_space<vmem>>, %arg5: memref<4x128x128xbf16, #tpu.memory_space<vmem>>, %arg6: memref<3x128x128xbf16, #tpu.memory_space<vmem>>, %arg7: memref<3x128x128xbf16, #tpu.memory_space<vmem>>, %arg8: memref<128x64xbf16, #tpu.memory_space<vmem>>, %arg9: memref<1x128xf32, #tpu.memory_space<vmem>>, %arg10: memref<1x128xf32, #tpu.memory_space<vmem>>, %arg11: memref<1x128xf32, #tpu.memory_space<vmem>>, %arg12: memref<1x128xf32, #tpu.memory_space<vmem>>, %arg13: memref<1x128xf32, #tpu.memory_space<vmem>>, %arg14: memref<1x64xf32, #tpu.memory_space<vmem>>, %arg15: memref<2x8x64xf32, #tpu.memory_space<vmem>>, %arg16: memref<24x128xf32, #tpu.memory_space<vmem>>, %arg17: memref<24x128xf32, #tpu.memory_space<vmem>>, %arg18: memref<24x128xf32, #tpu.memory_space<vmem>>, %arg19: memref<24x128xf32, #tpu.memory_space<vmem>>, %arg20: memref<24x128xf32, #tpu.memory_space<vmem>>) attributes {dimension_semantics = [#tpu.dimension_semantics<parallel>], iteration_bounds = array<i64: 2>, scalar_prefetch = 0 : i64, scratch_operands = 5 : i64, tpu.core_type = #tpu.core_type<tc>, window_params = [{transform_indices = @transform_0, window_bounds = array<i64: 2, 16, 64>}, {pipeline_mode = #tpu.pipeline_mode<synchronous>, transform_indices = @transform_1, window_bounds = array<i64: 3, 64, 128>}, {pipeline_mode = #tpu.pipeline_mode<synchronous>, transform_indices = @transform_2, window_bounds = array<i64: 3, 128, 128>}, {pipeline_mode = #tpu.pipeline_mode<synchronous>, transform_indices = @transform_3, window_bounds = array<i64: 3, 128, 128>}, {pipeline_mode = #tpu.pipeline_mode<synchronous>, transform_indices = @transform_4, window_bounds = array<i64: 4, 128, 128>}, {pipeline_mode = #tpu.pipeline_mode<synchronous>, transform_indices = @transform_5, window_bounds = array<i64: 3, 128, 128>}, {pipeline_mode = #tpu.pipeline_mode<synchronous>, transform_indices = @transform_6, window_bounds = array<i64: 3, 128, 128>}, {pipeline_mode = #tpu.pipeline_mode<synchronous>, transform_indices = @transform_7, window_bounds = array<i64: 128, 64>}, {pipeline_mode = #tpu.pipeline_mode<synchronous>, transform_indices = @transform_8, window_bounds = array<i64: 1, 128>}, {pipeline_mode = #tpu.pipeline_mode<synchronous>, transform_indices = @transform_9, window_bounds = array<i64: 1, 128>}, {pipeline_mode = #tpu.pipeline_mode<synchronous>, transform_indices = @transform_10, window_bounds = array<i64: 1, 128>}, {pipeline_mode = #tpu.pipeline_mode<synchronous>, transform_indices = @transform_11, window_bounds = array<i64: 1, 128>}, {pipeline_mode = #tpu.pipeline_mode<synchronous>, transform_indices = @transform_12, window_bounds = array<i64: 1, 128>}, {pipeline_mode = #tpu.pipeline_mode<synchronous>, transform_indices = @transform_13, window_bounds = array<i64: 1, 64>}, {transform_indices = @transform_14, window_bounds = array<i64: 2, 8, 64>}]} {
    %cst = arith.constant 0.000000e+00 : f32
    %0 = vector.broadcast %cst : f32 to vector<8x128xf32>
    %c16 = arith.constant 16 : index
    %c0 = arith.constant 0 : index
    %1 = vector.load %arg16[%c16, %c0] : memref<24x128xf32, #tpu.memory_space<vmem>>, vector<8x128xf32>
    tpu.vector_store %arg16[%c16, %c0], %0 {strides = array<i32>} : memref<24x128xf32, #tpu.memory_space<vmem>>, vector<8x128xf32>,
    %cst_0 = arith.constant 0.000000e+00 : f32
    %2 = vector.broadcast %cst_0 : f32 to vector<8x128xf32>
    %c0_1 = arith.constant 0 : index
    %c0_2 = arith.constant 0 : index
    %3 = vector.load %arg17[%c0_1, %c0_2] : memref<24x128xf32, #tpu.memory_space<vmem>>, vector<8x128xf32>
    tpu.vector_store %arg17[%c0_1, %c0_2], %2 {strides = array<i32>} : memref<24x128xf32, #tpu.memory_space<vmem>>, vector<8x128xf32>,
    %cst_3 = arith.constant 0.000000e+00 : f32
    %4 = vector.broadcast %cst_3 : f32 to vector<8x128xf32>
    %c0_4 = arith.constant 0 : index
    %c0_5 = arith.constant 0 : index
    %5 = vector.load %arg18[%c0_4, %c0_5] : memref<24x128xf32, #tpu.memory_space<vmem>>, vector<8x128xf32>
    tpu.vector_store %arg18[%c0_4, %c0_5], %4 {strides = array<i32>} : memref<24x128xf32, #tpu.memory_space<vmem>>, vector<8x128xf32>,
    %cst_6 = arith.constant 0.000000e+00 : f32
    %6 = vector.broadcast %cst_6 : f32 to vector<8x128xf32>
    %c16_7 = arith.constant 16 : index
    %c0_8 = arith.constant 0 : index
    %7 = vector.load %arg18[%c16_7, %c0_8] : memref<24x128xf32, #tpu.memory_space<vmem>>, vector<8x128xf32>
    tpu.vector_store %arg18[%c16_7, %c0_8], %6 {strides = array<i32>} : memref<24x128xf32, #tpu.memory_space<vmem>>, vector<8x128xf32>,
    %cst_9 = arith.constant 0.000000e+00 : f32
    %8 = vector.broadcast %cst_9 : f32 to vector<8x128xf32>
    %c16_10 = arith.constant 16 : index
    %c0_11 = arith.constant 0 : index
    %9 = vector.load %arg19[%c16_10, %c0_11] : memref<24x128xf32, #tpu.memory_space<vmem>>, vector<8x128xf32>
    tpu.vector_store %arg19[%c16_10, %c0_11], %8 {strides = array<i32>} : memref<24x128xf32, #tpu.memory_space<vmem>>, vector<8x128xf32>,
    %cst_12 = arith.constant 0.000000e+00 : f32
    %10 = vector.broadcast %cst_12 : f32 to vector<8x128xf32>
    %c0_13 = arith.constant 0 : index
    %c0_14 = arith.constant 0 : index
    %11 = vector.load %arg20[%c0_13, %c0_14] : memref<24x128xf32, #tpu.memory_space<vmem>>, vector<8x128xf32>
    tpu.vector_store %arg20[%c0_13, %c0_14], %10 {strides = array<i32>} : memref<24x128xf32, #tpu.memory_space<vmem>>, vector<8x128xf32>,
    %c0_15 = arith.constant 0 : index
    %c4 = arith.constant 4 : index
    %c0_16 = arith.constant 0 : index
    %12 = vector.load %arg1[%c0_15, %c4, %c0_16] : memref<2x16x64xf32, #tpu.memory_space<vmem>>, vector<1x8x64xf32>
    %13 = vector.shape_cast %12 : vector<1x8x64xf32> to vector<8x64xf32>
    %14 = arith.truncf %13 : vector<8x64xf32> to vector<8x64xbf16>
    %c0_17 = arith.constant 0 : index
    %c5 = arith.constant 5 : index
    %c0_18 = arith.constant 0 : index
    %15 = vector.load %arg1[%c0_17, %c5, %c0_18] : memref<2x16x64xf32, #tpu.memory_space<vmem>>, vector<1x8x64xf32>
    %16 = vector.shape_cast %15 : vector<1x8x64xf32> to vector<8x64xf32>
    %17 = arith.truncf %16 : vector<8x64xf32> to vector<8x64xbf16>
    %c1 = arith.constant 1 : index
    %c3 = arith.constant 3 : index
    %c0_19 = arith.constant 0 : index
    %18 = vector.load %arg1[%c1, %c3, %c0_19] : memref<2x16x64xf32, #tpu.memory_space<vmem>>, vector<1x8x64xf32>
    %19 = vector.shape_cast %18 : vector<1x8x64xf32> to vector<8x64xf32>
    %20 = arith.truncf %19 : vector<8x64xf32> to vector<8x64xbf16>
    %c1_20 = arith.constant 1 : index
    %c4_21 = arith.constant 4 : index
    %c0_22 = arith.constant 0 : index
    %21 = vector.load %arg1[%c1_20, %c4_21, %c0_22] : memref<2x16x64xf32, #tpu.memory_space<vmem>>, vector<1x8x64xf32>
    %22 = vector.shape_cast %21 : vector<1x8x64xf32> to vector<8x64xf32>
    %23 = arith.truncf %22 : vector<8x64xf32> to vector<8x64xbf16>
    %c0_23 = arith.constant 0 : index
    %c0_24 = arith.constant 0 : index
    %c0_25 = arith.constant 0 : index
    %24 = vector.load %arg2[%c0_23, %c0_24, %c0_25] : memref<3x64x128xbf16, #tpu.memory_space<vmem>>, vector<1x64x128xbf16>
    %25 = vector.shape_cast %24 : vector<1x64x128xbf16> to vector<64x128xbf16>
    %cst_26 = arith.constant dense<0.000000e+00> : vector<8x128xf32>
    %26 = tpu.matmul %20, %25, %cst_26 {dimension_numbers = #tpu.dot_dimension_numbers<[1], [0], [0], [1], [0, 0, 1, 1], [], []>} : vector<8x64xbf16>, vector<64x128xbf16>, vector<8x128xf32> -> vector<8x128xf32>
    %c1_27 = arith.constant 1 : index
    %c0_28 = arith.constant 0 : index
    %c0_29 = arith.constant 0 : index
    %27 = vector.load %arg2[%c1_27, %c0_28, %c0_29] : memref<3x64x128xbf16, #tpu.memory_space<vmem>>, vector<1x64x128xbf16>
    %28 = vector.shape_cast %27 : vector<1x64x128xbf16> to vector<64x128xbf16>
    %cst_30 = arith.constant dense<0.000000e+00> : vector<8x128xf32>
    %29 = tpu.matmul %14, %28, %cst_30 {dimension_numbers = #tpu.dot_dimension_numbers<[1], [0], [0], [1], [0, 0, 1, 1], [], []>} : vector<8x64xbf16>, vector<64x128xbf16>, vector<8x128xf32> -> vector<8x128xf32>
    %30 = arith.addf %26, %29 : vector<8x128xf32>
    %c2 = arith.constant 2 : index
    %c0_31 = arith.constant 0 : index
    %c0_32 = arith.constant 0 : index
    %31 = vector.load %arg2[%c2, %c0_31, %c0_32] : memref<3x64x128xbf16, #tpu.memory_space<vmem>>, vector<1x64x128xbf16>
    %32 = vector.shape_cast %31 : vector<1x64x128xbf16> to vector<64x128xbf16>
    %cst_33 = arith.constant dense<0.000000e+00> : vector<8x128xf32>
    %33 = tpu.matmul %23, %32, %cst_33 {dimension_numbers = #tpu.dot_dimension_numbers<[1], [0], [0], [1], [0, 0, 1, 1], [], []>} : vector<8x64xbf16>, vector<64x128xbf16>, vector<8x128xf32> -> vector<8x128xf32>
    %34 = arith.addf %30, %33 : vector<8x128xf32>
    %c0_34 = arith.constant 0 : index
    %c0_35 = arith.constant 0 : index
    %35 = vector.load %arg9[%c0_34, %c0_35] : memref<1x128xf32, #tpu.memory_space<vmem>>, vector<1x128xf32>
    %36 = vector.broadcast %35 : vector<1x128xf32> to vector<8x128xf32>
    %37 = arith.addf %34, %36 : vector<8x128xf32>
    %cst_36 = arith.constant 0.000000e+00 : f32
    %38 = vector.broadcast %cst_36 : f32 to vector<8x128xf32>
    %39 = arith.maximumf %37, %38 : vector<8x128xf32>
    %c8 = arith.constant 8 : index
    %c0_37 = arith.constant 0 : index
    %40 = vector.load %arg16[%c8, %c0_37] : memref<24x128xf32, #tpu.memory_space<vmem>>, vector<8x128xf32>
    tpu.vector_store %arg16[%c8, %c0_37], %39 {strides = array<i32>} : memref<24x128xf32, #tpu.memory_space<vmem>>, vector<8x128xf32>,
    %c0_38 = arith.constant 0 : index
    %c0_39 = arith.constant 0 : index
    %c0_40 = arith.constant 0 : index
    %41 = vector.load %arg2[%c0_38, %c0_39, %c0_40] : memref<3x64x128xbf16, #tpu.memory_space<vmem>>, vector<1x64x128xbf16>
    %42 = vector.shape_cast %41 : vector<1x64x128xbf16> to vector<64x128xbf16>
    %cst_41 = arith.constant dense<0.000000e+00> : vector<8x128xf32>
    %43 = tpu.matmul %14, %42, %cst_41 {dimension_numbers = #tpu.dot_dimension_numbers<[1], [0], [0], [1], [0, 0, 1, 1], [], []>} : vector<8x64xbf16>, vector<64x128xbf16>, vector<8x128xf32> -> vector<8x128xf32>
    %c1_42 = arith.constant 1 : index
    %c0_43 = arith.constant 0 : index
    %c0_44 = arith.constant 0 : index
    %44 = vector.load %arg2[%c1_42, %c0_43, %c0_44] : memref<3x64x128xbf16, #tpu.memory_space<vmem>>, vector<1x64x128xbf16>
    %45 = vector.shape_cast %44 : vector<1x64x128xbf16> to vector<64x128xbf16>
    %cst_45 = arith.constant dense<0.000000e+00> : vector<8x128xf32>
    %46 = tpu.matmul %23, %45, %cst_45 {dimension_numbers = #tpu.dot_dimension_numbers<[1], [0], [0], [1], [0, 0, 1, 1], [], []>} : vector<8x64xbf16>, vector<64x128xbf16>, vector<8x128xf32> -> vector<8x128xf32>
    %47 = arith.addf %43, %46 : vector<8x128xf32>
    %c2_46 = arith.constant 2 : index
    %c0_47 = arith.constant 0 : index
    %c0_48 = arith.constant 0 : index
    %48 = vector.load %arg2[%c2_46, %c0_47, %c0_48] : memref<3x64x128xbf16, #tpu.memory_space<vmem>>, vector<1x64x128xbf16>
    %49 = vector.shape_cast %48 : vector<1x64x128xbf16> to vector<64x128xbf16>
    %cst_49 = arith.constant dense<0.000000e+00> : vector<8x128xf32>
    %50 = tpu.matmul %17, %49, %cst_49 {dimension_numbers = #tpu.dot_dimension_numbers<[1], [0], [0], [1], [0, 0, 1, 1], [], []>} : vector<8x64xbf16>, vector<64x128xbf16>, vector<8x128xf32> -> vector<8x128xf32>
    %51 = arith.addf %47, %50 : vector<8x128xf32>
    %c0_50 = arith.constant 0 : index
    %c0_51 = arith.constant 0 : index
    %52 = vector.load %arg9[%c0_50, %c0_51] : memref<1x128xf32, #tpu.memory_space<vmem>>, vector<1x128xf32>
    %53 = vector.broadcast %52 : vector<1x128xf32> to vector<8x128xf32>
    %54 = arith.addf %51, %53 : vector<8x128xf32>
    %cst_52 = arith.constant 0.000000e+00 : f32
    %55 = vector.broadcast %cst_52 : f32 to vector<8x128xf32>
    %56 = arith.maximumf %54, %55 : vector<8x128xf32>
    %c8_53 = arith.constant 8 : index
    %c0_54 = arith.constant 0 : index
    %57 = vector.load %arg17[%c8_53, %c0_54] : memref<24x128xf32, #tpu.memory_space<vmem>>, vector<8x128xf32>
    tpu.vector_store %arg17[%c8_53, %c0_54], %56 {strides = array<i32>} : memref<24x128xf32, #tpu.memory_space<vmem>>, vector<8x128xf32>,
    %58 = arith.truncf %39 : vector<8x128xf32> to vector<8x128xbf16>
    %59 = arith.truncf %56 : vector<8x128xf32> to vector<8x128xbf16>
    %c7 = arith.constant 7 : index
    %c0_55 = arith.constant 0 : index
    %60 = vector.load %arg17[%c7, %c0_55] : memref<24x128xf32, #tpu.memory_space<vmem>>, vector<8x128xf32>
    %61 = arith.truncf %60 : vector<8x128xf32> to vector<8x128xbf16>
    %c9 = arith.constant 9 : index
    %c0_56 = arith.constant 0 : index
    %62 = vector.load %arg16[%c9, %c0_56] : memref<24x128xf32, #tpu.memory_space<vmem>>, vector<8x128xf32>
    %63 = arith.truncf %62 : vector<8x128xf32> to vector<8x128xbf16>
    %c0_57 = arith.constant 0 : index
    %c0_58 = arith.constant 0 : index
    %c0_59 = arith.constant 0 : index
    %64 = vector.load %arg3[%c0_57, %c0_58, %c0_59] : memref<3x128x128xbf16, #tpu.memory_space<vmem>>, vector<1x128x128xbf16>
    %65 = vector.shape_cast %64 : vector<1x128x128xbf16> to vector<128x128xbf16>
    %cst_60 = arith.constant dense<0.000000e+00> : vector<8x128xf32>
    %66 = tpu.matmul %61, %65, %cst_60 {dimension_numbers = #tpu.dot_dimension_numbers<[1], [0], [0], [1], [0, 0, 1, 1], [], []>} : vector<8x128xbf16>, vector<128x128xbf16>, vector<8x128xf32> -> vector<8x128xf32>
    %c1_61 = arith.constant 1 : index
    %c0_62 = arith.constant 0 : index
    %c0_63 = arith.constant 0 : index
    %67 = vector.load %arg3[%c1_61, %c0_62, %c0_63] : memref<3x128x128xbf16, #tpu.memory_space<vmem>>, vector<1x128x128xbf16>
    %68 = vector.shape_cast %67 : vector<1x128x128xbf16> to vector<128x128xbf16>
    %cst_64 = arith.constant dense<0.000000e+00> : vector<8x128xf32>
    %69 = tpu.matmul %58, %68, %cst_64 {dimension_numbers = #tpu.dot_dimension_numbers<[1], [0], [0], [1], [0, 0, 1, 1], [], []>} : vector<8x128xbf16>, vector<128x128xbf16>, vector<8x128xf32> -> vector<8x128xf32>
    %70 = arith.addf %66, %69 : vector<8x128xf32>
    %c2_65 = arith.constant 2 : index
    %c0_66 = arith.constant 0 : index
    %c0_67 = arith.constant 0 : index
    %71 = vector.load %arg3[%c2_65, %c0_66, %c0_67] : memref<3x128x128xbf16, #tpu.memory_space<vmem>>, vector<1x128x128xbf16>
    %72 = vector.shape_cast %71 : vector<1x128x128xbf16> to vector<128x128xbf16>
    %cst_68 = arith.constant dense<0.000000e+00> : vector<8x128xf32>
    %73 = tpu.matmul %59, %72, %cst_68 {dimension_numbers = #tpu.dot_dimension_numbers<[1], [0], [0], [1], [0, 0, 1, 1], [], []>} : vector<8x128xbf16>, vector<128x128xbf16>, vector<8x128xf32> -> vector<8x128xf32>
    %74 = arith.addf %70, %73 : vector<8x128xf32>
    %c0_69 = arith.constant 0 : index
    %c0_70 = arith.constant 0 : index
    %75 = vector.load %arg10[%c0_69, %c0_70] : memref<1x128xf32, #tpu.memory_space<vmem>>, vector<1x128xf32>
    %76 = vector.broadcast %75 : vector<1x128xf32> to vector<8x128xf32>
    %77 = arith.addf %74, %76 : vector<8x128xf32>
    %cst_71 = arith.constant 0.000000e+00 : f32
    %78 = vector.broadcast %cst_71 : f32 to vector<8x128xf32>
    %79 = arith.maximumf %77, %78 : vector<8x128xf32>
    %c8_72 = arith.constant 8 : index
    %c0_73 = arith.constant 0 : index
    %80 = vector.load %arg18[%c8_72, %c0_73] : memref<24x128xf32, #tpu.memory_space<vmem>>, vector<8x128xf32>
    tpu.vector_store %arg18[%c8_72, %c0_73], %79 {strides = array<i32>} : memref<24x128xf32, #tpu.memory_space<vmem>>, vector<8x128xf32>,
    %c7_74 = arith.constant 7 : index
    %c0_75 = arith.constant 0 : index
    %81 = vector.load %arg18[%c7_74, %c0_75] : memref<24x128xf32, #tpu.memory_space<vmem>>, vector<8x128xf32>
    %82 = arith.truncf %81 : vector<8x128xf32> to vector<8x128xbf16>
    %83 = arith.truncf %79 : vector<8x128xf32> to vector<8x128xbf16>
    %c9_76 = arith.constant 9 : index
    %c0_77 = arith.constant 0 : index
    %84 = vector.load %arg18[%c9_76, %c0_77] : memref<24x128xf32, #tpu.memory_space<vmem>>, vector<8x128xf32>
    %85 = arith.truncf %84 : vector<8x128xf32> to vector<8x128xbf16>
    %c0_78 = arith.constant 0 : index
    %c0_79 = arith.constant 0 : index
    %c0_80 = arith.constant 0 : index
    %86 = vector.load %arg4[%c0_78, %c0_79, %c0_80] : memref<3x128x128xbf16, #tpu.memory_space<vmem>>, vector<1x128x128xbf16>
    %87 = vector.shape_cast %86 : vector<1x128x128xbf16> to vector<128x128xbf16>
    %cst_81 = arith.constant dense<0.000000e+00> : vector<8x128xf32>
    %88 = tpu.matmul %82, %87, %cst_81 {dimension_numbers = #tpu.dot_dimension_numbers<[1], [0], [0], [1], [0, 0, 1, 1], [], []>} : vector<8x128xbf16>, vector<128x128xbf16>, vector<8x128xf32> -> vector<8x128xf32>
    %c1_82 = arith.constant 1 : index
    %c0_83 = arith.constant 0 : index
    %c0_84 = arith.constant 0 : index
    %89 = vector.load %arg4[%c1_82, %c0_83, %c0_84] : memref<3x128x128xbf16, #tpu.memory_space<vmem>>, vector<1x128x128xbf16>
    %90 = vector.shape_cast %89 : vector<1x128x128xbf16> to vector<128x128xbf16>
    %cst_85 = arith.constant dense<0.000000e+00> : vector<8x128xf32>
    %91 = tpu.matmul %83, %90, %cst_85 {dimension_numbers = #tpu.dot_dimension_numbers<[1], [0], [0], [1], [0, 0, 1, 1], [], []>} : vector<8x128xbf16>, vector<128x128xbf16>, vector<8x128xf32> -> vector<8x128xf32>
    %92 = arith.addf %88, %91 : vector<8x128xf32>
    %c2_86 = arith.constant 2 : index
    %c0_87 = arith.constant 0 : index
    %c0_88 = arith.constant 0 : index
    %93 = vector.load %arg4[%c2_86, %c0_87, %c0_88] : memref<3x128x128xbf16, #tpu.memory_space<vmem>>, vector<1x128x128xbf16>
    %94 = vector.shape_cast %93 : vector<1x128x128xbf16> to vector<128x128xbf16>
    %cst_89 = arith.constant dense<0.000000e+00> : vector<8x128xf32>
    %95 = tpu.matmul %85, %94, %cst_89 {dimension_numbers = #tpu.dot_dimension_numbers<[1], [0], [0], [1], [0, 0, 1, 1], [], []>} : vector<8x128xbf16>, vector<128x128xbf16>, vector<8x128xf32> -> vector<8x128xf32>
    %96 = arith.addf %92, %95 : vector<8x128xf32>
    %c0_90 = arith.constant 0 : index
    %c0_91 = arith.constant 0 : index
    %97 = vector.load %arg11[%c0_90, %c0_91] : memref<1x128xf32, #tpu.memory_space<vmem>>, vector<1x128xf32>
    %98 = vector.broadcast %97 : vector<1x128xf32> to vector<8x128xf32>
    %99 = arith.addf %96, %98 : vector<8x128xf32>
    %cst_92 = arith.constant 0.000000e+00 : f32
    %100 = vector.broadcast %cst_92 : f32 to vector<8x128xf32>
    %101 = arith.maximumf %99, %100 : vector<8x128xf32>
    %c8_93 = arith.constant 8 : index
    %c0_94 = arith.constant 0 : index
    %102 = vector.load %arg18[%c8_93, %c0_94] : memref<24x128xf32, #tpu.memory_space<vmem>>, vector<8x128xf32>
    tpu.vector_store %arg18[%c8_93, %c0_94], %101 {strides = array<i32>} : memref<24x128xf32, #tpu.memory_space<vmem>>, vector<8x128xf32>,
    %103 = arith.truncf %101 : vector<8x128xf32> to vector<8x128xbf16>
    %c7_95 = arith.constant 7 : index
    %c0_96 = arith.constant 0 : index
    %104 = vector.load %arg18[%c7_95, %c0_96] : memref<24x128xf32, #tpu.memory_space<vmem>>, vector<8x128xf32>
    %105 = arith.truncf %104 : vector<8x128xf32> to vector<8x128xbf16>
    %c9_97 = arith.constant 9 : index
    %c0_98 = arith.constant 0 : index
    %106 = vector.load %arg18[%c9_97, %c0_98] : memref<24x128xf32, #tpu.memory_space<vmem>>, vector<8x128xf32>
    %107 = arith.truncf %106 : vector<8x128xf32> to vector<8x128xbf16>
    %c0_99 = arith.constant 0 : index
    %c0_100 = arith.constant 0 : index
    %c0_101 = arith.constant 0 : index
    %108 = vector.load %arg5[%c0_99, %c0_100, %c0_101] : memref<4x128x128xbf16, #tpu.memory_space<vmem>>, vector<1x128x128xbf16>
    %109 = vector.shape_cast %108 : vector<1x128x128xbf16> to vector<128x128xbf16>
    %cst_102 = arith.constant dense<0.000000e+00> : vector<8x128xf32>
    %110 = tpu.matmul %105, %109, %cst_102 {dimension_numbers = #tpu.dot_dimension_numbers<[1], [0], [0], [1], [0, 0, 1, 1], [], []>} : vector<8x128xbf16>, vector<128x128xbf16>, vector<8x128xf32> -> vector<8x128xf32>
    %c1_103 = arith.constant 1 : index
    %c0_104 = arith.constant 0 : index
    %c0_105 = arith.constant 0 : index
    %111 = vector.load %arg5[%c1_103, %c0_104, %c0_105] : memref<4x128x128xbf16, #tpu.memory_space<vmem>>, vector<1x128x128xbf16>
    %112 = vector.shape_cast %111 : vector<1x128x128xbf16> to vector<128x128xbf16>
    %cst_106 = arith.constant dense<0.000000e+00> : vector<8x128xf32>
    %113 = tpu.matmul %103, %112, %cst_106 {dimension_numbers = #tpu.dot_dimension_numbers<[1], [0], [0], [1], [0, 0, 1, 1], [], []>} : vector<8x128xbf16>, vector<128x128xbf16>, vector<8x128xf32> -> vector<8x128xf32>
    %114 = arith.addf %110, %113 : vector<8x128xf32>
    %c0_107 = arith.constant 0 : index
    %c0_108 = arith.constant 0 : index
    %115 = vector.load %arg12[%c0_107, %c0_108] : memref<1x128xf32, #tpu.memory_space<vmem>>, vector<1x128xf32>
    %116 = vector.broadcast %115 : vector<1x128xf32> to vector<8x128xf32>
    %117 = arith.addf %114, %116 : vector<8x128xf32>
    %cst_109 = arith.constant 0.000000e+00 : f32
    %118 = vector.broadcast %cst_109 : f32 to vector<8x128xf32>
    %119 = arith.maximumf %117, %118 : vector<8x128xf32>
    %c8_110 = arith.constant 8 : index
    %c0_111 = arith.constant 0 : index
    %120 = vector.load %arg19[%c8_110, %c0_111] : memref<24x128xf32, #tpu.memory_space<vmem>>, vector<8x128xf32>
    tpu.vector_store %arg19[%c8_110, %c0_111], %119 {strides = array<i32>} : memref<24x128xf32, #tpu.memory_space<vmem>>, vector<8x128xf32>,
    %c2_112 = arith.constant 2 : index
    %c0_113 = arith.constant 0 : index
    %c0_114 = arith.constant 0 : index
    %121 = vector.load %arg5[%c2_112, %c0_113, %c0_114] : memref<4x128x128xbf16, #tpu.memory_space<vmem>>, vector<1x128x128xbf16>
    %122 = vector.shape_cast %121 : vector<1x128x128xbf16> to vector<128x128xbf16>
    %cst_115 = arith.constant dense<0.000000e+00> : vector<8x128xf32>
    %123 = tpu.matmul %103, %122, %cst_115 {dimension_numbers = #tpu.dot_dimension_numbers<[1], [0], [0], [1], [0, 0, 1, 1], [], []>} : vector<8x128xbf16>, vector<128x128xbf16>, vector<8x128xf32> -> vector<8x128xf32>
    %c3_116 = arith.constant 3 : index
    %c0_117 = arith.constant 0 : index
    %c0_118 = arith.constant 0 : index
    %124 = vector.load %arg5[%c3_116, %c0_117, %c0_118] : memref<4x128x128xbf16, #tpu.memory_space<vmem>>, vector<1x128x128xbf16>
    %125 = vector.shape_cast %124 : vector<1x128x128xbf16> to vector<128x128xbf16>
    %cst_119 = arith.constant dense<0.000000e+00> : vector<8x128xf32>
    %126 = tpu.matmul %107, %125, %cst_119 {dimension_numbers = #tpu.dot_dimension_numbers<[1], [0], [0], [1], [0, 0, 1, 1], [], []>} : vector<8x128xbf16>, vector<128x128xbf16>, vector<8x128xf32> -> vector<8x128xf32>
    %127 = arith.addf %123, %126 : vector<8x128xf32>
    %c0_120 = arith.constant 0 : index
    %c0_121 = arith.constant 0 : index
    %128 = vector.load %arg12[%c0_120, %c0_121] : memref<1x128xf32, #tpu.memory_space<vmem>>, vector<1x128xf32>
    %129 = vector.broadcast %128 : vector<1x128xf32> to vector<8x128xf32>
    %130 = arith.addf %127, %129 : vector<8x128xf32>
    %cst_122 = arith.constant 0.000000e+00 : f32
    %131 = vector.broadcast %cst_122 : f32 to vector<8x128xf32>
    %132 = arith.maximumf %130, %131 : vector<8x128xf32>
    %c8_123 = arith.constant 8 : index
    %c0_124 = arith.constant 0 : index
    %133 = vector.load %arg20[%c8_123, %c0_124] : memref<24x128xf32, #tpu.memory_space<vmem>>, vector<8x128xf32>
    tpu.vector_store %arg20[%c8_123, %c0_124], %132 {strides = array<i32>} : memref<24x128xf32, #tpu.memory_space<vmem>>, vector<8x128xf32>,
    %134 = arith.truncf %119 : vector<8x128xf32> to vector<8x128xbf16>
    %135 = arith.truncf %132 : vector<8x128xf32> to vector<8x128xbf16>
    %c7_125 = arith.constant 7 : index
    %c0_126 = arith.constant 0 : index
    %136 = vector.load %arg20[%c7_125, %c0_126] : memref<24x128xf32, #tpu.memory_space<vmem>>, vector<8x128xf32>
    %137 = arith.truncf %136 : vector<8x128xf32> to vector<8x128xbf16>
    %c9_127 = arith.constant 9 : index
    %c0_128 = arith.constant 0 : index
    %138 = vector.load %arg19[%c9_127, %c0_128] : memref<24x128xf32, #tpu.memory_space<vmem>>, vector<8x128xf32>
    %139 = arith.truncf %138 : vector<8x128xf32> to vector<8x128xbf16>
    %c0_129 = arith.constant 0 : index
    %c0_130 = arith.constant 0 : index
    %c0_131 = arith.constant 0 : index
    %140 = vector.load %arg6[%c0_129, %c0_130, %c0_131] : memref<3x128x128xbf16, #tpu.memory_space<vmem>>, vector<1x128x128xbf16>
    %141 = vector.shape_cast %140 : vector<1x128x128xbf16> to vector<128x128xbf16>
    %cst_132 = arith.constant dense<0.000000e+00> : vector<8x128xf32>
    %142 = tpu.matmul %137, %141, %cst_132 {dimension_numbers = #tpu.dot_dimension_numbers<[1], [0], [0], [1], [0, 0, 1, 1], [], []>} : vector<8x128xbf16>, vector<128x128xbf16>, vector<8x128xf32> -> vector<8x128xf32>
    %c1_133 = arith.constant 1 : index
    %c0_134 = arith.constant 0 : index
    %c0_135 = arith.constant 0 : index
    %143 = vector.load %arg6[%c1_133, %c0_134, %c0_135] : memref<3x128x128xbf16, #tpu.memory_space<vmem>>, vector<1x128x128xbf16>
    %144 = vector.shape_cast %143 : vector<1x128x128xbf16> to vector<128x128xbf16>
    %cst_136 = arith.constant dense<0.000000e+00> : vector<8x128xf32>
    %145 = tpu.matmul %134, %144, %cst_136 {dimension_numbers = #tpu.dot_dimension_numbers<[1], [0], [0], [1], [0, 0, 1, 1], [], []>} : vector<8x128xbf16>, vector<128x128xbf16>, vector<8x128xf32> -> vector<8x128xf32>
    %146 = arith.addf %142, %145 : vector<8x128xf32>
    %c2_137 = arith.constant 2 : index
    %c0_138 = arith.constant 0 : index
    %c0_139 = arith.constant 0 : index
    %147 = vector.load %arg6[%c2_137, %c0_138, %c0_139] : memref<3x128x128xbf16, #tpu.memory_space<vmem>>, vector<1x128x128xbf16>
    %148 = vector.shape_cast %147 : vector<1x128x128xbf16> to vector<128x128xbf16>
    %cst_140 = arith.constant dense<0.000000e+00> : vector<8x128xf32>
    %149 = tpu.matmul %135, %148, %cst_140 {dimension_numbers = #tpu.dot_dimension_numbers<[1], [0], [0], [1], [0, 0, 1, 1], [], []>} : vector<8x128xbf16>, vector<128x128xbf16>, vector<8x128xf32> -> vector<8x128xf32>
    %150 = arith.addf %146, %149 : vector<8x128xf32>
    %c0_141 = arith.constant 0 : index
    %c0_142 = arith.constant 0 : index
    %c0_143 = arith.constant 0 : index
    %151 = vector.load %arg7[%c0_141, %c0_142, %c0_143] : memref<3x128x128xbf16, #tpu.memory_space<vmem>>, vector<1x128x128xbf16>
    %152 = vector.shape_cast %151 : vector<1x128x128xbf16> to vector<128x128xbf16>
    %cst_144 = arith.constant dense<0.000000e+00> : vector<8x128xf32>
    %153 = tpu.matmul %61, %152, %cst_144 {dimension_numbers = #tpu.dot_dimension_numbers<[1], [0], [0], [1], [0, 0, 1, 1], [], []>} : vector<8x128xbf16>, vector<128x128xbf16>, vector<8x128xf32> -> vector<8x128xf32>
    %154 = arith.addf %150, %153 : vector<8x128xf32>
    %c1_145 = arith.constant 1 : index
    %c0_146 = arith.constant 0 : index
    %c0_147 = arith.constant 0 : index
    %155 = vector.load %arg7[%c1_145, %c0_146, %c0_147] : memref<3x128x128xbf16, #tpu.memory_space<vmem>>, vector<1x128x128xbf16>
    %156 = vector.shape_cast %155 : vector<1x128x128xbf16> to vector<128x128xbf16>
    %cst_148 = arith.constant dense<0.000000e+00> : vector<8x128xf32>
    %157 = tpu.matmul %58, %156, %cst_148 {dimension_numbers = #tpu.dot_dimension_numbers<[1], [0], [0], [1], [0, 0, 1, 1], [], []>} : vector<8x128xbf16>, vector<128x128xbf16>, vector<8x128xf32> -> vector<8x128xf32>
    %158 = arith.addf %154, %157 : vector<8x128xf32>
    %c2_149 = arith.constant 2 : index
    %c0_150 = arith.constant 0 : index
    %c0_151 = arith.constant 0 : index
    %159 = vector.load %arg7[%c2_149, %c0_150, %c0_151] : memref<3x128x128xbf16, #tpu.memory_space<vmem>>, vector<1x128x128xbf16>
    %160 = vector.shape_cast %159 : vector<1x128x128xbf16> to vector<128x128xbf16>
    %cst_152 = arith.constant dense<0.000000e+00> : vector<8x128xf32>
    %161 = tpu.matmul %59, %160, %cst_152 {dimension_numbers = #tpu.dot_dimension_numbers<[1], [0], [0], [1], [0, 0, 1, 1], [], []>} : vector<8x128xbf16>, vector<128x128xbf16>, vector<8x128xf32> -> vector<8x128xf32>
    %162 = arith.addf %158, %161 : vector<8x128xf32>
    %c0_153 = arith.constant 0 : index
    %c0_154 = arith.constant 0 : index
    %163 = vector.load %arg13[%c0_153, %c0_154] : memref<1x128xf32, #tpu.memory_space<vmem>>, vector<1x128xf32>
    %164 = vector.broadcast %163 : vector<1x128xf32> to vector<8x128xf32>
    %165 = arith.addf %162, %164 : vector<8x128xf32>
    %cst_155 = arith.constant 0.000000e+00 : f32
    %166 = vector.broadcast %cst_155 : f32 to vector<8x128xf32>
    %167 = arith.maximumf %165, %166 : vector<8x128xf32>
    %168 = arith.truncf %167 : vector<8x128xf32> to vector<8x128xbf16>
    %c0_156 = arith.constant 0 : index
    %c0_157 = arith.constant 0 : index
    %c0_158 = arith.constant 0 : index
    %169 = vector.load %arg6[%c0_156, %c0_157, %c0_158] : memref<3x128x128xbf16, #tpu.memory_space<vmem>>, vector<1x128x128xbf16>
    %170 = vector.shape_cast %169 : vector<1x128x128xbf16> to vector<128x128xbf16>
    %cst_159 = arith.constant dense<0.000000e+00> : vector<8x128xf32>
    %171 = tpu.matmul %134, %170, %cst_159 {dimension_numbers = #tpu.dot_dimension_numbers<[1], [0], [0], [1], [0, 0, 1, 1], [], []>} : vector<8x128xbf16>, vector<128x128xbf16>, vector<8x128xf32> -> vector<8x128xf32>
    %c1_160 = arith.constant 1 : index
    %c0_161 = arith.constant 0 : index
    %c0_162 = arith.constant 0 : index
    %172 = vector.load %arg6[%c1_160, %c0_161, %c0_162] : memref<3x128x128xbf16, #tpu.memory_space<vmem>>, vector<1x128x128xbf16>
    %173 = vector.shape_cast %172 : vector<1x128x128xbf16> to vector<128x128xbf16>
    %cst_163 = arith.constant dense<0.000000e+00> : vector<8x128xf32>
    %174 = tpu.matmul %135, %173, %cst_163 {dimension_numbers = #tpu.dot_dimension_numbers<[1], [0], [0], [1], [0, 0, 1, 1], [], []>} : vector<8x128xbf16>, vector<128x128xbf16>, vector<8x128xf32> -> vector<8x128xf32>
    %175 = arith.addf %171, %174 : vector<8x128xf32>
    %c2_164 = arith.constant 2 : index
    %c0_165 = arith.constant 0 : index
    %c0_166 = arith.constant 0 : index
    %176 = vector.load %arg6[%c2_164, %c0_165, %c0_166] : memref<3x128x128xbf16, #tpu.memory_space<vmem>>, vector<1x128x128xbf16>
    %177 = vector.shape_cast %176 : vector<1x128x128xbf16> to vector<128x128xbf16>
    %cst_167 = arith.constant dense<0.000000e+00> : vector<8x128xf32>
    %178 = tpu.matmul %139, %177, %cst_167 {dimension_numbers = #tpu.dot_dimension_numbers<[1], [0], [0], [1], [0, 0, 1, 1], [], []>} : vector<8x128xbf16>, vector<128x128xbf16>, vector<8x128xf32> -> vector<8x128xf32>
    %179 = arith.addf %175, %178 : vector<8x128xf32>
    %c0_168 = arith.constant 0 : index
    %c0_169 = arith.constant 0 : index
    %c0_170 = arith.constant 0 : index
    %180 = vector.load %arg7[%c0_168, %c0_169, %c0_170] : memref<3x128x128xbf16, #tpu.memory_space<vmem>>, vector<1x128x128xbf16>
    %181 = vector.shape_cast %180 : vector<1x128x128xbf16> to vector<128x128xbf16>
    %cst_171 = arith.constant dense<0.000000e+00> : vector<8x128xf32>
    %182 = tpu.matmul %58, %181, %cst_171 {dimension_numbers = #tpu.dot_dimension_numbers<[1], [0], [0], [1], [0, 0, 1, 1], [], []>} : vector<8x128xbf16>, vector<128x128xbf16>, vector<8x128xf32> -> vector<8x128xf32>
    %183 = arith.addf %179, %182 : vector<8x128xf32>
    %c1_172 = arith.constant 1 : index
    %c0_173 = arith.constant 0 : index
    %c0_174 = arith.constant 0 : index
    %184 = vector.load %arg7[%c1_172, %c0_173, %c0_174] : memref<3x128x128xbf16, #tpu.memory_space<vmem>>, vector<1x128x128xbf16>
    %185 = vector.shape_cast %184 : vector<1x128x128xbf16> to vector<128x128xbf16>
    %cst_175 = arith.constant dense<0.000000e+00> : vector<8x128xf32>
    %186 = tpu.matmul %59, %185, %cst_175 {dimension_numbers = #tpu.dot_dimension_numbers<[1], [0], [0], [1], [0, 0, 1, 1], [], []>} : vector<8x128xbf16>, vector<128x128xbf16>, vector<8x128xf32> -> vector<8x128xf32>
    %187 = arith.addf %183, %186 : vector<8x128xf32>
    %c2_176 = arith.constant 2 : index
    %c0_177 = arith.constant 0 : index
    %c0_178 = arith.constant 0 : index
    %188 = vector.load %arg7[%c2_176, %c0_177, %c0_178] : memref<3x128x128xbf16, #tpu.memory_space<vmem>>, vector<1x128x128xbf16>
    %189 = vector.shape_cast %188 : vector<1x128x128xbf16> to vector<128x128xbf16>
    %cst_179 = arith.constant dense<0.000000e+00> : vector<8x128xf32>
    %190 = tpu.matmul %63, %189, %cst_179 {dimension_numbers = #tpu.dot_dimension_numbers<[1], [0], [0], [1], [0, 0, 1, 1], [], []>} : vector<8x128xbf16>, vector<128x128xbf16>, vector<8x128xf32> -> vector<8x128xf32>
    %191 = arith.addf %187, %190 : vector<8x128xf32>
    %c0_180 = arith.constant 0 : index
    %c0_181 = arith.constant 0 : index
    %192 = vector.load %arg13[%c0_180, %c0_181] : memref<1x128xf32, #tpu.memory_space<vmem>>, vector<1x128xf32>
    %193 = vector.broadcast %192 : vector<1x128xf32> to vector<8x128xf32>
    %194 = arith.addf %191, %193 : vector<8x128xf32>
    %cst_182 = arith.constant 0.000000e+00 : f32
    %195 = vector.broadcast %cst_182 : f32 to vector<8x128xf32>
    %196 = arith.maximumf %194, %195 : vector<8x128xf32>
    %197 = arith.truncf %196 : vector<8x128xf32> to vector<8x128xbf16>
    %c0_183 = arith.constant 0 : index
    %c0_184 = arith.constant 0 : index
    %198 = vector.load %arg8[%c0_183, %c0_184] : memref<128x64xbf16, #tpu.memory_space<vmem>>, vector<128x64xbf16>
    %cst_185 = arith.constant dense<0.000000e+00> : vector<8x64xf32>
    %199 = tpu.matmul %168, %198, %cst_185 {dimension_numbers = #tpu.dot_dimension_numbers<[1], [0], [0], [1], [0, 0, 1, 1], [], []>} : vector<8x128xbf16>, vector<128x64xbf16>, vector<8x64xf32> -> vector<8x64xf32>
    %c0_186 = arith.constant 0 : index
    %c0_187 = arith.constant 0 : index
    %200 = vector.load %arg14[%c0_186, %c0_187] : memref<1x64xf32, #tpu.memory_space<vmem>>, vector<1x64xf32>
    %201 = vector.broadcast %200 : vector<1x64xf32> to vector<8x64xf32>
    %202 = arith.addf %199, %201 : vector<8x64xf32>
    %cst_188 = arith.constant 0.000000e+00 : f32
    %203 = vector.broadcast %cst_188 : f32 to vector<8x64xf32>
    %204 = arith.maximumf %202, %203 : vector<8x64xf32>
    %c0_189 = arith.constant 0 : index
    %c0_190 = arith.constant 0 : index
    %c0_191 = arith.constant 0 : index
    %205 = vector.load %arg15[%c0_189, %c0_190, %c0_191] : memref<2x8x64xf32, #tpu.memory_space<vmem>>, vector<1x8x64xf32>
    %206 = vector.shape_cast %205 : vector<1x8x64xf32> to vector<8x64xf32>
    %207 = vector.shape_cast %204 : vector<8x64xf32> to vector<1x8x64xf32>
    tpu.vector_store %arg15[%c0_189, %c0_190, %c0_191], %207 {strides = array<i32>} : memref<2x8x64xf32, #tpu.memory_space<vmem>>, vector<1x8x64xf32>,
    %cst_192 = arith.constant dense<0.000000e+00> : vector<8x64xf32>
    %208 = tpu.matmul %197, %198, %cst_192 {dimension_numbers = #tpu.dot_dimension_numbers<[1], [0], [0], [1], [0, 0, 1, 1], [], []>} : vector<8x128xbf16>, vector<128x64xbf16>, vector<8x64xf32> -> vector<8x64xf32>
    %c0_193 = arith.constant 0 : index
    %c0_194 = arith.constant 0 : index
    %209 = vector.load %arg14[%c0_193, %c0_194] : memref<1x64xf32, #tpu.memory_space<vmem>>, vector<1x64xf32>
    %210 = vector.broadcast %209 : vector<1x64xf32> to vector<8x64xf32>
    %211 = arith.addf %208, %210 : vector<8x64xf32>
    %cst_195 = arith.constant 0.000000e+00 : f32
    %212 = vector.broadcast %cst_195 : f32 to vector<8x64xf32>
    %213 = arith.maximumf %211, %212 : vector<8x64xf32>
    %c1_196 = arith.constant 1 : index
    %c0_197 = arith.constant 0 : index
    %c0_198 = arith.constant 0 : index
    %214 = vector.load %arg15[%c1_196, %c0_197, %c0_198] : memref<2x8x64xf32, #tpu.memory_space<vmem>>, vector<1x8x64xf32>
    %215 = vector.shape_cast %214 : vector<1x8x64xf32> to vector<8x64xf32>
    %216 = vector.shape_cast %213 : vector<8x64xf32> to vector<1x8x64xf32>
    tpu.vector_store %arg15[%c1_196, %c0_197, %c0_198], %216 {strides = array<i32>} : memref<2x8x64xf32, #tpu.memory_space<vmem>>, vector<1x8x64xf32>,
    return
  }
  func.func @transform_0(%arg0: i32) -> (i32, i32, i32) {
    %c0_i32 = arith.constant 0 : i32
    %c0_i32_0 = arith.constant 0 : i32
    %c0_i32_1 = arith.constant 0 : i32
    return %arg0, %c0_i32, %c0_i32_0 : i32, i32, i32
  }
  func.func @transform_1(%arg0: i32) -> (i32, i32, i32) {
    %c0_i32 = arith.constant 0 : i32
    %c0_i32_0 = arith.constant 0 : i32
    %c0_i32_1 = arith.constant 0 : i32
    %c0_i32_2 = arith.constant 0 : i32
    return %c0_i32, %c0_i32_0, %c0_i32_1 : i32, i32, i32
  }
  func.func @transform_2(%arg0: i32) -> (i32, i32, i32) {
    %c0_i32 = arith.constant 0 : i32
    %c0_i32_0 = arith.constant 0 : i32
    %c0_i32_1 = arith.constant 0 : i32
    %c0_i32_2 = arith.constant 0 : i32
    return %c0_i32, %c0_i32_0, %c0_i32_1 : i32, i32, i32
  }
  func.func @transform_3(%arg0: i32) -> (i32, i32, i32) {
    %c0_i32 = arith.constant 0 : i32
    %c0_i32_0 = arith.constant 0 : i32
    %c0_i32_1 = arith.constant 0 : i32
    %c0_i32_2 = arith.constant 0 : i32
    return %c0_i32, %c0_i32_0, %c0_i32_1 : i32, i32, i32
  }
  func.func @transform_4(%arg0: i32) -> (i32, i32, i32) {
    %c0_i32 = arith.constant 0 : i32
    %c0_i32_0 = arith.constant 0 : i32
    %c0_i32_1 = arith.constant 0 : i32
    %c0_i32_2 = arith.constant 0 : i32
    return %c0_i32, %c0_i32_0, %c0_i32_1 : i32, i32, i32
  }
  func.func @transform_5(%arg0: i32) -> (i32, i32, i32) {
    %c0_i32 = arith.constant 0 : i32
    %c0_i32_0 = arith.constant 0 : i32
    %c0_i32_1 = arith.constant 0 : i32
    %c0_i32_2 = arith.constant 0 : i32
    return %c0_i32, %c0_i32_0, %c0_i32_1 : i32, i32, i32
  }
  func.func @transform_6(%arg0: i32) -> (i32, i32, i32) {
    %c0_i32 = arith.constant 0 : i32
    %c0_i32_0 = arith.constant 0 : i32
    %c0_i32_1 = arith.constant 0 : i32
    %c0_i32_2 = arith.constant 0 : i32
    return %c0_i32, %c0_i32_0, %c0_i32_1 : i32, i32, i32
  }
  func.func @transform_7(%arg0: i32) -> (i32, i32) {
    %c0_i32 = arith.constant 0 : i32
    %c0_i32_0 = arith.constant 0 : i32
    %c0_i32_1 = arith.constant 0 : i32
    return %c0_i32, %c0_i32_0 : i32, i32
  }
  func.func @transform_8(%arg0: i32) -> (i32, i32) {
    %c0_i32 = arith.constant 0 : i32
    %c0_i32_0 = arith.constant 0 : i32
    %c0_i32_1 = arith.constant 0 : i32
    return %c0_i32, %c0_i32_0 : i32, i32
  }
  func.func @transform_9(%arg0: i32) -> (i32, i32) {
    %c0_i32 = arith.constant 0 : i32
    %c0_i32_0 = arith.constant 0 : i32
    %c0_i32_1 = arith.constant 0 : i32
    return %c0_i32, %c0_i32_0 : i32, i32
  }
  func.func @transform_10(%arg0: i32) -> (i32, i32) {
    %c0_i32 = arith.constant 0 : i32
    %c0_i32_0 = arith.constant 0 : i32
    %c0_i32_1 = arith.constant 0 : i32
    return %c0_i32, %c0_i32_0 : i32, i32
  }
  func.func @transform_11(%arg0: i32) -> (i32, i32) {
    %c0_i32 = arith.constant 0 : i32
    %c0_i32_0 = arith.constant 0 : i32
    %c0_i32_1 = arith.constant 0 : i32
    return %c0_i32, %c0_i32_0 : i32, i32
  }
  func.func @transform_12(%arg0: i32) -> (i32, i32) {
    %c0_i32 = arith.constant 0 : i32
    %c0_i32_0 = arith.constant 0 : i32
    %c0_i32_1 = arith.constant 0 : i32
    return %c0_i32, %c0_i32_0 : i32, i32
  }
  func.func @transform_13(%arg0: i32) -> (i32, i32) {
    %c0_i32 = arith.constant 0 : i32
    %c0_i32_0 = arith.constant 0 : i32
    %c0_i32_1 = arith.constant 0 : i32
    return %c0_i32, %c0_i32_0 : i32, i32
  }
  func.func @transform_14(%arg0: i32) -> (i32, i32, i32) {
    %c0_i32 = arith.constant 0 : i32
    %c0_i32_0 = arith.constant 0 : i32
    %c0_i32_1 = arith.constant 0 : i32
    return %arg0, %c0_i32, %c0_i32_0 : i32, i32, i32
  }
}

</mosaic_0001>

<llo_original>
// kernel: tile.27
$region0: #{tile.27}
  %s0 = inlined_call_operand.vmem [shape: f32[16,8], index: 0, kind: input, shape index: {}]
  %s1 = inlined_call_operand.vmem [shape: f32[1,128], index: 1, kind: output, shape index: {}]
  $region1: #{tile.27} parent=0
    #allocation0 [shape = 'u8[4096]{0}', space=vmem, size = 0x1000, scoped, tag = 'scoped mem for output reshape']
    %v2 = vld [vmem:[%s0] sm:$0x1]
    %vm3 = vcmask 64512
    %4 = vst.msk [vmem:[#allocation0] sm:$0x1] %vm3, %v2
    %s5 = scalar_lea.vmem %s0, 15
    %v6 = vld [vmem:[%s5] sm:$0x1]
    %7 = vrot.lane.b32.xlu0 %v6, 120
    %v8 = vpop.permute.xlu0 %7
    %vm9 = vcmask 1048512
    %10 = vst.msk [vmem:[#allocation0] sm:$0x1] %vm9, %v8
    %s11 = scalar_lea.vmem %s0, 14
    %v12 = vld [vmem:[%s11] sm:$0x1]
    %13 = vrot.lane.b32.xlu0 %v12, 112
    %v14 = vpop.permute.xlu0 %13
    %vm15 = vcmask 982912
    %16 = vst.msk [vmem:[#allocation0] sm:$0x1] %vm15, %v14
    %s17 = scalar_lea.vmem %s0, 13
    %v18 = vld [vmem:[%s17] sm:$0x1]
    %19 = vrot.lane.b32.xlu0 %v18, 104
    %v20 = vpop.permute.xlu0 %19
    %vm21 = vcmask 917312
    %22 = vst.msk [vmem:[#allocation0] sm:$0x1] %vm21, %v20
    %s23 = scalar_lea.vmem %s0, 12
    %v24 = vld [vmem:[%s23] sm:$0x1]
    %25 = vrot.lane.b32.xlu0 %v24, 96
    %v26 = vpop.permute.xlu0 %25
    %vm27 = vcmask 851712
    %28 = vst.msk [vmem:[#allocation0] sm:$0x1] %vm27, %v26
    %s29 = scalar_lea.vmem %s0, 11
    %v30 = vld [vmem:[%s29] sm:$0x1]
    %31 = vrot.lane.b32.xlu0 %v30, 88
    %v32 = vpop.permute.xlu0 %31
    %vm33 = vcmask 786112
    %34 = vst.msk [vmem:[#allocation0] sm:$0x1] %vm33, %v32
    %s35 = scalar_lea.vmem %s0, 10
    %v36 = vld [vmem:[%s35] sm:$0x1]
    %37 = vrot.lane.b32.xlu0 %v36, 80
    %v38 = vpop.permute.xlu0 %37
    %vm39 = vcmask 720512
    %40 = vst.msk [vmem:[#allocation0] sm:$0x1] %vm39, %v38
    %s41 = scalar_lea.vmem %s0, 9
    %v42 = vld [vmem:[%s41] sm:$0x1]
    %43 = vrot.lane.b32.xlu0 %v42, 72
    %v44 = vpop.permute.xlu0 %43
    %vm45 = vcmask 654912
    %46 = vst.msk [vmem:[#allocation0] sm:$0x1] %vm45, %v44
    %s47 = scalar_lea.vmem %s0, 8
    %v48 = vld [vmem:[%s47] sm:$0x1]
    %49 = vrot.lane.b32.xlu0 %v48, 64
    %v50 = vpop.permute.xlu0 %49
    %vm51 = vcmask 589312
    %52 = vst.msk [vmem:[#allocation0] sm:$0x1] %vm51, %v50
    %s53 = scalar_lea.vmem %s0, 7
    %v54 = vld [vmem:[%s53] sm:$0x1]
    %55 = vrot.lane.b32.xlu0 %v54, 56
    %v56 = vpop.permute.xlu0 %55
    %vm57 = vcmask 523712
    %58 = vst.msk [vmem:[#allocation0] sm:$0x1] %vm57, %v56
    %s59 = scalar_lea.vmem %s0, 6
    %v60 = vld [vmem:[%s59] sm:$0x1]
    %61 = vrot.lane.b32.xlu0 %v60, 48
    %v62 = vpop.permute.xlu0 %61
    %vm63 = vcmask 458112
    %64 = vst.msk [vmem:[#allocation0] sm:$0x1] %vm63, %v62
    %s65 = scalar_lea.vmem %s0, 5
    %v66 = vld [vmem:[%s65] sm:$0x1]
    %67 = vrot.lane.b32.xlu0 %v66, 40
    %v68 = vpop.permute.xlu0 %67
    %vm69 = vcmask 392512
    %70 = vst.msk [vmem:[#allocation0] sm:$0x1] %vm69, %v68
    %s71 = scalar_lea.vmem %s0, 4
    %v72 = vld [vmem:[%s71] sm:$0x1]
    %73 = vrot.lane.b32.xlu0 %v72, 32
    %v74 = vpop.permute.xlu0 %73
    %vm75 = vcmask 326912
    %76 = vst.msk [vmem:[#allocation0] sm:$0x1] %vm75, %v74
    %s77 = scalar_lea.vmem %s0, 3
    %v78 = vld [vmem:[%s77] sm:$0x1]
    %79 = vrot.lane.b32.xlu0 %v78, 24
    %v80 = vpop.permute.xlu0 %79
    %vm81 = vcmask 261312
    %82 = vst.msk [vmem:[#allocation0] sm:$0x1] %vm81, %v80
    %s83 = scalar_lea.vmem %s0, 2
    %v84 = vld [vmem:[%s83] sm:$0x1]
    %85 = vrot.lane.b32.xlu0 %v84, 16
    %v86 = vpop.permute.xlu0 %85
    %vm87 = vcmask 195712
    %88 = vst.msk [vmem:[#allocation0] sm:$0x1] %vm87, %v86
    %s89 = scalar_lea.vmem %s0, 1
    %v90 = vld [vmem:[%s89] sm:$0x1]
    %91 = vrot.lane.b32.xlu0 %v90, 8
    %v92 = vpop.permute.xlu0 %91
    %vm93 = vcmask 130112
    %94 = vst.msk [vmem:[#allocation0] sm:$0x1] %vm93, %v92
    %s96 = sshllo.u32 0, 1
    %v98 = vld [vmem:[#allocation0] sm:%s96]
    %s99 = sshllo.u32 0, 1
    %100 = vst [vmem:[%s1] sm:%s99] %v98

// kernel: tile.26
$region0: #{tile.26}
  #allocation0 [shape = 's32[1]{0}', space=sflag, size = 0x4, scoped, tag = 'scoped memory for tile.26']
  %s0 = inlined_call_operand.vmem [shape: f32[8], index: 0, kind: input, shape index: {}]
  %s1 = inlined_call_operand.vmem [shape: f32[16,8], index: 1, kind: output, shape index: {}]
  // Predicated region
  $region2: #{tile.26} parent=0 // pred_check
    _
  $region3: #{tile.26} parent=0 // pred_check_branch
    %3 = sbr.rel (0) target = $region5
  $region4: #{tile.26} parent=0 // pred_region
    _
  $region5: #{tile.26} parent=0 // pred_fallthru
    _
  %v4 = vld [vmem:[%s0] ss:$0 sm:$0xff]
  %5 = vst [vmem:[%s1] sm:$0xff] %v4
  %s6 = scalar_lea.vmem %s1, 8
  %7 = vst [vmem:[%s6] sm:$0xff] %v4

// kernel: tile.46
$region0: #{tile.46}
  #allocation0 [shape = 's32[1]{0}', space=sflag, size = 0x4, scoped, tag = 'scoped memory for tile.46']
  %s0 = inlined_call_operand.vmem [shape: f32[4], index: 0, kind: input, shape index: {}]
  %s1 = inlined_call_operand.vmem [shape: f32[16,4], index: 1, kind: output, shape index: {}]
  // Predicated region
  $region2: #{tile.46} parent=0 // pred_check
    _
  $region3: #{tile.46} parent=0 // pred_check_branch
    %3 = sbr.rel (0) target = $region5
  $region4: #{tile.46} parent=0 // pred_region
    _
  $region5: #{tile.46} parent=0 // pred_fallthru
    _
  %v4 = vld [vmem:[%s0] ss:$0 sm:$0xff]
  %5 = vst [vmem:[%s1] sm:$0xff] %v4
  %s6 = scalar_lea.vmem %s1, 8
  %7 = vst [vmem:[%s6] sm:$0xff] %v4

// kernel: tile.47
$region0: #{tile.47}
  %s0 = inlined_call_operand.vmem [shape: f32[16,4], index: 0, kind: input, shape index: {}]
  %s1 = inlined_call_operand.vmem [shape: f32[1,64], index: 1, kind: output, shape index: {}]
  $region1: #{tile.47} parent=0
    #allocation0 [shape = 'u8[4096]{0}', space=vmem, size = 0x1000, scoped, tag = 'scoped mem for output reshape']
    %v2 = vld [vmem:[%s0] sm:$0x1]
    %vm3 = vcmask 31744
    %4 = vst.msk [vmem:[#allocation0] sm:$0x1] %vm3, %v2
    %s5 = scalar_lea.vmem %s0, 15
    %v6 = vld [vmem:[%s5] sm:$0x1]
    %7 = vrot.lane.b32.xlu0 %v6, 60
    %v8 = vpop.permute.xlu0 %7
    %vm9 = vcmask 523744
    %10 = vst.msk [vmem:[#allocation0] sm:$0x1] %vm9, %v8
    %s11 = scalar_lea.vmem %s0, 14
    %v12 = vld [vmem:[%s11] sm:$0x1]
    %13 = vrot.lane.b32.xlu0 %v12, 56
    %v14 = vpop.permute.xlu0 %13
    %vm15 = vcmask 490944
    %16 = vst.msk [vmem:[#allocation0] sm:$0x1] %vm15, %v14
    %s17 = scalar_lea.vmem %s0, 13
    %v18 = vld [vmem:[%s17] sm:$0x1]
    %19 = vrot.lane.b32.xlu0 %v18, 52
    %v20 = vpop.permute.xlu0 %19
    %vm21 = vcmask 458144
    %22 = vst.msk [vmem:[#allocation0] sm:$0x1] %vm21, %v20
    %s23 = scalar_lea.vmem %s0, 12
    %v24 = vld [vmem:[%s23] sm:$0x1]
    %25 = vrot.lane.b32.xlu0 %v24, 48
    %v26 = vpop.permute.xlu0 %25
    %vm27 = vcmask 425344
    %28 = vst.msk [vmem:[#allocation0] sm:$0x1] %vm27, %v26
    %s29 = scalar_lea.vmem %s0, 11
    %v30 = vld [vmem:[%s29] sm:$0x1]
    %31 = vrot.lane.b32.xlu0 %v30, 44
    %v32 = vpop.permute.xlu0 %31
    %vm33 = vcmask 392544
    %34 = vst.msk [vmem:[#allocation0] sm:$0x1] %vm33, %v32
    %s35 = scalar_lea.vmem %s0, 10
    %v36 = vld [vmem:[%s35] sm:$0x1]
    %37 = vrot.lane.b32.xlu0 %v36, 40
    %v38 = vpop.permute.xlu0 %37
    %vm39 = vcmask 359744
    %40 = vst.msk [vmem:[#allocation0] sm:$0x1] %vm39, %v38
    %s41 = scalar_lea.vmem %s0, 9
    %v42 = vld [vmem:[%s41] sm:$0x1]
    %43 = vrot.lane.b32.xlu0 %v42, 36
    %v44 = vpop.permute.xlu0 %43
    %vm45 = vcmask 326944
    %46 = vst.msk [vmem:[#allocation0] sm:$0x1] %vm45, %v44
    %s47 = scalar_lea.vmem %s0, 8
    %v48 = vld [vmem:[%s47] sm:$0x1]
    %49 = vrot.lane.b32.xlu0 %v48, 32
    %v50 = vpop.permute.xlu0 %49
    %vm51 = vcmask 294144
    %52 = vst.msk [vmem:[#allocation0] sm:$0x1] %vm51, %v50
    %s53 = scalar_lea.vmem %s0, 7
    %v54 = vld [vmem:[%s53] sm:$0x1]
    %55 = vrot.lane.b32.xlu0 %v54, 28
    %v56 = vpop.permute.xlu0 %55
    %vm57 = vcmask 261344
    %58 = vst.msk [vmem:[#allocation0] sm:$0x1] %vm57, %v56
    %s59 = scalar_lea.vmem %s0, 6
    %v60 = vld [vmem:[%s59] sm:$0x1]
    %61 = vrot.lane.b32.xlu0 %v60, 24
    %v62 = vpop.permute.xlu0 %61
    %vm63 = vcmask 228544
    %64 = vst.msk [vmem:[#allocation0] sm:$0x1] %vm63, %v62
    %s65 = scalar_lea.vmem %s0, 5
    %v66 = vld [vmem:[%s65] sm:$0x1]
    %67 = vrot.lane.b32.xlu0 %v66, 20
    %v68 = vpop.permute.xlu0 %67
    %vm69 = vcmask 195744
    %70 = vst.msk [vmem:[#allocation0] sm:$0x1] %vm69, %v68
    %s71 = scalar_lea.vmem %s0, 4
    %v72 = vld [vmem:[%s71] sm:$0x1]
    %73 = vrot.lane.b32.xlu0 %v72, 16
    %v74 = vpop.permute.xlu0 %73
    %vm75 = vcmask 162944
    %76 = vst.msk [vmem:[#allocation0] sm:$0x1] %vm75, %v74
    %s77 = scalar_lea.vmem %s0, 3
    %v78 = vld [vmem:[%s77] sm:$0x1]
    %79 = vrot.lane.b32.xlu0 %v78, 12
    %v80 = vpop.permute.xlu0 %79
    %vm81 = vcmask 130144
    %82 = vst.msk [vmem:[#allocation0] sm:$0x1] %vm81, %v80
    %s83 = scalar_lea.vmem %s0, 2
    %v84 = vld [vmem:[%s83] sm:$0x1]
    %85 = vrot.lane.b32.xlu0 %v84, 8
    %v86 = vpop.permute.xlu0 %85
    %vm87 = vcmask 97344
    %88 = vst.msk [vmem:[#allocation0] sm:$0x1] %vm87, %v86
    %s89 = scalar_lea.vmem %s0, 1
    %v90 = vld [vmem:[%s89] sm:$0x1]
    %91 = vrot.lane.b32.xlu0 %v90, 4
    %v92 = vpop.permute.xlu0 %91
    %vm93 = vcmask 64544
    %94 = vst.msk [vmem:[#allocation0] sm:$0x1] %vm93, %v92
    %s96 = sshllo.u32 0, 1
    %v98 = vld [vmem:[#allocation0] sm:%s96]
    %s99 = sshllo.u32 0, 1
    %100 = vst [vmem:[%s1] sm:%s99] %v98

// kernel: tile.30
$region0: #{tile.30}
  #allocation0 [shape = 's32[1]{0}', space=sflag, size = 0x4, scoped, tag = 'scoped memory for tile.30']
  %s0 = inlined_call_operand.vmem [shape: f32[16], index: 0, kind: input, shape index: {}]
  %s1 = inlined_call_operand.vmem [shape: f32[8,16], index: 1, kind: output, shape index: {}]
  // Predicated region
  $region2: #{tile.30} parent=0 // pred_check
    _
  $region3: #{tile.30} parent=0 // pred_check_branch
    %3 = sbr.rel (0) target = $region5
  $region4: #{tile.30} parent=0 // pred_region
    _
  $region5: #{tile.30} parent=0 // pred_fallthru
    _
  %v4 = vld [vmem:[%s0] ss:$0 sm:$0xff]
  %5 = vst [vmem:[%s1] sm:$0xff] %v4

// kernel: tile.31
$region0: #{tile.31}
  %s0 = inlined_call_operand.vmem [shape: f32[8,16], index: 0, kind: input, shape index: {}]
  %s1 = inlined_call_operand.vmem [shape: f32[1,128], index: 1, kind: output, shape index: {}]
  $region1: #{tile.31} parent=0
    #allocation0 [shape = 'u8[4096]{0}', space=vmem, size = 0x1000, scoped, tag = 'scoped mem for output reshape']
    %v2 = vld [vmem:[%s0] sm:$0x1]
    %vm3 = vcmask 130048
    %4 = vst.msk [vmem:[#allocation0] sm:$0x1] %vm3, %v2
    %s5 = scalar_lea.vmem %s0, 7
    %v6 = vld [vmem:[%s5] sm:$0x1]
    %7 = vrot.lane.b32.xlu0 %v6, 112
    %v8 = vpop.permute.xlu0 %7
    %vm9 = vcmask 1048448
    %10 = vst.msk [vmem:[#allocation0] sm:$0x1] %vm9, %v8
    %s11 = scalar_lea.vmem %s0, 6
    %v12 = vld [vmem:[%s11] sm:$0x1]
    %13 = vrot.lane.b32.xlu0 %v12, 96
    %v14 = vpop.permute.xlu0 %13
    %vm15 = vcmask 917248
    %16 = vst.msk [vmem:[#allocation0] sm:$0x1] %vm15, %v14
    %s17 = scalar_lea.vmem %s0, 5
    %v18 = vld [vmem:[%s17] sm:$0x1]
    %19 = vrot.lane.b32.xlu0 %v18, 80
    %v20 = vpop.permute.xlu0 %19
    %vm21 = vcmask 786048
    %22 = vst.msk [vmem:[#allocation0] sm:$0x1] %vm21, %v20
    %s23 = scalar_lea.vmem %s0, 4
    %v24 = vld [vmem:[%s23] sm:$0x1]
    %25 = vrot.lane.b32.xlu0 %v24, 64
    %v26 = vpop.permute.xlu0 %25
    %vm27 = vcmask 654848
    %28 = vst.msk [vmem:[#allocation0] sm:$0x1] %vm27, %v26
    %s29 = scalar_lea.vmem %s0, 3
    %v30 = vld [vmem:[%s29] sm:$0x1]
    %31 = vrot.lane.b32.xlu0 %v30, 48
    %v32 = vpop.permute.xlu0 %31
    %vm33 = vcmask 523648
    %34 = vst.msk [vmem:[#allocation0] sm:$0x1] %vm33, %v32
    %s35 = scalar_lea.vmem %s0, 2
    %v36 = vld [vmem:[%s35] sm:$0x1]
    %37 = vrot.lane.b32.xlu0 %v36, 32
    %v38 = vpop.permute.xlu0 %37
    %vm39 = vcmask 392448
    %40 = vst.msk [vmem:[#allocation0] sm:$0x1] %vm39, %v38
    %s41 = scalar_lea.vmem %s0, 1
    %v42 = vld [vmem:[%s41] sm:$0x1]
    %43 = vrot.lane.b32.xlu0 %v42, 16
    %v44 = vpop.permute.xlu0 %43
    %vm45 = vcmask 261248
    %46 = vst.msk [vmem:[#allocation0] sm:$0x1] %vm45, %v44
    %s48 = sshllo.u32 0, 1
    %v50 = vld [vmem:[#allocation0] sm:%s48]
    %s51 = sshllo.u32 0, 1
    %52 = vst [vmem:[%s1] sm:%s51] %v50

// kernel: generator_forward.1
$region0: #{generator_forward.1}
  #allocation0 [shape = 'u32[]', space=smem, size = 0x4, offset = 0x4, fixed_abs, tag = 'smem constant byte address 0x4 - core index']
  #allocation1 [shape = 'u32[144,128]{1,0:T(1,128)}', space=vmem, size = 0x12000, scoped, tag = 'internal scratch']
  #allocation2 [shape = 'f32[24,128]{1,0:T(8,128)}', space=vmem, size = 0x3000, scoped, tag = 'scratch operand']
  #allocation3 [shape = 'f32[24,128]{1,0:T(8,128)}', space=vmem, size = 0x3000, scoped, tag = 'scratch operand']
  #allocation4 [shape = 'f32[24,128]{1,0:T(8,128)}', space=vmem, size = 0x3000, scoped, tag = 'scratch operand']
  #allocation5 [shape = 'f32[24,128]{1,0:T(8,128)}', space=vmem, size = 0x3000, scoped, tag = 'scratch operand']
  #allocation6 [shape = 'f32[24,128]{1,0:T(8,128)}', space=vmem, size = 0x3000, scoped, tag = 'scratch operand']
  %s0 = inlined_call_operand.vmem [shape: f32[4,16,64], index: 0, kind: input, shape index: {}]
  %s1 = inlined_call_operand.vmem [shape: bf16[3,64,128], index: 1, kind: input, shape index: {}]
  %s2 = inlined_call_operand.vmem [shape: bf16[3,128,128], index: 2, kind: input, shape index: {}]
  %s3 = inlined_call_operand.vmem [shape: bf16[3,128,128], index: 3, kind: input, shape index: {}]
  %s4 = inlined_call_operand.vmem [shape: bf16[4,128,128], index: 4, kind: input, shape index: {}]
  %s5 = inlined_call_operand.vmem [shape: bf16[3,128,128], index: 5, kind: input, shape index: {}]
  %s6 = inlined_call_operand.vmem [shape: bf16[3,128,128], index: 6, kind: input, shape index: {}]
  %s7 = inlined_call_operand.vmem [shape: bf16[128,64], index: 7, kind: input, shape index: {}]
  %s8 = inlined_call_operand.vmem [shape: f32[1,128], index: 8, kind: input, shape index: {}]
  %s9 = inlined_call_operand.vmem [shape: f32[1,128], index: 9, kind: input, shape index: {}]
  %s10 = inlined_call_operand.vmem [shape: f32[1,128], index: 10, kind: input, shape index: {}]
  %s11 = inlined_call_operand.vmem [shape: f32[1,128], index: 11, kind: input, shape index: {}]
  %s12 = inlined_call_operand.vmem [shape: f32[1,128], index: 12, kind: input, shape index: {}]
  %s13 = inlined_call_operand.vmem [shape: f32[1,64], index: 13, kind: input, shape index: {}]
  %s14 = inlined_call_operand.vmem [shape: f32[4,8,64], index: 14, kind: output, shape index: {}]
  %s15 = sld [smem:[#allocation0]]
  $region89: #{generator_forward.1} parent=0
    _
  %s17 = ssub.s32 1, %s15
  %s18 = scalar_select 0, %s17, %s15
  loop: start=0, step=1, limit=4
  $region2: #{generator_forward.1} parent=0 // loop_pre_header
    _
  $region3: #{generator_forward.1} parent=0 // loop_header
    %s20 = sphi 0, %s24
    %p21 = scmp.ge.s32.totalorder %s20, 4
    %s30 = sphi 0, %s32
    %s33 = sphi 0, %s30
    %s34 = sphi 0, %s33
    %s50 = sphi 0, %s34
    %s54 = sphi 0, %s54
    %s56 = sphi 0, %s54
    %s57 = sphi 0, %s56
    %s71 = sphi 0, %s57
    %s75 = sphi 0, %s75
    %s77 = sphi 0, %s75
    %s78 = sphi 0, %s77
    %s92 = sphi 0, %s78
    %s96 = sphi 0, %s96
    %s98 = sphi 0, %s96
    %s99 = sphi 0, %s98
    %s113 = sphi 0, %s99
    %s117 = sphi 0, %s117
    %s119 = sphi 0, %s117
    %s120 = sphi 0, %s119
    %s134 = sphi 0, %s120
    %s138 = sphi 0, %s138
    %s140 = sphi 0, %s138
    %s141 = sphi 0, %s140
    %s155 = sphi 0, %s141
    %s159 = sphi 0, %s159
    %s161 = sphi 0, %s159
    %s162 = sphi 0, %s161
    %s176 = sphi 0, %s162
    %s180 = sphi 0, %s180
    %s182 = sphi 0, %s180
    %s183 = sphi 0, %s182
    %s197 = sphi 0, %s183
    %s201 = sphi 0, %s201
    %s203 = sphi 0, %s201
    %s204 = sphi 0, %s203
    %s218 = sphi 0, %s204
    %s222 = sphi 0, %s222
    %s224 = sphi 0, %s222
    %s225 = sphi 0, %s224
    %s239 = sphi 0, %s225
    %s243 = sphi 0, %s243
    %s245 = sphi 0, %s243
    %s246 = sphi 0, %s245
    %s260 = sphi 0, %s246
    %s264 = sphi 0, %s264
    %s266 = sphi 0, %s264
    %s267 = sphi 0, %s266
    %s281 = sphi 0, %s267
    %s285 = sphi 0, %s285
    %s287 = sphi 0, %s285
    %s288 = sphi 0, %s287
    %s302 = sphi 0, %s288
    %s306 = sphi 0, %s306
    %s308 = sphi 0, %s306
    %s309 = sphi 0, %s308
    %s323 = sphi 0, %s309
    %s329 = sphi 0, %s331
    %s332 = sphi 0, %s329
    %s333 = sphi 0, %s332
    %s349 = sphi 0, %s333
  $region4: #{generator_forward.1} parent=0 // loop_header_branch
    %23 = sbr.rel (%p21) target = $region8
  $region5: #{generator_forward.1} parent=0 // loop_body
    %s25 = ssub.s32 %s20, 1
    %s26 = ssub.s32 %s20, 2
    %s27 = sadd.s32 %s20, 1
    %s28 = ssub.s32 %s20, %s27
    %p29 = scmp.eq.s32.totalorder %s28, 0
    %s31 = sadd.s32 %s30, 1
    %s32 = scalar_select %p29, %s30, %s31
    %p35 = pneg %p29
    %p36 = scmp.eq.s32.totalorder %s20, 1
    %p37 = por %p35, %p36
    %p38 = scmp.ne.s32.totalorder %s30, %s33
    %p39 = scmp.eq.s32.totalorder %s20, 0
    %p40 = por %p38, %p39
    %p41 = scmp.ne.s32.totalorder %s30, %s33
    %p42 = scmp.eq.s32.totalorder %s25, 1
    %p43 = por %p41, %p42
    %p44 = scmp.ne.s32.totalorder %s33, %s34
    %p45 = scmp.eq.s32.totalorder %s25, 0
    %p46 = por %p44, %p45
    %p47 = scmp.ne.s32.totalorder %s33, %s34
    %p48 = scmp.eq.s32.totalorder %s26, 1
    %p49 = por %p47, %p48
    %p51 = scmp.ne.s32.totalorder %s34, %s50
    %p52 = scmp.eq.s32.totalorder %s26, 0
    %p53 = por %p51, %p52
    %s55 = sadd.s32 %s54, 1
    %p58 = scmp.eq.s32.totalorder %s20, 1
    %p59 = scmp.ne.s32.totalorder %s54, %s56
    %p60 = scmp.eq.s32.totalorder %s20, 0
    %p61 = por %p59, %p60
    %p62 = scmp.ne.s32.totalorder %s54, %s56
    %p63 = scmp.eq.s32.totalorder %s25, 1
    %p64 = por %p62, %p63
    %p65 = scmp.ne.s32.totalorder %s56, %s57
    %p66 = scmp.eq.s32.totalorder %s25, 0
    %p67 = por %p65, %p66
    %p68 = scmp.ne.s32.totalorder %s56, %s57
    %p69 = scmp.eq.s32.totalorder %s26, 1
    %p70 = por %p68, %p69
    %p72 = scmp.ne.s32.totalorder %s57, %s71
    %p73 = scmp.eq.s32.totalorder %s26, 0
    %p74 = por %p72, %p73
    %s76 = sadd.s32 %s75, 1
    %p79 = scmp.eq.s32.totalorder %s20, 1
    %p80 = scmp.ne.s32.totalorder %s75, %s77
    %p81 = scmp.eq.s32.totalorder %s20, 0
    %p82 = por %p80, %p81
    %p83 = scmp.ne.s32.totalorder %s75, %s77
    %p84 = scmp.eq.s32.totalorder %s25, 1
    %p85 = por %p83, %p84
    %p86 = scmp.ne.s32.totalorder %s77, %s78
    %p87 = scmp.eq.s32.totalorder %s25, 0
    %p88 = por %p86, %p87
    %p89 = scmp.ne.s32.totalorder %s77, %s78
    %p90 = scmp.eq.s32.totalorder %s26, 1
    %p91 = por %p89, %p90
    %p93 = scmp.ne.s32.totalorder %s78, %s92
    %p94 = scmp.eq.s32.totalorder %s26, 0
    %p95 = por %p93, %p94
    %s97 = sadd.s32 %s96, 1
    %p100 = scmp.eq.s32.totalorder %s20, 1
    %p101 = scmp.ne.s32.totalorder %s96, %s98
    %p102 = scmp.eq.s32.totalorder %s20, 0
    %p103 = por %p101, %p102
    %p104 = scmp.ne.s32.totalorder %s96, %s98
    %p105 = scmp.eq.s32.totalorder %s25, 1
    %p106 = por %p104, %p105
    %p107 = scmp.ne.s32.totalorder %s98, %s99
    %p108 = scmp.eq.s32.totalorder %s25, 0
    %p109 = por %p107, %p108
    %p110 = scmp.ne.s32.totalorder %s98, %s99
    %p111 = scmp.eq.s32.totalorder %s26, 1
    %p112 = por %p110, %p111
    %p114 = scmp.ne.s32.totalorder %s99, %s113
    %p115 = scmp.eq.s32.totalorder %s26, 0
    %p116 = por %p114, %p115
    %s118 = sadd.s32 %s117, 1
    %p121 = scmp.eq.s32.totalorder %s20, 1
    %p122 = scmp.ne.s32.totalorder %s117, %s119
    %p123 = scmp.eq.s32.totalorder %s20, 0
    %p124 = por %p122, %p123
    %p125 = scmp.ne.s32.totalorder %s117, %s119
    %p126 = scmp.eq.s32.totalorder %s25, 1
    %p127 = por %p125, %p126
    %p128 = scmp.ne.s32.totalorder %s119, %s120
    %p129 = scmp.eq.s32.totalorder %s25, 0
    %p130 = por %p128, %p129
    %p131 = scmp.ne.s32.totalorder %s119, %s120
    %p132 = scmp.eq.s32.totalorder %s26, 1
    %p133 = por %p131, %p132
    %p135 = scmp.ne.s32.totalorder %s120, %s134
    %p136 = scmp.eq.s32.totalorder %s26, 0
    %p137 = por %p135, %p136
    %s139 = sadd.s32 %s138, 1
    %p142 = scmp.eq.s32.totalorder %s20, 1
    %p143 = scmp.ne.s32.totalorder %s138, %s140
    %p144 = scmp.eq.s32.totalorder %s20, 0
    %p145 = por %p143, %p144
    %p146 = scmp.ne.s32.totalorder %s138, %s140
    %p147 = scmp.eq.s32.totalorder %s25, 1
    %p148 = por %p146, %p147
    %p149 = scmp.ne.s32.totalorder %s140, %s141
    %p150 = scmp.eq.s32.totalorder %s25, 0
    %p151 = por %p149, %p150
    %p152 = scmp.ne.s32.totalorder %s140, %s141
    %p153 = scmp.eq.s32.totalorder %s26, 1
    %p154 = por %p152, %p153
    %p156 = scmp.ne.s32.totalorder %s141, %s155
    %p157 = scmp.eq.s32.totalorder %s26, 0
    %p158 = por %p156, %p157
    %s160 = sadd.s32 %s159, 1
    %p163 = scmp.eq.s32.totalorder %s20, 1
    %p164 = scmp.ne.s32.totalorder %s159, %s161
    %p165 = scmp.eq.s32.totalorder %s20, 0
    %p166 = por %p164, %p165
    %p167 = scmp.ne.s32.totalorder %s159, %s161
    %p168 = scmp.eq.s32.totalorder %s25, 1
    %p169 = por %p167, %p168
    %p170 = scmp.ne.s32.totalorder %s161, %s162
    %p171 = scmp.eq.s32.totalorder %s25, 0
    %p172 = por %p170, %p171
    %p173 = scmp.ne.s32.totalorder %s161, %s162
    %p174 = scmp.eq.s32.totalorder %s26, 1
    %p175 = por %p173, %p174
    %p177 = scmp.ne.s32.totalorder %s162, %s176
    %p178 = scmp.eq.s32.totalorder %s26, 0
    %p179 = por %p177, %p178
    %s181 = sadd.s32 %s180, 1
    %p184 = scmp.eq.s32.totalorder %s20, 1
    %p185 = scmp.ne.s32.totalorder %s180, %s182
    %p186 = scmp.eq.s32.totalorder %s20, 0
    %p187 = por %p185, %p186
    %p188 = scmp.ne.s32.totalorder %s180, %s182
    %p189 = scmp.eq.s32.totalorder %s25, 1
    %p190 = por %p188, %p189
    %p191 = scmp.ne.s32.totalorder %s182, %s183
    %p192 = scmp.eq.s32.totalorder %s25, 0
    %p193 = por %p191, %p192
    %p194 = scmp.ne.s32.totalorder %s182, %s183
    %p195 = scmp.eq.s32.totalorder %s26, 1
    %p196 = por %p194, %p195
    %p198 = scmp.ne.s32.totalorder %s183, %s197
    %p199 = scmp.eq.s32.totalorder %s26, 0
    %p200 = por %p198, %p199
    %s202 = sadd.s32 %s201, 1
    %p205 = scmp.eq.s32.totalorder %s20, 1
    %p206 = scmp.ne.s32.totalorder %s201, %s203
    %p207 = scmp.eq.s32.totalorder %s20, 0
    %p208 = por %p206, %p207
    %p209 = scmp.ne.s32.totalorder %s201, %s203
    %p210 = scmp.eq.s32.totalorder %s25, 1
    %p211 = por %p209, %p210
    %p212 = scmp.ne.s32.totalorder %s203, %s204
    %p213 = scmp.eq.s32.totalorder %s25, 0
    %p214 = por %p212, %p213
    %p215 = scmp.ne.s32.totalorder %s203, %s204
    %p216 = scmp.eq.s32.totalorder %s26, 1
    %p217 = por %p215, %p216
    %p219 = scmp.ne.s32.totalorder %s204, %s218
    %p220 = scmp.eq.s32.totalorder %s26, 0
    %p221 = por %p219, %p220
    %s223 = sadd.s32 %s222, 1
    %p226 = scmp.eq.s32.totalorder %s20, 1
    %p227 = scmp.ne.s32.totalorder %s222, %s224
    %p228 = scmp.eq.s32.totalorder %s20, 0
    %p229 = por %p227, %p228
    %p230 = scmp.ne.s32.totalorder %s222, %s224
    %p231 = scmp.eq.s32.totalorder %s25, 1
    %p232 = por %p230, %p231
    %p233 = scmp.ne.s32.totalorder %s224, %s225
    %p234 = scmp.eq.s32.totalorder %s25, 0
    %p235 = por %p233, %p234
    %p236 = scmp.ne.s32.totalorder %s224, %s225
    %p237 = scmp.eq.s32.totalorder %s26, 1
    %p238 = por %p236, %p237
    %p240 = scmp.ne.s32.totalorder %s225, %s239
    %p241 = scmp.eq.s32.totalorder %s26, 0
    %p242 = por %p240, %p241
    %s244 = sadd.s32 %s243, 1
    %p247 = scmp.eq.s32.totalorder %s20, 1
    %p248 = scmp.ne.s32.totalorder %s243, %s245
    %p249 = scmp.eq.s32.totalorder %s20, 0
    %p250 = por %p248, %p249
    %p251 = scmp.ne.s32.totalorder %s243, %s245
    %p252 = scmp.eq.s32.totalorder %s25, 1
    %p253 = por %p251, %p252
    %p254 = scmp.ne.s32.totalorder %s245, %s246
    %p255 = scmp.eq.s32.totalorder %s25, 0
    %p256 = por %p254, %p255
    %p257 = scmp.ne.s32.totalorder %s245, %s246
    %p258 = scmp.eq.s32.totalorder %s26, 1
    %p259 = por %p257, %p258
    %p261 = scmp.ne.s32.totalorder %s246, %s260
    %p262 = scmp.eq.s32.totalorder %s26, 0
    %p263 = por %p261, %p262
    %s265 = sadd.s32 %s264, 1
    %p268 = scmp.eq.s32.totalorder %s20, 1
    %p269 = scmp.ne.s32.totalorder %s264, %s266
    %p270 = scmp.eq.s32.totalorder %s20, 0
    %p271 = por %p269, %p270
    %p272 = scmp.ne.s32.totalorder %s264, %s266
    %p273 = scmp.eq.s32.totalorder %s25, 1
    %p274 = por %p272, %p273
    %p275 = scmp.ne.s32.totalorder %s266, %s267
    %p276 = scmp.eq.s32.totalorder %s25, 0
    %p277 = por %p275, %p276
    %p278 = scmp.ne.s32.totalorder %s266, %s267
    %p279 = scmp.eq.s32.totalorder %s26, 1
    %p280 = por %p278, %p279
    %p282 = scmp.ne.s32.totalorder %s267, %s281
    %p283 = scmp.eq.s32.totalorder %s26, 0
    %p284 = por %p282, %p283
    %s286 = sadd.s32 %s285, 1
    %p289 = scmp.eq.s32.totalorder %s20, 1
    %p290 = scmp.ne.s32.totalorder %s285, %s287
    %p291 = scmp.eq.s32.totalorder %s20, 0
    %p292 = por %p290, %p291
    %p293 = scmp.ne.s32.totalorder %s285, %s287
    %p294 = scmp.eq.s32.totalorder %s25, 1
    %p295 = por %p293, %p294
    %p296 = scmp.ne.s32.totalorder %s287, %s288
    %p297 = scmp.eq.s32.totalorder %s25, 0
    %p298 = por %p296, %p297
    %p299 = scmp.ne.s32.totalorder %s287, %s288
    %p300 = scmp.eq.s32.totalorder %s26, 1
    %p301 = por %p299, %p300
    %p303 = scmp.ne.s32.totalorder %s288, %s302
    %p304 = scmp.eq.s32.totalorder %s26, 0
    %p305 = por %p303, %p304
    %s307 = sadd.s32 %s306, 1
    %p310 = scmp.eq.s32.totalorder %s20, 1
    %p311 = scmp.ne.s32.totalorder %s306, %s308
    %p312 = scmp.eq.s32.totalorder %s20, 0
    %p313 = por %p311, %p312
    %p314 = scmp.ne.s32.totalorder %s306, %s308
    %p315 = scmp.eq.s32.totalorder %s25, 1
    %p316 = por %p314, %p315
    %p317 = scmp.ne.s32.totalorder %s308, %s309
    %p318 = scmp.eq.s32.totalorder %s25, 0
    %p319 = por %p317, %p318
    %p320 = scmp.ne.s32.totalorder %s308, %s309
    %p321 = scmp.eq.s32.totalorder %s26, 1
    %p322 = por %p320, %p321
    %p324 = scmp.ne.s32.totalorder %s309, %s323
    %p325 = scmp.eq.s32.totalorder %s26, 0
    %p326 = por %p324, %p325
    %s327 = ssub.s32 %s20, %s27
    %p328 = scmp.eq.s32.totalorder %s327, 0
    %s330 = sadd.s32 %s329, 1
    %s331 = scalar_select %p328, %s329, %s330
    %p334 = pneg %p328
    %p335 = scmp.eq.s32.totalorder %s20, 1
    %p336 = por %p334, %p335
    %p337 = scmp.ne.s32.totalorder %s329, %s332
    %p338 = scmp.eq.s32.totalorder %s20, 0
    %p339 = por %p337, %p338
    %p340 = scmp.ne.s32.totalorder %s329, %s332
    %p341 = scmp.eq.s32.totalorder %s25, 1
    %p342 = por %p340, %p341
    %p343 = scmp.ne.s32.totalorder %s332, %s333
    %p344 = scmp.eq.s32.totalorder %s25, 0
    %p345 = por %p343, %p344
    %p346 = scmp.ne.s32.totalorder %s332, %s333
    %p347 = scmp.eq.s32.totalorder %s26, 1
    %p348 = por %p346, %p347
    %p350 = scmp.ne.s32.totalorder %s333, %s349
    %p351 = scmp.eq.s32.totalorder %s26, 0
    %p352 = por %p350, %p351
    %p353 = scmp.le.s32.totalorder 1, %s20
    %p354 = scmp.lt.s32.totalorder %s20, 3
    %p355 = pnand %p353, %p354
    %p356 = pneg %p355
    // Predicated region
    $region9: #{generator_forward.1} parent=5 // pred_check
      _
    $region10: #{generator_forward.1} parent=5 // pred_check_branch
      %358 = sbr.rel (%p355) target = $region12
    $region11: #{generator_forward.1} parent=5 // pred_region
      %s359 = ssub.s32 %s20, 1
      // Predicated region
      $region13: #{generator_forward.1} parent=11 // pred_check
        %p360 = pneg %p67
      $region14: #{generator_forward.1} parent=11 // pred_check_branch
        %362 = sbr.rel (%p360) target = $region16
      $region15: #{generator_forward.1} parent=11 // pred_region
        _
      $region16: #{generator_forward.1} parent=11 // pred_fallthru
        _
      // Predicated region
      $region17: #{generator_forward.1} parent=11 // pred_check
        %p363 = pneg %p88
      $region18: #{generator_forward.1} parent=11 // pred_check_branch
        %365 = sbr.rel (%p363) target = $region20
      $region19: #{generator_forward.1} parent=11 // pred_region
        _
      $region20: #{generator_forward.1} parent=11 // pred_fallthru
        _
      // Predicated region
      $region21: #{generator_forward.1} parent=11 // pred_check
        %p366 = pneg %p109
      $region22: #{generator_forward.1} parent=11 // pred_check_branch
        %368 = sbr.rel (%p366) target = $region24
      $region23: #{generator_forward.1} parent=11 // pred_region
        _
      $region24: #{generator_forward.1} parent=11 // pred_fallthru
        _
      // Predicated region
      $region25: #{generator_forward.1} parent=11 // pred_check
        %p369 = pneg %p130
      $region26: #{generator_forward.1} parent=11 // pred_check_branch
        %371 = sbr.rel (%p369) target = $region28
      $region27: #{generator_forward.1} parent=11 // pred_region
        _
      $region28: #{generator_forward.1} parent=11 // pred_fallthru
        _
      // Predicated region
      $region29: #{generator_forward.1} parent=11 // pred_check
        %p372 = pneg %p151
      $region30: #{generator_forward.1} parent=11 // pred_check_branch
        %374 = sbr.rel (%p372) target = $region32
      $region31: #{generator_forward.1} parent=11 // pred_region
        _
      $region32: #{generator_forward.1} parent=11 // pred_fallthru
        _
      // Predicated region
      $region33: #{generator_forward.1} parent=11 // pred_check
        %p375 = pneg %p172
      $region34: #{generator_forward.1} parent=11 // pred_check_branch
        %377 = sbr.rel (%p375) target = $region36
      $region35: #{generator_forward.1} parent=11 // pred_region
        _
      $region36: #{generator_forward.1} parent=11 // pred_fallthru
        _
      // Predicated region
      $region37: #{generator_forward.1} parent=11 // pred_check
        %p378 = pneg %p193
      $region38: #{generator_forward.1} parent=11 // pred_check_branch
        %380 = sbr.rel (%p378) target = $region40
      $region39: #{generator_forward.1} parent=11 // pred_region
        _
      $region40: #{generator_forward.1} parent=11 // pred_fallthru
        _
      // Predicated region
      $region41: #{generator_forward.1} parent=11 // pred_check
        %p381 = pneg %p214
      $region42: #{generator_forward.1} parent=11 // pred_check_branch
        %383 = sbr.rel (%p381) target = $region44
      $region43: #{generator_forward.1} parent=11 // pred_region
        _
      $region44: #{generator_forward.1} parent=11 // pred_fallthru
        _
      // Predicated region
      $region45: #{generator_forward.1} parent=11 // pred_check
        %p384 = pneg %p235
      $region46: #{generator_forward.1} parent=11 // pred_check_branch
        %386 = sbr.rel (%p384) target = $region48
      $region47: #{generator_forward.1} parent=11 // pred_region
        _
      $region48: #{generator_forward.1} parent=11 // pred_fallthru
        _
      // Predicated region
      $region49: #{generator_forward.1} parent=11 // pred_check
        %p387 = pneg %p256
      $region50: #{generator_forward.1} parent=11 // pred_check_branch
        %389 = sbr.rel (%p387) target = $region52
      $region51: #{generator_forward.1} parent=11 // pred_region
        _
      $region52: #{generator_forward.1} parent=11 // pred_fallthru
        _
      // Predicated region
      $region53: #{generator_forward.1} parent=11 // pred_check
        %p390 = pneg %p277
      $region54: #{generator_forward.1} parent=11 // pred_check_branch
        %392 = sbr.rel (%p390) target = $region56
      $region55: #{generator_forward.1} parent=11 // pred_region
        _
      $region56: #{generator_forward.1} parent=11 // pred_fallthru
        _
      // Predicated region
      $region57: #{generator_forward.1} parent=11 // pred_check
        %p393 = pneg %p298
      $region58: #{generator_forward.1} parent=11 // pred_check_branch
        %395 = sbr.rel (%p393) target = $region60
      $region59: #{generator_forward.1} parent=11 // pred_region
        _
      $region60: #{generator_forward.1} parent=11 // pred_fallthru
        _
      // Predicated region
      $region61: #{generator_forward.1} parent=11 // pred_check
        %p396 = pneg %p319
      $region62: #{generator_forward.1} parent=11 // pred_check_branch
        %398 = sbr.rel (%p396) target = $region64
      $region63: #{generator_forward.1} parent=11 // pred_region
        _
      $region64: #{generator_forward.1} parent=11 // pred_fallthru
        _
    $region12: #{generator_forward.1} parent=5 // pred_fallthru
      _
    %p399 = scmp.lt.s32.totalorder %s20, 2
    // Predicated region
    $region65: #{generator_forward.1} parent=5 // pred_check
      %p400 = pneg %p399
    $region66: #{generator_forward.1} parent=5 // pred_check_branch
      %402 = sbr.rel (%p400) target = $region68
    $region67: #{generator_forward.1} parent=5 // pred_region
      // Predicated region
      $region69: #{generator_forward.1} parent=67 // pred_check
        %p403 = pneg %p40
      $region70: #{generator_forward.1} parent=67 // pred_check_branch
        %405 = sbr.rel (%p403) target = $region72
      $region71: #{generator_forward.1} parent=67 // pred_region
        %s406 = smul.u32 2, %s20
        %p407 = scmp.lt.s32.totalorder %s406, 3
        %s408 = scalar_select %p407, %s406, 3
        %s409 = smul.addr %s408, 2
        %s410 = smul.addr %s409, 8
        %s411 = scalar_lea.vmem %s0, %s410
        %s412 = smul.u32 2, %s20
      $region72: #{generator_forward.1} parent=67 // pred_fallthru
        _
    $region68: #{generator_forward.1} parent=5 // pred_fallthru
      _
    %p413 = scmp.le.s32.totalorder 1, %s20
    %p414 = scmp.lt.s32.totalorder %s20, 3
    %p415 = pnand %p413, %p414
    %p416 = pneg %p415
    // Predicated region
    $region73: #{generator_forward.1} parent=5 // pred_check
      _
    $region74: #{generator_forward.1} parent=5 // pred_check_branch
      %418 = sbr.rel (%p415) target = $region76
    $region75: #{generator_forward.1} parent=5 // pred_region
      %s419 = ssub.s32 %s20, 1
      %s420 = smul.u32 2, %s25
      %p421 = scmp.lt.s32.totalorder %s420, 3
      %s422 = scalar_select %p421, %s420, 3
      %s423 = smul.addr %s422, 2
      %s424 = smul.addr %s423, 8
      %s425 = scalar_lea.vmem %s0, %s424
      %p426 = pneg %p46
      %p427 = pneg %p43
      %p428 = pneg %p67
      %p429 = pneg %p64
      %p430 = pneg %p88
      %p431 = pneg %p85
      %p432 = pneg %p109
      %p433 = pneg %p106
      %p434 = pneg %p130
      %p435 = pneg %p127
      %p436 = pneg %p151
      %p437 = pneg %p148
      %p438 = pneg %p172
      %p439 = pneg %p169
      %p440 = pneg %p193
      %p441 = pneg %p190
      %p442 = pneg %p214
      %p443 = pneg %p211
      %p444 = pneg %p235
      %p445 = pneg %p232
      %p446 = pneg %p256
      %p447 = pneg %p253
      %p448 = pneg %p277
      %p449 = pneg %p274
      %p450 = pneg %p298
      %p451 = pneg %p295
      %p452 = pneg %p319
      %p453 = pneg %p316
      %p454 = pneg %p345
      %p455 = pneg %p342
      %s456 = smul.u32 2, %s25
      %p457 = scmp.lt.s32.totalorder %s456, 3
      %s458 = scalar_select %p457, %s456, 3
      %s459 = smul.addr %s458, 8
      %s460 = scalar_lea.vmem %s14, %s459
      %s461 = smul.u32 2, %s25
      %p462 = scmp.lt.s32.totalorder %s461, 3
      %s463 = scalar_select %p462, %s461, 3
      %s464 = smul.addr %s463, 2
      %s465 = smul.addr %s464, 8
      %s466 = scalar_lea.vmem %s0, %s465
      %s467 = smul.u32 2, %s25
      %s468 = smul.u32 2, %s25
      %p469 = scmp.lt.s32.totalorder %s468, 3
      %s470 = scalar_select %p469, %s468, 3
      %s471 = smul.addr %s470, 8
      %s472 = scalar_lea.vmem %s14, %s471
      %s473 = smul.u32 2, %s25
      %475 = vst [vmem:[#allocation2 + $0x10] sm:$0xff] 0.0
      %476 = vst [vmem:[#allocation3] sm:$0xff] 0.0
      %477 = vst [vmem:[#allocation4] sm:$0xff] 0.0
      %478 = vst [vmem:[#allocation4 + $0x10] sm:$0xff] 0.0
      %479 = vst [vmem:[#allocation5 + $0x10] sm:$0xff] 0.0
      %480 = vst [vmem:[#allocation6] sm:$0xff] 0.0
      %v481 = vld [vmem:[%s466 + $0x4] sm:$0xff]
      %v482 = vpack.c.bf16 %v481, %v481
      %v483 = vld [vmem:[%s466 + $0x5] sm:$0xff]
      %v484 = vpack.c.bf16 %v483, %v483
      %s485 = scalar_lea.vmem %s466, 16
      %v486 = vld [vmem:[%s485 + $0x3] sm:$0xff]
      %v487 = vpack.c.bf16 %v486, %v486
      %v488 = vld [vmem:[%s485 + $0x4] sm:$0xff]
      %v489 = vpack.c.bf16 %v488, %v488
      %v490 = vld [vmem:[%s1] sm:$0xf]
      %v491 = vld [vmem:[%s1 + $0x4] sm:$0xf]
      %v492 = vld [vmem:[%s1 + $0x8] sm:$0xf]
      %v493 = vld [vmem:[%s1 + $0xc] sm:$0xf]
      %v494 = vld [vmem:[%s1 + $0x10] sm:$0xf]
      %v495 = vld [vmem:[%s1 + $0x14] sm:$0xf]
      %v496 = vld [vmem:[%s1 + $0x18] sm:$0xf]
      %v497 = vld [vmem:[%s1 + $0x1c] sm:$0xf]
      %s498 = scalar_lea.vmem %s1, 32
      %v499 = vld [vmem:[%s498] sm:$0xf]
      %v500 = vld [vmem:[%s498 + $0x4] sm:$0xf]
      %v501 = vld [vmem:[%s498 + $0x8] sm:$0xf]
      %v502 = vld [vmem:[%s498 + $0xc] sm:$0xf]
      %v503 = vld [vmem:[%s498 + $0x10] sm:$0xf]
      %v504 = vld [vmem:[%s498 + $0x14] sm:$0xf]
      %v505 = vld [vmem:[%s498 + $0x18] sm:$0xf]
      %v506 = vld [vmem:[%s498 + $0x1c] sm:$0xf]
      %v515 = vunpack.c.l.b16 %v499
      %v516 = vunpack.c.l.b16 %v500
      %v517 = vunpack.c.l.b16 %v501
      %v518 = vunpack.c.l.b16 %v502
      %v519 = vunpack.c.l.b16 %v503
      %v520 = vunpack.c.l.b16 %v504
      %v521 = vunpack.c.l.b16 %v505
      %v522 = vunpack.c.l.b16 %v506
      %v523 = vpack.c.b16 %v516, %v515
      %v524 = vpack.c.b16 %v518, %v517
      %v525 = vpack.c.b16 %v520, %v519
      %v526 = vpack.c.b16 %v522, %v521
      %vm531 = vcmask 523264
      %v533 = vsel %vm531, %v482, 0
      %535 = vmatprep.subr.bf16.mxu0 0
      %536 = vmatpush1.bf16.msra.mxu0 %v523
      %537 = vmatprep.subr.bf16.mxu0 0
      %538 = vmatpush1.bf16.msra.mxu0 %v524
      %539 = vmatprep.subr.bf16.mxu0 0
      %540 = vmatpush1.bf16.msra.mxu0 %v525
      %541 = vmatprep.subr.bf16.mxu0 0
      %542 = vmatpush1.bf16.msra.mxu0 %v526
      %543 = vmatprep.subr.bf16.mxu0 0
      %544 = vmatpush1.bf16.msra.mxu0 0
      %545 = vmatprep.subr.bf16.mxu0 0
      %546 = vmatpush1.bf16.msra.mxu0 0
      %547 = vmatprep.subr.bf16.mxu0 0
      %548 = vmatpush1.bf16.msra.mxu0 0
      %549 = vmatprep.subr.bf16.mxu0 0
      %550 = vmatpush1.bf16.msra.mxu0 0
      %551 = vmatprep.subr.bf16.mxu0 0
      %552 = vmatpush1.bf16.msra.mxu0 0
      %553 = vmatprep.subr.bf16.mxu0 0
      %554 = vmatpush1.bf16.msra.mxu0 0
      %555 = vmatprep.subr.bf16.mxu0 0
      %556 = vmatpush1.bf16.msra.mxu0 0
      %557 = vmatprep.subr.bf16.mxu0 0
      %558 = vmatpush1.bf16.msra.mxu0 0
      %559 = vmatprep.subr.bf16.mxu0 0
      %560 = vmatpush1.bf16.msra.mxu0 0
      %561 = vmatprep.subr.bf16.mxu0 0
      %562 = vmatpush1.bf16.msra.mxu0 0
      %563 = vmatprep.subr.bf16.mxu0 0
      %564 = vmatpush1.bf16.msra.mxu0 0
      %565 = vmatprep.subr.bf16.mxu0 0
      %566 = vmatpush1.bf16.msra.mxu0 0
      %567 = vmatprep.mubr.bf16.mxu0 0
      %568 = vmatmul.mubr.bf16.gmra.mrb[0].mxu0 %v533
      %v569 = vpop.f32.mrb[0].mxu0
      %v570 = vadd.f32 0.0, %v569
      %v571 = vpop.f32.mrb[0].mxu0
      %v572 = vpop.f32.mrb[0].mxu0
      %v573 = vpop.f32.mrb[0].mxu0
      %574 = vdwg.mxu0
      %v583 = vunpack.c.l.b16 %v490
      %v584 = vunpack.c.l.b16 %v491
      %v585 = vunpack.c.l.b16 %v492
      %v586 = vunpack.c.l.b16 %v493
      %v587 = vunpack.c.l.b16 %v494
      %v588 = vunpack.c.l.b16 %v495
      %v589 = vunpack.c.l.b16 %v496
      %v590 = vunpack.c.l.b16 %v497
      %v591 = vpack.c.b16 %v584, %v583
      %v592 = vpack.c.b16 %v586, %v585
      %v593 = vpack.c.b16 %v588, %v587
      %v594 = vpack.c.b16 %v590, %v589
      %v600 = vsel %vm531, %v487, 0
      %602 = vmatprep.subr.bf16.mxu0 0
      %603 = vmatpush1.bf16.msra.mxu0 %v591
      %604 = vmatprep.subr.bf16.mxu0 0
      %605 = vmatpush1.bf16.msra.mxu0 %v592
      %606 = vmatprep.subr.bf16.mxu0 0
      %607 = vmatpush1.bf16.msra.mxu0 %v593
      %608 = vmatprep.subr.bf16.mxu0 0
      %609 = vmatpush1.bf16.msra.mxu0 %v594
      %610 = vmatprep.subr.bf16.mxu0 0
      %611 = vmatpush1.bf16.msra.mxu0 0
      %612 = vmatprep.subr.bf16.mxu0 0
      %613 = vmatpush1.bf16.msra.mxu0 0
      %614 = vmatprep.subr.bf16.mxu0 0
      %615 = vmatpush1.bf16.msra.mxu0 0
      %616 = vmatprep.subr.bf16.mxu0 0
      %617 = vmatpush1.bf16.msra.mxu0 0
      %618 = vmatprep.subr.bf16.mxu0 0
      %619 = vmatpush1.bf16.msra.mxu0 0
      %620 = vmatprep.subr.bf16.mxu0 0
      %621 = vmatpush1.bf16.msra.mxu0 0
      %622 = vmatprep.subr.bf16.mxu0 0
      %623 = vmatpush1.bf16.msra.mxu0 0
      %624 = vmatprep.subr.bf16.mxu0 0
      %625 = vmatpush1.bf16.msra.mxu0 0
      %626 = vmatprep.subr.bf16.mxu0 0
      %627 = vmatpush1.bf16.msra.mxu0 0
      %628 = vmatprep.subr.bf16.mxu0 0
      %629 = vmatpush1.bf16.msra.mxu0 0
      %630 = vmatprep.subr.bf16.mxu0 0
      %631 = vmatpush1.bf16.msra.mxu0 0
      %632 = vmatprep.subr.bf16.mxu0 0
      %633 = vmatpush1.bf16.msra.mxu0 0
      %634 = vmatprep.mubr.bf16.mxu0 0
      %635 = vmatmul.mubr.bf16.gmra.mrb[0].mxu0 %v600
      %v636 = vpop.f32.mrb[0].mxu0
      %v637 = vadd.f32 %v570, %v636
      %v638 = vpop.f32.mrb[0].mxu0
      %v639 = vpop.f32.mrb[0].mxu0
      %v640 = vpop.f32.mrb[0].mxu0
      %641 = vdwg.mxu0
      %s642 = scalar_lea.vmem %s1, 64
      %v643 = vld [vmem:[%s642] sm:$0xf]
      %v644 = vld [vmem:[%s642 + $0x4] sm:$0xf]
      %v645 = vld [vmem:[%s642 + $0x8] sm:$0xf]
      %v646 = vld [vmem:[%s642 + $0xc] sm:$0xf]
      %v647 = vld [vmem:[%s642 + $0x10] sm:$0xf]
      %v648 = vld [vmem:[%s642 + $0x14] sm:$0xf]
      %v649 = vld [vmem:[%s642 + $0x18] sm:$0xf]
      %v650 = vld [vmem:[%s642 + $0x1c] sm:$0xf]
      %v659 = vunpack.c.l.b16 %v643
      %v660 = vunpack.c.l.b16 %v644
      %v661 = vunpack.c.l.b16 %v645
      %v662 = vunpack.c.l.b16 %v646
      %v663 = vunpack.c.l.b16 %v647
      %v664 = vunpack.c.l.b16 %v648
      %v665 = vunpack.c.l.b16 %v649
      %v666 = vunpack.c.l.b16 %v650
      %v667 = vpack.c.b16 %v660, %v659
      %v668 = vpack.c.b16 %v662, %v661
      %v669 = vpack.c.b16 %v664, %v663
      %v670 = vpack.c.b16 %v666, %v665
      %v676 = vsel %vm531, %v489, 0
      %678 = vmatprep.subr.bf16.mxu0 0
      %679 = vmatpush1.bf16.msra.mxu0 %v667
      %680 = vmatprep.subr.bf16.mxu0 0
      %681 = vmatpush1.bf16.msra.mxu0 %v668
      %682 = vmatprep.subr.bf16.mxu0 0
      %683 = vmatpush1.bf16.msra.mxu0 %v669
      %684 = vmatprep.subr.bf16.mxu0 0
      %685 = vmatpush1.bf16.msra.mxu0 %v670
      %686 = vmatprep.subr.bf16.mxu0 0
      %687 = vmatpush1.bf16.msra.mxu0 0
      %688 = vmatprep.subr.bf16.mxu0 0
      %689 = vmatpush1.bf16.msra.mxu0 0
      %690 = vmatprep.subr.bf16.mxu0 0
      %691 = vmatpush1.bf16.msra.mxu0 0
      %692 = vmatprep.subr.bf16.mxu0 0
      %693 = vmatpush1.bf16.msra.mxu0 0
      %694 = vmatprep.subr.bf16.mxu0 0
      %695 = vmatpush1.bf16.msra.mxu0 0
      %696 = vmatprep.subr.bf16.mxu0 0
      %697 = vmatpush1.bf16.msra.mxu0 0
      %698 = vmatprep.subr.bf16.mxu0 0
      %699 = vmatpush1.bf16.msra.mxu0 0
      %700 = vmatprep.subr.bf16.mxu0 0
      %701 = vmatpush1.bf16.msra.mxu0 0
      %702 = vmatprep.subr.bf16.mxu0 0
      %703 = vmatpush1.bf16.msra.mxu0 0
      %704 = vmatprep.subr.bf16.mxu0 0
      %705 = vmatpush1.bf16.msra.mxu0 0
      %706 = vmatprep.subr.bf16.mxu0 0
      %707 = vmatpush1.bf16.msra.mxu0 0
      %708 = vmatprep.subr.bf16.mxu0 0
      %709 = vmatpush1.bf16.msra.mxu0 0
      %710 = vmatprep.mubr.bf16.mxu0 0
      %711 = vmatmul.mubr.bf16.gmra.mrb[0].mxu0 %v676
      %v712 = vpop.f32.mrb[0].mxu0
      %v713 = vadd.f32 0.0, %v712
      %v714 = vpop.f32.mrb[0].mxu0
      %v715 = vpop.f32.mrb[0].mxu0
      %v716 = vpop.f32.mrb[0].mxu0
      %717 = vdwg.mxu0
      %v718 = vadd.f32 %v637, %v713
      %v719 = vld [vmem:[%s8] sm:$0x1]
      %v721 = vlaneseq
      %v722 = vshrl.u32 %v721, 7
      %v723 = vsub.s32 0, %v722
      %v724 = vrot.slane %v719, %v723
      %v726 = vadd.f32 %v718, %v724
      %v727 = vmax.f32 %v726, 0.0
      %728 = vst [vmem:[#allocation2 + $0x8] sm:$0xff] %v727
      %v729 = vld [vmem:[%s1] sm:$0xf]
      %v730 = vld [vmem:[%s1 + $0x4] sm:$0xf]
      %v731 = vld [vmem:[%s1 + $0x8] sm:$0xf]
      %v732 = vld [vmem:[%s1 + $0xc] sm:$0xf]
      %v733 = vld [vmem:[%s1 + $0x10] sm:$0xf]
      %v734 = vld [vmem:[%s1 + $0x14] sm:$0xf]
      %v735 = vld [vmem:[%s1 + $0x18] sm:$0xf]
      %v736 = vld [vmem:[%s1 + $0x1c] sm:$0xf]
      %v737 = vld [vmem:[%s498] sm:$0xf]
      %v738 = vld [vmem:[%s498 + $0x4] sm:$0xf]
      %v739 = vld [vmem:[%s498 + $0x8] sm:$0xf]
      %v740 = vld [vmem:[%s498 + $0xc] sm:$0xf]
      %v741 = vld [vmem:[%s498 + $0x10] sm:$0xf]
      %v742 = vld [vmem:[%s498 + $0x14] sm:$0xf]
      %v743 = vld [vmem:[%s498 + $0x18] sm:$0xf]
      %v744 = vld [vmem:[%s498 + $0x1c] sm:$0xf]
      %v753 = vunpack.c.l.b16 %v737
      %v754 = vunpack.c.l.b16 %v738
      %v755 = vunpack.c.l.b16 %v739
      %v756 = vunpack.c.l.b16 %v740
      %v757 = vunpack.c.l.b16 %v741
      %v758 = vunpack.c.l.b16 %v742
      %v759 = vunpack.c.l.b16 %v743
      %v760 = vunpack.c.l.b16 %v744
      %v761 = vpack.c.b16 %v754, %v753
      %v762 = vpack.c.b16 %v756, %v755
      %v763 = vpack.c.b16 %v758, %v757
      %v764 = vpack.c.b16 %v760, %v759
      %769 = vmatprep.subr.bf16.mxu0 0
      %770 = vmatpush1.bf16.msra.mxu0 %v761
      %771 = vmatprep.subr.bf16.mxu0 0
      %772 = vmatpush1.bf16.msra.mxu0 %v762
      %773 = vmatprep.subr.bf16.mxu0 0
      %774 = vmatpush1.bf16.msra.mxu0 %v763
      %775 = vmatprep.subr.bf16.mxu0 0
      %776 = vmatpush1.bf16.msra.mxu0 %v764
      %777 = vmatprep.subr.bf16.mxu0 0
      %778 = vmatpush1.bf16.msra.mxu0 0
      %779 = vmatprep.subr.bf16.mxu0 0
      %780 = vmatpush1.bf16.msra.mxu0 0
      %781 = vmatprep.subr.bf16.mxu0 0
      %782 = vmatpush1.bf16.msra.mxu0 0
      %783 = vmatprep.subr.bf16.mxu0 0
      %784 = vmatpush1.bf16.msra.mxu0 0
      %785 = vmatprep.subr.bf16.mxu0 0
      %786 = vmatpush1.bf16.msra.mxu0 0
      %787 = vmatprep.subr.bf16.mxu0 0
      %788 = vmatpush1.bf16.msra.mxu0 0
      %789 = vmatprep.subr.bf16.mxu0 0
      %790 = vmatpush1.bf16.msra.mxu0 0
      %791 = vmatprep.subr.bf16.mxu0 0
      %792 = vmatpush1.bf16.msra.mxu0 0
      %793 = vmatprep.subr.bf16.mxu0 0
      %794 = vmatpush1.bf16.msra.mxu0 0
      %795 = vmatprep.subr.bf16.mxu0 0
      %796 = vmatpush1.bf16.msra.mxu0 0
      %797 = vmatprep.subr.bf16.mxu0 0
      %798 = vmatpush1.bf16.msra.mxu0 0
      %799 = vmatprep.subr.bf16.mxu0 0
      %800 = vmatpush1.bf16.msra.mxu0 0
      %801 = vmatprep.mubr.bf16.mxu0 0
      %802 = vmatmul.mubr.bf16.gmra.mrb[0].mxu0 %v676
      %v803 = vpop.f32.mrb[0].mxu0
      %v804 = vadd.f32 0.0, %v803
      %v805 = vpop.f32.mrb[0].mxu0
      %v806 = vpop.f32.mrb[0].mxu0
      %v807 = vpop.f32.mrb[0].mxu0
      %808 = vdwg.mxu0
      %v817 = vunpack.c.l.b16 %v729
      %v818 = vunpack.c.l.b16 %v730
      %v819 = vunpack.c.l.b16 %v731
      %v820 = vunpack.c.l.b16 %v732
      %v821 = vunpack.c.l.b16 %v733
      %v822 = vunpack.c.l.b16 %v734
      %v823 = vunpack.c.l.b16 %v735
      %v824 = vunpack.c.l.b16 %v736
      %v825 = vpack.c.b16 %v818, %v817
      %v826 = vpack.c.b16 %v820, %v819
      %v827 = vpack.c.b16 %v822, %v821
      %v828 = vpack.c.b16 %v824, %v823
      %833 = vmatprep.subr.bf16.mxu0 0
      %834 = vmatpush1.bf16.msra.mxu0 %v825
      %835 = vmatprep.subr.bf16.mxu0 0
      %836 = vmatpush1.bf16.msra.mxu0 %v826
      %837 = vmatprep.subr.bf16.mxu0 0
      %838 = vmatpush1.bf16.msra.mxu0 %v827
      %839 = vmatprep.subr.bf16.mxu0 0
      %840 = vmatpush1.bf16.msra.mxu0 %v828
      %841 = vmatprep.subr.bf16.mxu0 0
      %842 = vmatpush1.bf16.msra.mxu0 0
      %843 = vmatprep.subr.bf16.mxu0 0
      %844 = vmatpush1.bf16.msra.mxu0 0
      %845 = vmatprep.subr.bf16.mxu0 0
      %846 = vmatpush1.bf16.msra.mxu0 0
      %847 = vmatprep.subr.bf16.mxu0 0
      %848 = vmatpush1.bf16.msra.mxu0 0
      %849 = vmatprep.subr.bf16.mxu0 0
      %850 = vmatpush1.bf16.msra.mxu0 0
      %851 = vmatprep.subr.bf16.mxu0 0
      %852 = vmatpush1.bf16.msra.mxu0 0
      %853 = vmatprep.subr.bf16.mxu0 0
      %854 = vmatpush1.bf16.msra.mxu0 0
      %855 = vmatprep.subr.bf16.mxu0 0
      %856 = vmatpush1.bf16.msra.mxu0 0
      %857 = vmatprep.subr.bf16.mxu0 0
      %858 = vmatpush1.bf16.msra.mxu0 0
      %859 = vmatprep.subr.bf16.mxu0 0
      %860 = vmatpush1.bf16.msra.mxu0 0
      %861 = vmatprep.subr.bf16.mxu0 0
      %862 = vmatpush1.bf16.msra.mxu0 0
      %863 = vmatprep.subr.bf16.mxu0 0
      %864 = vmatpush1.bf16.msra.mxu0 0
      %865 = vmatprep.mubr.bf16.mxu0 0
      %866 = vmatmul.mubr.bf16.gmra.mrb[0].mxu0 %v533
      %v867 = vpop.f32.mrb[0].mxu0
      %v868 = vadd.f32 %v804, %v867
      %v869 = vpop.f32.mrb[0].mxu0
      %v870 = vpop.f32.mrb[0].mxu0
      %v871 = vpop.f32.mrb[0].mxu0
      %872 = vdwg.mxu0
      %v873 = vld [vmem:[%s642] sm:$0xf]
      %v874 = vld [vmem:[%s642 + $0x4] sm:$0xf]
      %v875 = vld [vmem:[%s642 + $0x8] sm:$0xf]
      %v876 = vld [vmem:[%s642 + $0xc] sm:$0xf]
      %v877 = vld [vmem:[%s642 + $0x10] sm:$0xf]
      %v878 = vld [vmem:[%s642 + $0x14] sm:$0xf]
      %v879 = vld [vmem:[%s642 + $0x18] sm:$0xf]
      %v880 = vld [vmem:[%s642 + $0x1c] sm:$0xf]
      %v889 = vunpack.c.l.b16 %v873
      %v890 = vunpack.c.l.b16 %v874
      %v891 = vunpack.c.l.b16 %v875
      %v892 = vunpack.c.l.b16 %v876
      %v893 = vunpack.c.l.b16 %v877
      %v894 = vunpack.c.l.b16 %v878
      %v895 = vunpack.c.l.b16 %v879
      %v896 = vunpack.c.l.b16 %v880
      %v897 = vpack.c.b16 %v890, %v889
      %v898 = vpack.c.b16 %v892, %v891
      %v899 = vpack.c.b16 %v894, %v893
      %v900 = vpack.c.b16 %v896, %v895
      %v906 = vsel %vm531, %v484, 0
      %908 = vmatprep.subr.bf16.mxu0 0
      %909 = vmatpush1.bf16.msra.mxu0 %v897
      %910 = vmatprep.subr.bf16.mxu0 0
      %911 = vmatpush1.bf16.msra.mxu0 %v898
      %912 = vmatprep.subr.bf16.mxu0 0
      %913 = vmatpush1.bf16.msra.mxu0 %v899
      %914 = vmatprep.subr.bf16.mxu0 0
      %915 = vmatpush1.bf16.msra.mxu0 %v900
      %916 = vmatprep.subr.bf16.mxu0 0
      %917 = vmatpush1.bf16.msra.mxu0 0
      %918 = vmatprep.subr.bf16.mxu0 0
      %919 = vmatpush1.bf16.msra.mxu0 0
      %920 = vmatprep.subr.bf16.mxu0 0
      %921 = vmatpush1.bf16.msra.mxu0 0
      %922 = vmatprep.subr.bf16.mxu0 0
      %923 = vmatpush1.bf16.msra.mxu0 0
      %924 = vmatprep.subr.bf16.mxu0 0
      %925 = vmatpush1.bf16.msra.mxu0 0
      %926 = vmatprep.subr.bf16.mxu0 0
      %927 = vmatpush1.bf16.msra.mxu0 0
      %928 = vmatprep.subr.bf16.mxu0 0
      %929 = vmatpush1.bf16.msra.mxu0 0
      %930 = vmatprep.subr.bf16.mxu0 0
      %931 = vmatpush1.bf16.msra.mxu0 0
      %932 = vmatprep.subr.bf16.mxu0 0
      %933 = vmatpush1.bf16.msra.mxu0 0
      %934 = vmatprep.subr.bf16.mxu0 0
      %935 = vmatpush1.bf16.msra.mxu0 0
      %936 = vmatprep.subr.bf16.mxu0 0
      %937 = vmatpush1.bf16.msra.mxu0 0
      %938 = vmatprep.subr.bf16.mxu0 0
      %939 = vmatpush1.bf16.msra.mxu0 0
      %940 = vmatprep.mubr.bf16.mxu0 0
      %941 = vmatmul.mubr.bf16.gmra.mrb[0].mxu0 %v906
      %v942 = vpop.f32.mrb[0].mxu0
      %v943 = vadd.f32 0.0, %v942
      %v944 = vpop.f32.mrb[0].mxu0
      %v945 = vpop.f32.mrb[0].mxu0
      %v946 = vpop.f32.mrb[0].mxu0
      %947 = vdwg.mxu0
      %v948 = vadd.f32 %v868, %v943
      %v949 = vld [vmem:[%s8] sm:$0x1]
      %v951 = vlaneseq
      %v952 = vshrl.u32 %v951, 7
      %v953 = vsub.s32 0, %v952
      %v954 = vrot.slane %v949, %v953
      %v956 = vadd.f32 %v948, %v954
      %v957 = vmax.f32 %v956, 0.0
      %958 = vst [vmem:[#allocation3 + $0x8] sm:$0xff] %v957
      %v959 = vpack.c.bf16 %v727, %v727
      %v960 = vpack.c.bf16 %v957, %v957
      %v961 = vld [vmem:[#allocation3 + $0x7] sm:$0xff]
      %v962 = vpack.c.bf16 %v961, %v961
      %v963 = vld [vmem:[#allocation2 + $0x9] sm:$0xff]
      %v964 = vpack.c.bf16 %v963, %v963
      %v965 = vld [vmem:[%s2] sm:$0xf]
      %v966 = vld [vmem:[%s2 + $0x4] sm:$0xf]
      %v967 = vld [vmem:[%s2 + $0x8] sm:$0xf]
      %v968 = vld [vmem:[%s2 + $0xc] sm:$0xf]
      %v969 = vld [vmem:[%s2 + $0x10] sm:$0xf]
      %v970 = vld [vmem:[%s2 + $0x14] sm:$0xf]
      %v971 = vld [vmem:[%s2 + $0x18] sm:$0xf]
      %v972 = vld [vmem:[%s2 + $0x1c] sm:$0xf]
      %v973 = vld [vmem:[%s2 + $0x20] sm:$0xf]
      %v974 = vld [vmem:[%s2 + $0x24] sm:$0xf]
      %v975 = vld [vmem:[%s2 + $0x28] sm:$0xf]
      %v976 = vld [vmem:[%s2 + $0x2c] sm:$0xf]
      %v977 = vld [vmem:[%s2 + $0x30] sm:$0xf]
      %v978 = vld [vmem:[%s2 + $0x34] sm:$0xf]
      %v979 = vld [vmem:[%s2 + $0x38] sm:$0xf]
      %v980 = vld [vmem:[%s2 + $0x3c] sm:$0xf]
      %s981 = scalar_lea.vmem %s2, 64
      %v982 = vld [vmem:[%s981] sm:$0xf]
      %v983 = vld [vmem:[%s981 + $0x4] sm:$0xf]
      %v984 = vld [vmem:[%s981 + $0x8] sm:$0xf]
      %v985 = vld [vmem:[%s981 + $0xc] sm:$0xf]
      %v986 = vld [vmem:[%s981 + $0x10] sm:$0xf]
      %v987 = vld [vmem:[%s981 + $0x14] sm:$0xf]
      %v988 = vld [vmem:[%s981 + $0x18] sm:$0xf]
      %v989 = vld [vmem:[%s981 + $0x1c] sm:$0xf]
      %v990 = vld [vmem:[%s981 + $0x20] sm:$0xf]
      %v991 = vld [vmem:[%s981 + $0x24] sm:$0xf]
      %v992 = vld [vmem:[%s981 + $0x28] sm:$0xf]
      %v993 = vld [vmem:[%s981 + $0x2c] sm:$0xf]
      %v994 = vld [vmem:[%s981 + $0x30] sm:$0xf]
      %v995 = vld [vmem:[%s981 + $0x34] sm:$0xf]
      %v996 = vld [vmem:[%s981 + $0x38] sm:$0xf]
      %v997 = vld [vmem:[%s981 + $0x3c] sm:$0xf]
      %v1014 = vunpack.c.l.b16 %v982
      %v1015 = vunpack.c.l.b16 %v983
      %v1016 = vunpack.c.l.b16 %v984
      %v1017 = vunpack.c.l.b16 %v985
      %v1018 = vunpack.c.l.b16 %v986
      %v1019 = vunpack.c.l.b16 %v987
      %v1020 = vunpack.c.l.b16 %v988
      %v1021 = vunpack.c.l.b16 %v989
      %v1022 = vunpack.c.l.b16 %v990
      %v1023 = vunpack.c.l.b16 %v991
      %v1024 = vunpack.c.l.b16 %v992
      %v1025 = vunpack.c.l.b16 %v993
      %v1026 = vunpack.c.l.b16 %v994
      %v1027 = vunpack.c.l.b16 %v995
      %v1028 = vunpack.c.l.b16 %v996
      %v1029 = vunpack.c.l.b16 %v997
      %v1030 = vpack.c.b16 %v1015, %v1014
      %v1031 = vpack.c.b16 %v1017, %v1016
      %v1032 = vpack.c.b16 %v1019, %v1018
      %v1033 = vpack.c.b16 %v1021, %v1020
      %v1034 = vpack.c.b16 %v1023, %v1022
      %v1035 = vpack.c.b16 %v1025, %v1024
      %v1036 = vpack.c.b16 %v1027, %v1026
      %v1037 = vpack.c.b16 %v1029, %v1028
      %1046 = vmatprep.subr.bf16.mxu0 0
      %1047 = vmatpush1.bf16.msra.mxu0 %v1030
      %1048 = vmatprep.subr.bf16.mxu0 0
      %1049 = vmatpush1.bf16.msra.mxu0 %v1031
      %1050 = vmatprep.subr.bf16.mxu0 0
      %1051 = vmatpush1.bf16.msra.mxu0 %v1032
      %1052 = vmatprep.subr.bf16.mxu0 0
      %1053 = vmatpush1.bf16.msra.mxu0 %v1033
      %1054 = vmatprep.subr.bf16.mxu0 0
      %1055 = vmatpush1.bf16.msra.mxu0 %v1034
      %1056 = vmatprep.subr.bf16.mxu0 0
      %1057 = vmatpush1.bf16.msra.mxu0 %v1035
      %1058 = vmatprep.subr.bf16.mxu0 0
      %1059 = vmatpush1.bf16.msra.mxu0 %v1036
      %1060 = vmatprep.subr.bf16.mxu0 0
      %1061 = vmatpush1.bf16.msra.mxu0 %v1037
      %1062 = vmatprep.subr.bf16.mxu0 0
      %1063 = vmatpush1.bf16.msra.mxu0 0
      %1064 = vmatprep.subr.bf16.mxu0 0
      %1065 = vmatpush1.bf16.msra.mxu0 0
      %1066 = vmatprep.subr.bf16.mxu0 0
      %1067 = vmatpush1.bf16.msra.mxu0 0
      %1068 = vmatprep.subr.bf16.mxu0 0
      %1069 = vmatpush1.bf16.msra.mxu0 0
      %1070 = vmatprep.subr.bf16.mxu0 0
      %1071 = vmatpush1.bf16.msra.mxu0 0
      %1072 = vmatprep.subr.bf16.mxu0 0
      %1073 = vmatpush1.bf16.msra.mxu0 0
      %1074 = vmatprep.subr.bf16.mxu0 0
      %1075 = vmatpush1.bf16.msra.mxu0 0
      %1076 = vmatprep.subr.bf16.mxu0 0
      %1077 = vmatpush1.bf16.msra.mxu0 0
      %1078 = vmatprep.mubr.bf16.mxu0 0
      %1079 = vmatmul.mubr.bf16.gmra.mrb[0].mxu0 %v959
      %v1080 = vpop.f32.mrb[0].mxu0
      %v1081 = vadd.f32 0.0, %v1080
      %v1082 = vpop.f32.mrb[0].mxu0
      %v1083 = vpop.f32.mrb[0].mxu0
      %v1084 = vpop.f32.mrb[0].mxu0
      %1085 = vdwg.mxu0
      %v1102 = vunpack.c.l.b16 %v965
      %v1103 = vunpack.c.l.b16 %v966
      %v1104 = vunpack.c.l.b16 %v967
      %v1105 = vunpack.c.l.b16 %v968
      %v1106 = vunpack.c.l.b16 %v969
      %v1107 = vunpack.c.l.b16 %v970
      %v1108 = vunpack.c.l.b16 %v971
      %v1109 = vunpack.c.l.b16 %v972
      %v1110 = vunpack.c.l.b16 %v973
      %v1111 = vunpack.c.l.b16 %v974
      %v1112 = vunpack.c.l.b16 %v975
      %v1113 = vunpack.c.l.b16 %v976
      %v1114 = vunpack.c.l.b16 %v977
      %v1115 = vunpack.c.l.b16 %v978
      %v1116 = vunpack.c.l.b16 %v979
      %v1117 = vunpack.c.l.b16 %v980
      %v1118 = vpack.c.b16 %v1103, %v1102
      %v1119 = vpack.c.b16 %v1105, %v1104
      %v1120 = vpack.c.b16 %v1107, %v1106
      %v1121 = vpack.c.b16 %v1109, %v1108
      %v1122 = vpack.c.b16 %v1111, %v1110
      %v1123 = vpack.c.b16 %v1113, %v1112
      %v1124 = vpack.c.b16 %v1115, %v1114
      %v1125 = vpack.c.b16 %v1117, %v1116
      %1134 = vmatprep.subr.bf16.mxu0 0
      %1135 = vmatpush1.bf16.msra.mxu0 %v1118
      %1136 = vmatprep.subr.bf16.mxu0 0
      %1137 = vmatpush1.bf16.msra.mxu0 %v1119
      %1138 = vmatprep.subr.bf16.mxu0 0
      %1139 = vmatpush1.bf16.msra.mxu0 %v1120
      %1140 = vmatprep.subr.bf16.mxu0 0
      %1141 = vmatpush1.bf16.msra.mxu0 %v1121
      %1142 = vmatprep.subr.bf16.mxu0 0
      %1143 = vmatpush1.bf16.msra.mxu0 %v1122
      %1144 = vmatprep.subr.bf16.mxu0 0
      %1145 = vmatpush1.bf16.msra.mxu0 %v1123
      %1146 = vmatprep.subr.bf16.mxu0 0
      %1147 = vmatpush1.bf16.msra.mxu0 %v1124
      %1148 = vmatprep.subr.bf16.mxu0 0
      %1149 = vmatpush1.bf16.msra.mxu0 %v1125
      %1150 = vmatprep.subr.bf16.mxu0 0
      %1151 = vmatpush1.bf16.msra.mxu0 0
      %1152 = vmatprep.subr.bf16.mxu0 0
      %1153 = vmatpush1.bf16.msra.mxu0 0
      %1154 = vmatprep.subr.bf16.mxu0 0
      %1155 = vmatpush1.bf16.msra.mxu0 0
      %1156 = vmatprep.subr.bf16.mxu0 0
      %1157 = vmatpush1.bf16.msra.mxu0 0
      %1158 = vmatprep.subr.bf16.mxu0 0
      %1159 = vmatpush1.bf16.msra.mxu0 0
      %1160 = vmatprep.subr.bf16.mxu0 0
      %1161 = vmatpush1.bf16.msra.mxu0 0
      %1162 = vmatprep.subr.bf16.mxu0 0
      %1163 = vmatpush1.bf16.msra.mxu0 0
      %1164 = vmatprep.subr.bf16.mxu0 0
      %1165 = vmatpush1.bf16.msra.mxu0 0
      %1166 = vmatprep.mubr.bf16.mxu0 0
      %1167 = vmatmul.mubr.bf16.gmra.mrb[0].mxu0 %v962
      %v1168 = vpop.f32.mrb[0].mxu0
      %v1169 = vadd.f32 %v1081, %v1168
      %v1170 = vpop.f32.mrb[0].mxu0
      %v1171 = vpop.f32.mrb[0].mxu0
      %v1172 = vpop.f32.mrb[0].mxu0
      %1173 = vdwg.mxu0
      %s1174 = scalar_lea.vmem %s2, 128
      %v1175 = vld [vmem:[%s1174] sm:$0xf]
      %v1176 = vld [vmem:[%s1174 + $0x4] sm:$0xf]
      %v1177 = vld [vmem:[%s1174 + $0x8] sm:$0xf]
      %v1178 = vld [vmem:[%s1174 + $0xc] sm:$0xf]
      %v1179 = vld [vmem:[%s1174 + $0x10] sm:$0xf]
      %v1180 = vld [vmem:[%s1174 + $0x14] sm:$0xf]
      %v1181 = vld [vmem:[%s1174 + $0x18] sm:$0xf]
      %v1182 = vld [vmem:[%s1174 + $0x1c] sm:$0xf]
      %v1183 = vld [vmem:[%s1174 + $0x20] sm:$0xf]
      %v1184 = vld [vmem:[%s1174 + $0x24] sm:$0xf]
      %v1185 = vld [vmem:[%s1174 + $0x28] sm:$0xf]
      %v1186 = vld [vmem:[%s1174 + $0x2c] sm:$0xf]
      %v1187 = vld [vmem:[%s1174 + $0x30] sm:$0xf]
      %v1188 = vld [vmem:[%s1174 + $0x34] sm:$0xf]
      %v1189 = vld [vmem:[%s1174 + $0x38] sm:$0xf]
      %v1190 = vld [vmem:[%s1174 + $0x3c] sm:$0xf]
      %v1207 = vunpack.c.l.b16 %v1175
      %v1208 = vunpack.c.l.b16 %v1176
      %v1209 = vunpack.c.l.b16 %v1177
      %v1210 = vunpack.c.l.b16 %v1178
      %v1211 = vunpack.c.l.b16 %v1179
      %v1212 = vunpack.c.l.b16 %v1180
      %v1213 = vunpack.c.l.b16 %v1181
      %v1214 = vunpack.c.l.b16 %v1182
      %v1215 = vunpack.c.l.b16 %v1183
      %v1216 = vunpack.c.l.b16 %v1184
      %v1217 = vunpack.c.l.b16 %v1185
      %v1218 = vunpack.c.l.b16 %v1186
      %v1219 = vunpack.c.l.b16 %v1187
      %v1220 = vunpack.c.l.b16 %v1188
      %v1221 = vunpack.c.l.b16 %v1189
      %v1222 = vunpack.c.l.b16 %v1190
      %v1223 = vpack.c.b16 %v1208, %v1207
      %v1224 = vpack.c.b16 %v1210, %v1209
      %v1225 = vpack.c.b16 %v1212, %v1211
      %v1226 = vpack.c.b16 %v1214, %v1213
      %v1227 = vpack.c.b16 %v1216, %v1215
      %v1228 = vpack.c.b16 %v1218, %v1217
      %v1229 = vpack.c.b16 %v1220, %v1219
      %v1230 = vpack.c.b16 %v1222, %v1221
      %1239 = vmatprep.subr.bf16.mxu0 0
      %1240 = vmatpush1.bf16.msra.mxu0 %v1223
      %1241 = vmatprep.subr.bf16.mxu0 0
      %1242 = vmatpush1.bf16.msra.mxu0 %v1224
      %1243 = vmatprep.subr.bf16.mxu0 0
      %1244 = vmatpush1.bf16.msra.mxu0 %v1225
      %1245 = vmatprep.subr.bf16.mxu0 0
      %1246 = vmatpush1.bf16.msra.mxu0 %v1226
      %1247 = vmatprep.subr.bf16.mxu0 0
      %1248 = vmatpush1.bf16.msra.mxu0 %v1227
      %1249 = vmatprep.subr.bf16.mxu0 0
      %1250 = vmatpush1.bf16.msra.mxu0 %v1228
      %1251 = vmatprep.subr.bf16.mxu0 0
      %1252 = vmatpush1.bf16.msra.mxu0 %v1229
      %1253 = vmatprep.subr.bf16.mxu0 0
      %1254 = vmatpush1.bf16.msra.mxu0 %v1230
      %1255 = vmatprep.subr.bf16.mxu0 0
      %1256 = vmatpush1.bf16.msra.mxu0 0
      %1257 = vmatprep.subr.bf16.mxu0 0
      %1258 = vmatpush1.bf16.msra.mxu0 0
      %1259 = vmatprep.subr.bf16.mxu0 0
      %1260 = vmatpush1.bf16.msra.mxu0 0
      %1261 = vmatprep.subr.bf16.mxu0 0
      %1262 = vmatpush1.bf16.msra.mxu0 0
      %1263 = vmatprep.subr.bf16.mxu0 0
      %1264 = vmatpush1.bf16.msra.mxu0 0
      %1265 = vmatprep.subr.bf16.mxu0 0
      %1266 = vmatpush1.bf16.msra.mxu0 0
      %1267 = vmatprep.subr.bf16.mxu0 0
      %1268 = vmatpush1.bf16.msra.mxu0 0
      %1269 = vmatprep.subr.bf16.mxu0 0
      %1270 = vmatpush1.bf16.msra.mxu0 0
      %1271 = vmatprep.mubr.bf16.mxu0 0
      %1272 = vmatmul.mubr.bf16.gmra.mrb[0].mxu0 %v960
      %v1273 = vpop.f32.mrb[0].mxu0
      %v1274 = vadd.f32 0.0, %v1273
      %v1275 = vpop.f32.mrb[0].mxu0
      %v1276 = vpop.f32.mrb[0].mxu0
      %v1277 = vpop.f32.mrb[0].mxu0
      %1278 = vdwg.mxu0
      %v1279 = vadd.f32 %v1169, %v1274
      %v1280 = vld [vmem:[%s9] sm:$0x1]
      %v1282 = vlaneseq
      %v1283 = vshrl.u32 %v1282, 7
      %v1284 = vsub.s32 0, %v1283
      %v1285 = vrot.slane %v1280, %v1284
      %v1287 = vadd.f32 %v1279, %v1285
      %v1288 = vmax.f32 %v1287, 0.0
      %1289 = vst [vmem:[#allocation4 + $0x8] sm:$0xff] %v1288
      %v1290 = vld [vmem:[#allocation4 + $0x7] sm:$0xff]
      %v1291 = vpack.c.bf16 %v1290, %v1290
      %v1292 = vpack.c.bf16 %v1288, %v1288
      %v1293 = vld [vmem:[#allocation4 + $0x9] sm:$0xff]
      %v1294 = vpack.c.bf16 %v1293, %v1293
      %v1295 = vld [vmem:[%s3] sm:$0xf]
      %v1296 = vld [vmem:[%s3 + $0x4] sm:$0xf]
      %v1297 = vld [vmem:[%s3 + $0x8] sm:$0xf]
      %v1298 = vld [vmem:[%s3 + $0xc] sm:$0xf]
      %v1299 = vld [vmem:[%s3 + $0x10] sm:$0xf]
      %v1300 = vld [vmem:[%s3 + $0x14] sm:$0xf]
      %v1301 = vld [vmem:[%s3 + $0x18] sm:$0xf]
      %v1302 = vld [vmem:[%s3 + $0x1c] sm:$0xf]
      %v1303 = vld [vmem:[%s3 + $0x20] sm:$0xf]
      %v1304 = vld [vmem:[%s3 + $0x24] sm:$0xf]
      %v1305 = vld [vmem:[%s3 + $0x28] sm:$0xf]
      %v1306 = vld [vmem:[%s3 + $0x2c] sm:$0xf]
      %v1307 = vld [vmem:[%s3 + $0x30] sm:$0xf]
      %v1308 = vld [vmem:[%s3 + $0x34] sm:$0xf]
      %v1309 = vld [vmem:[%s3 + $0x38] sm:$0xf]
      %v1310 = vld [vmem:[%s3 + $0x3c] sm:$0xf]
      %s1311 = scalar_lea.vmem %s3, 64
      %v1312 = vld [vmem:[%s1311] sm:$0xf]
      %v1313 = vld [vmem:[%s1311 + $0x4] sm:$0xf]
      %v1314 = vld [vmem:[%s1311 + $0x8] sm:$0xf]
      %v1315 = vld [vmem:[%s1311 + $0xc] sm:$0xf]
      %v1316 = vld [vmem:[%s1311 + $0x10] sm:$0xf]
      %v1317 = vld [vmem:[%s1311 + $0x14] sm:$0xf]
      %v1318 = vld [vmem:[%s1311 + $0x18] sm:$0xf]
      %v1319 = vld [vmem:[%s1311 + $0x1c] sm:$0xf]
      %v1320 = vld [vmem:[%s1311 + $0x20] sm:$0xf]
      %v1321 = vld [vmem:[%s1311 + $0x24] sm:$0xf]
      %v1322 = vld [vmem:[%s1311 + $0x28] sm:$0xf]
      %v1323 = vld [vmem:[%s1311 + $0x2c] sm:$0xf]
      %v1324 = vld [vmem:[%s1311 + $0x30] sm:$0xf]
      %v1325 = vld [vmem:[%s1311 + $0x34] sm:$0xf]
      %v1326 = vld [vmem:[%s1311 + $0x38] sm:$0xf]
      %v1327 = vld [vmem:[%s1311 + $0x3c] sm:$0xf]
      %v1344 = vunpack.c.l.b16 %v1312
      %v1345 = vunpack.c.l.b16 %v1313
      %v1346 = vunpack.c.l.b16 %v1314
      %v1347 = vunpack.c.l.b16 %v1315
      %v1348 = vunpack.c.l.b16 %v1316
      %v1349 = vunpack.c.l.b16 %v1317
      %v1350 = vunpack.c.l.b16 %v1318
      %v1351 = vunpack.c.l.b16 %v1319
      %v1352 = vunpack.c.l.b16 %v1320
      %v1353 = vunpack.c.l.b16 %v1321
      %v1354 = vunpack.c.l.b16 %v1322
      %v1355 = vunpack.c.l.b16 %v1323
      %v1356 = vunpack.c.l.b16 %v1324
      %v1357 = vunpack.c.l.b16 %v1325
      %v1358 = vunpack.c.l.b16 %v1326
      %v1359 = vunpack.c.l.b16 %v1327
      %v1360 = vpack.c.b16 %v1345, %v1344
      %v1361 = vpack.c.b16 %v1347, %v1346
      %v1362 = vpack.c.b16 %v1349, %v1348
      %v1363 = vpack.c.b16 %v1351, %v1350
      %v1364 = vpack.c.b16 %v1353, %v1352
      %v1365 = vpack.c.b16 %v1355, %v1354
      %v1366 = vpack.c.b16 %v1357, %v1356
      %v1367 = vpack.c.b16 %v1359, %v1358
      %1376 = vmatprep.subr.bf16.mxu0 0
      %1377 = vmatpush1.bf16.msra.mxu0 %v1360
      %1378 = vmatprep.subr.bf16.mxu0 0
      %1379 = vmatpush1.bf16.msra.mxu0 %v1361
      %1380 = vmatprep.subr.bf16.mxu0 0
      %1381 = vmatpush1.bf16.msra.mxu0 %v1362
      %1382 = vmatprep.subr.bf16.mxu0 0
      %1383 = vmatpush1.bf16.msra.mxu0 %v1363
      %1384 = vmatprep.subr.bf16.mxu0 0
      %1385 = vmatpush1.bf16.msra.mxu0 %v1364
      %1386 = vmatprep.subr.bf16.mxu0 0
      %1387 = vmatpush1.bf16.msra.mxu0 %v1365
      %1388 = vmatprep.subr.bf16.mxu0 0
      %1389 = vmatpush1.bf16.msra.mxu0 %v1366
      %1390 = vmatprep.subr.bf16.mxu0 0
      %1391 = vmatpush1.bf16.msra.mxu0 %v1367
      %1392 = vmatprep.subr.bf16.mxu0 0
      %1393 = vmatpush1.bf16.msra.mxu0 0
      %1394 = vmatprep.subr.bf16.mxu0 0
      %1395 = vmatpush1.bf16.msra.mxu0 0
      %1396 = vmatprep.subr.bf16.mxu0 0
      %1397 = vmatpush1.bf16.msra.mxu0 0
      %1398 = vmatprep.subr.bf16.mxu0 0
      %1399 = vmatpush1.bf16.msra.mxu0 0
      %1400 = vmatprep.subr.bf16.mxu0 0
      %1401 = vmatpush1.bf16.msra.mxu0 0
      %1402 = vmatprep.subr.bf16.mxu0 0
      %1403 = vmatpush1.bf16.msra.mxu0 0
      %1404 = vmatprep.subr.bf16.mxu0 0
      %1405 = vmatpush1.bf16.msra.mxu0 0
      %1406 = vmatprep.subr.bf16.mxu0 0
      %1407 = vmatpush1.bf16.msra.mxu0 0
      %1408 = vmatprep.mubr.bf16.mxu0 0
      %1409 = vmatmul.mubr.bf16.gmra.mrb[0].mxu0 %v1292
      %v1410 = vpop.f32.mrb[0].mxu0
      %v1411 = vadd.f32 0.0, %v1410
      %v1412 = vpop.f32.mrb[0].mxu0
      %v1413 = vpop.f32.mrb[0].mxu0
      %v1414 = vpop.f32.mrb[0].mxu0
      %1415 = vdwg.mxu0
      %v1432 = vunpack.c.l.b16 %v1295
      %v1433 = vunpack.c.l.b16 %v1296
      %v1434 = vunpack.c.l.b16 %v1297
      %v1435 = vunpack.c.l.b16 %v1298
      %v1436 = vunpack.c.l.b16 %v1299
      %v1437 = vunpack.c.l.b16 %v1300
      %v1438 = vunpack.c.l.b16 %v1301
      %v1439 = vunpack.c.l.b16 %v1302
      %v1440 = vunpack.c.l.b16 %v1303
      %v1441 = vunpack.c.l.b16 %v1304
      %v1442 = vunpack.c.l.b16 %v1305
      %v1443 = vunpack.c.l.b16 %v1306
      %v1444 = vunpack.c.l.b16 %v1307
      %v1445 = vunpack.c.l.b16 %v1308
      %v1446 = vunpack.c.l.b16 %v1309
      %v1447 = vunpack.c.l.b16 %v1310
      %v1448 = vpack.c.b16 %v1433, %v1432
      %v1449 = vpack.c.b16 %v1435, %v1434
      %v1450 = vpack.c.b16 %v1437, %v1436
      %v1451 = vpack.c.b16 %v1439, %v1438
      %v1452 = vpack.c.b16 %v1441, %v1440
      %v1453 = vpack.c.b16 %v1443, %v1442
      %v1454 = vpack.c.b16 %v1445, %v1444
      %v1455 = vpack.c.b16 %v1447, %v1446
      %1464 = vmatprep.subr.bf16.mxu0 0
      %1465 = vmatpush1.bf16.msra.mxu0 %v1448
      %1466 = vmatprep.subr.bf16.mxu0 0
      %1467 = vmatpush1.bf16.msra.mxu0 %v1449
      %1468 = vmatprep.subr.bf16.mxu0 0
      %1469 = vmatpush1.bf16.msra.mxu0 %v1450
      %1470 = vmatprep.subr.bf16.mxu0 0
      %1471 = vmatpush1.bf16.msra.mxu0 %v1451
      %1472 = vmatprep.subr.bf16.mxu0 0
      %1473 = vmatpush1.bf16.msra.mxu0 %v1452
      %1474 = vmatprep.subr.bf16.mxu0 0
      %1475 = vmatpush1.bf16.msra.mxu0 %v1453
      %1476 = vmatprep.subr.bf16.mxu0 0
      %1477 = vmatpush1.bf16.msra.mxu0 %v1454
      %1478 = vmatprep.subr.bf16.mxu0 0
      %1479 = vmatpush1.bf16.msra.mxu0 %v1455
      %1480 = vmatprep.subr.bf16.mxu0 0
      %1481 = vmatpush1.bf16.msra.mxu0 0
      %1482 = vmatprep.subr.bf16.mxu0 0
      %1483 = vmatpush1.bf16.msra.mxu0 0
      %1484 = vmatprep.subr.bf16.mxu0 0
      %1485 = vmatpush1.bf16.msra.mxu0 0
      %1486 = vmatprep.subr.bf16.mxu0 0
      %1487 = vmatpush1.bf16.msra.mxu0 0
      %1488 = vmatprep.subr.bf16.mxu0 0
      %1489 = vmatpush1.bf16.msra.mxu0 0
      %1490 = vmatprep.subr.bf16.mxu0 0
      %1491 = vmatpush1.bf16.msra.mxu0 0
      %1492 = vmatprep.subr.bf16.mxu0 0
      %1493 = vmatpush1.bf16.msra.mxu0 0
      %1494 = vmatprep.subr.bf16.mxu0 0
      %1495 = vmatpush1.bf16.msra.mxu0 0
      %1496 = vmatprep.mubr.bf16.mxu0 0
      %1497 = vmatmul.mubr.bf16.gmra.mrb[0].mxu0 %v1291
      %v1498 = vpop.f32.mrb[0].mxu0
      %v1499 = vadd.f32 %v1411, %v1498
      %v1500 = vpop.f32.mrb[0].mxu0
      %v1501 = vpop.f32.mrb[0].mxu0
      %v1502 = vpop.f32.mrb[0].mxu0
      %1503 = vdwg.mxu0
      %s1504 = scalar_lea.vmem %s3, 128
      %v1505 = vld [vmem:[%s1504] sm:$0xf]
      %v1506 = vld [vmem:[%s1504 + $0x4] sm:$0xf]
      %v1507 = vld [vmem:[%s1504 + $0x8] sm:$0xf]
      %v1508 = vld [vmem:[%s1504 + $0xc] sm:$0xf]
      %v1509 = vld [vmem:[%s1504 + $0x10] sm:$0xf]
      %v1510 = vld [vmem:[%s1504 + $0x14] sm:$0xf]
      %v1511 = vld [vmem:[%s1504 + $0x18] sm:$0xf]
      %v1512 = vld [vmem:[%s1504 + $0x1c] sm:$0xf]
      %v1513 = vld [vmem:[%s1504 + $0x20] sm:$0xf]
      %v1514 = vld [vmem:[%s1504 + $0x24] sm:$0xf]
      %v1515 = vld [vmem:[%s1504 + $0x28] sm:$0xf]
      %v1516 = vld [vmem:[%s1504 + $0x2c] sm:$0xf]
      %v1517 = vld [vmem:[%s1504 + $0x30] sm:$0xf]
      %v1518 = vld [vmem:[%s1504 + $0x34] sm:$0xf]
      %v1519 = vld [vmem:[%s1504 + $0x38] sm:$0xf]
      %v1520 = vld [vmem:[%s1504 + $0x3c] sm:$0xf]
      %v1537 = vunpack.c.l.b16 %v1505
      %v1538 = vunpack.c.l.b16 %v1506
      %v1539 = vunpack.c.l.b16 %v1507
      %v1540 = vunpack.c.l.b16 %v1508
      %v1541 = vunpack.c.l.b16 %v1509
      %v1542 = vunpack.c.l.b16 %v1510
      %v1543 = vunpack.c.l.b16 %v1511
      %v1544 = vunpack.c.l.b16 %v1512
      %v1545 = vunpack.c.l.b16 %v1513
      %v1546 = vunpack.c.l.b16 %v1514
      %v1547 = vunpack.c.l.b16 %v1515
      %v1548 = vunpack.c.l.b16 %v1516
      %v1549 = vunpack.c.l.b16 %v1517
      %v1550 = vunpack.c.l.b16 %v1518
      %v1551 = vunpack.c.l.b16 %v1519
      %v1552 = vunpack.c.l.b16 %v1520
      %v1553 = vpack.c.b16 %v1538, %v1537
      %v1554 = vpack.c.b16 %v1540, %v1539
      %v1555 = vpack.c.b16 %v1542, %v1541
      %v1556 = vpack.c.b16 %v1544, %v1543
      %v1557 = vpack.c.b16 %v1546, %v1545
      %v1558 = vpack.c.b16 %v1548, %v1547
      %v1559 = vpack.c.b16 %v1550, %v1549
      %v1560 = vpack.c.b16 %v1552, %v1551
      %1569 = vmatprep.subr.bf16.mxu0 0
      %1570 = vmatpush1.bf16.msra.mxu0 %v1553
      %1571 = vmatprep.subr.bf16.mxu0 0
      %1572 = vmatpush1.bf16.msra.mxu0 %v1554
      %1573 = vmatprep.subr.bf16.mxu0 0
      %1574 = vmatpush1.bf16.msra.mxu0 %v1555
      %1575 = vmatprep.subr.bf16.mxu0 0
      %1576 = vmatpush1.bf16.msra.mxu0 %v1556
      %1577 = vmatprep.subr.bf16.mxu0 0
      %1578 = vmatpush1.bf16.msra.mxu0 %v1557
      %1579 = vmatprep.subr.bf16.mxu0 0
      %1580 = vmatpush1.bf16.msra.mxu0 %v1558
      %1581 = vmatprep.subr.bf16.mxu0 0
      %1582 = vmatpush1.bf16.msra.mxu0 %v1559
      %1583 = vmatprep.subr.bf16.mxu0 0
      %1584 = vmatpush1.bf16.msra.mxu0 %v1560
      %1585 = vmatprep.subr.bf16.mxu0 0
      %1586 = vmatpush1.bf16.msra.mxu0 0
      %1587 = vmatprep.subr.bf16.mxu0 0
      %1588 = vmatpush1.bf16.msra.mxu0 0
      %1589 = vmatprep.subr.bf16.mxu0 0
      %1590 = vmatpush1.bf16.msra.mxu0 0
      %1591 = vmatprep.subr.bf16.mxu0 0
      %1592 = vmatpush1.bf16.msra.mxu0 0
      %1593 = vmatprep.subr.bf16.mxu0 0
      %1594 = vmatpush1.bf16.msra.mxu0 0
      %1595 = vmatprep.subr.bf16.mxu0 0
      %1596 = vmatpush1.bf16.msra.mxu0 0
      %1597 = vmatprep.subr.bf16.mxu0 0
      %1598 = vmatpush1.bf16.msra.mxu0 0
      %1599 = vmatprep.subr.bf16.mxu0 0
      %1600 = vmatpush1.bf16.msra.mxu0 0
      %1601 = vmatprep.mubr.bf16.mxu0 0
      %1602 = vmatmul.mubr.bf16.gmra.mrb[0].mxu0 %v1294
      %v1603 = vpop.f32.mrb[0].mxu0
      %v1604 = vadd.f32 0.0, %v1603
      %v1605 = vpop.f32.mrb[0].mxu0
      %v1606 = vpop.f32.mrb[0].mxu0
      %v1607 = vpop.f32.mrb[0].mxu0
      %1608 = vdwg.mxu0
      %v1609 = vadd.f32 %v1499, %v1604
      %v1610 = vld [vmem:[%s10] sm:$0x1]
      %v1612 = vlaneseq
      %v1613 = vshrl.u32 %v1612, 7
      %v1614 = vsub.s32 0, %v1613
      %v1615 = vrot.slane %v1610, %v1614
      %v1617 = vadd.f32 %v1609, %v1615
      %v1618 = vmax.f32 %v1617, 0.0
      %1619 = vst [vmem:[#allocation4 + $0x8] sm:$0xff] %v1618
      %v1620 = vpack.c.bf16 %v1618, %v1618
      %v1621 = vld [vmem:[#allocation4 + $0x7] sm:$0xff]
      %v1622 = vpack.c.bf16 %v1621, %v1621
      %v1623 = vld [vmem:[#allocation4 + $0x9] sm:$0xff]
      %v1624 = vpack.c.bf16 %v1623, %v1623
      %v1625 = vld [vmem:[%s4] sm:$0xf]
      %v1626 = vld [vmem:[%s4 + $0x4] sm:$0xf]
      %v1627 = vld [vmem:[%s4 + $0x8] sm:$0xf]
      %v1628 = vld [vmem:[%s4 + $0xc] sm:$0xf]
      %v1629 = vld [vmem:[%s4 + $0x10] sm:$0xf]
      %v1630 = vld [vmem:[%s4 + $0x14] sm:$0xf]
      %v1631 = vld [vmem:[%s4 + $0x18] sm:$0xf]
      %v1632 = vld [vmem:[%s4 + $0x1c] sm:$0xf]
      %v1633 = vld [vmem:[%s4 + $0x20] sm:$0xf]
      %v1634 = vld [vmem:[%s4 + $0x24] sm:$0xf]
      %v1635 = vld [vmem:[%s4 + $0x28] sm:$0xf]
      %v1636 = vld [vmem:[%s4 + $0x2c] sm:$0xf]
      %v1637 = vld [vmem:[%s4 + $0x30] sm:$0xf]
      %v1638 = vld [vmem:[%s4 + $0x34] sm:$0xf]
      %v1639 = vld [vmem:[%s4 + $0x38] sm:$0xf]
      %v1640 = vld [vmem:[%s4 + $0x3c] sm:$0xf]
      %s1641 = scalar_lea.vmem %s4, 64
      %v1642 = vld [vmem:[%s1641] sm:$0xf]
      %v1643 = vld [vmem:[%s1641 + $0x4] sm:$0xf]
      %v1644 = vld [vmem:[%s1641 + $0x8] sm:$0xf]
      %v1645 = vld [vmem:[%s1641 + $0xc] sm:$0xf]
      %v1646 = vld [vmem:[%s1641 + $0x10] sm:$0xf]
      %v1647 = vld [vmem:[%s1641 + $0x14] sm:$0xf]
      %v1648 = vld [vmem:[%s1641 + $0x18] sm:$0xf]
      %v1649 = vld [vmem:[%s1641 + $0x1c] sm:$0xf]
      %v1650 = vld [vmem:[%s1641 + $0x20] sm:$0xf]
      %v1651 = vld [vmem:[%s1641 + $0x24] sm:$0xf]
      %v1652 = vld [vmem:[%s1641 + $0x28] sm:$0xf]
      %v1653 = vld [vmem:[%s1641 + $0x2c] sm:$0xf]
      %v1654 = vld [vmem:[%s1641 + $0x30] sm:$0xf]
      %v1655 = vld [vmem:[%s1641 + $0x34] sm:$0xf]
      %v1656 = vld [vmem:[%s1641 + $0x38] sm:$0xf]
      %v1657 = vld [vmem:[%s1641 + $0x3c] sm:$0xf]
      %v1674 = vunpack.c.l.b16 %v1642
      %v1675 = vunpack.c.l.b16 %v1643
      %v1676 = vunpack.c.l.b16 %v1644
      %v1677 = vunpack.c.l.b16 %v1645
      %v1678 = vunpack.c.l.b16 %v1646
      %v1679 = vunpack.c.l.b16 %v1647
      %v1680 = vunpack.c.l.b16 %v1648
      %v1681 = vunpack.c.l.b16 %v1649
      %v1682 = vunpack.c.l.b16 %v1650
      %v1683 = vunpack.c.l.b16 %v1651
      %v1684 = vunpack.c.l.b16 %v1652
      %v1685 = vunpack.c.l.b16 %v1653
      %v1686 = vunpack.c.l.b16 %v1654
      %v1687 = vunpack.c.l.b16 %v1655
      %v1688 = vunpack.c.l.b16 %v1656
      %v1689 = vunpack.c.l.b16 %v1657
      %v1690 = vpack.c.b16 %v1675, %v1674
      %v1691 = vpack.c.b16 %v1677, %v1676
      %v1692 = vpack.c.b16 %v1679, %v1678
      %v1693 = vpack.c.b16 %v1681, %v1680
      %v1694 = vpack.c.b16 %v1683, %v1682
      %v1695 = vpack.c.b16 %v1685, %v1684
      %v1696 = vpack.c.b16 %v1687, %v1686
      %v1697 = vpack.c.b16 %v1689, %v1688
      %1706 = vmatprep.subr.bf16.mxu0 0
      %1707 = vmatpush1.bf16.msra.mxu0 %v1690
      %1708 = vmatprep.subr.bf16.mxu0 0
      %1709 = vmatpush1.bf16.msra.mxu0 %v1691
      %1710 = vmatprep.subr.bf16.mxu0 0
      %1711 = vmatpush1.bf16.msra.mxu0 %v1692
      %1712 = vmatprep.subr.bf16.mxu0 0
      %1713 = vmatpush1.bf16.msra.mxu0 %v1693
      %1714 = vmatprep.subr.bf16.mxu0 0
      %1715 = vmatpush1.bf16.msra.mxu0 %v1694
      %1716 = vmatprep.subr.bf16.mxu0 0
      %1717 = vmatpush1.bf16.msra.mxu0 %v1695
      %1718 = vmatprep.subr.bf16.mxu0 0
      %1719 = vmatpush1.bf16.msra.mxu0 %v1696
      %1720 = vmatprep.subr.bf16.mxu0 0
      %1721 = vmatpush1.bf16.msra.mxu0 %v1697
      %1722 = vmatprep.subr.bf16.mxu0 0
      %1723 = vmatpush1.bf16.msra.mxu0 0
      %1724 = vmatprep.subr.bf16.mxu0 0
      %1725 = vmatpush1.bf16.msra.mxu0 0
      %1726 = vmatprep.subr.bf16.mxu0 0
      %1727 = vmatpush1.bf16.msra.mxu0 0
      %1728 = vmatprep.subr.bf16.mxu0 0
      %1729 = vmatpush1.bf16.msra.mxu0 0
      %1730 = vmatprep.subr.bf16.mxu0 0
      %1731 = vmatpush1.bf16.msra.mxu0 0
      %1732 = vmatprep.subr.bf16.mxu0 0
      %1733 = vmatpush1.bf16.msra.mxu0 0
      %1734 = vmatprep.subr.bf16.mxu0 0
      %1735 = vmatpush1.bf16.msra.mxu0 0
      %1736 = vmatprep.subr.bf16.mxu0 0
      %1737 = vmatpush1.bf16.msra.mxu0 0
      %1738 = vmatprep.mubr.bf16.mxu0 0
      %1739 = vmatmul.mubr.bf16.gmra.mrb[0].mxu0 %v1620
      %v1740 = vpop.f32.mrb[0].mxu0
      %v1741 = vadd.f32 0.0, %v1740
      %v1742 = vpop.f32.mrb[0].mxu0
      %v1743 = vpop.f32.mrb[0].mxu0
      %v1744 = vpop.f32.mrb[0].mxu0
      %1745 = vdwg.mxu0
      %v1762 = vunpack.c.l.b16 %v1625
      %v1763 = vunpack.c.l.b16 %v1626
      %v1764 = vunpack.c.l.b16 %v1627
      %v1765 = vunpack.c.l.b16 %v1628
      %v1766 = vunpack.c.l.b16 %v1629
      %v1767 = vunpack.c.l.b16 %v1630
      %v1768 = vunpack.c.l.b16 %v1631
      %v1769 = vunpack.c.l.b16 %v1632
      %v1770 = vunpack.c.l.b16 %v1633
      %v1771 = vunpack.c.l.b16 %v1634
      %v1772 = vunpack.c.l.b16 %v1635
      %v1773 = vunpack.c.l.b16 %v1636
      %v1774 = vunpack.c.l.b16 %v1637
      %v1775 = vunpack.c.l.b16 %v1638
      %v1776 = vunpack.c.l.b16 %v1639
      %v1777 = vunpack.c.l.b16 %v1640
      %v1778 = vpack.c.b16 %v1763, %v1762
      %v1779 = vpack.c.b16 %v1765, %v1764
      %v1780 = vpack.c.b16 %v1767, %v1766
      %v1781 = vpack.c.b16 %v1769, %v1768
      %v1782 = vpack.c.b16 %v1771, %v1770
      %v1783 = vpack.c.b16 %v1773, %v1772
      %v1784 = vpack.c.b16 %v1775, %v1774
      %v1785 = vpack.c.b16 %v1777, %v1776
      %1794 = vmatprep.subr.bf16.mxu0 0
      %1795 = vmatpush1.bf16.msra.mxu0 %v1778
      %1796 = vmatprep.subr.bf16.mxu0 0
      %1797 = vmatpush1.bf16.msra.mxu0 %v1779
      %1798 = vmatprep.subr.bf16.mxu0 0
      %1799 = vmatpush1.bf16.msra.mxu0 %v1780
      %1800 = vmatprep.subr.bf16.mxu0 0
      %1801 = vmatpush1.bf16.msra.mxu0 %v1781
      %1802 = vmatprep.subr.bf16.mxu0 0
      %1803 = vmatpush1.bf16.msra.mxu0 %v1782
      %1804 = vmatprep.subr.bf16.mxu0 0
      %1805 = vmatpush1.bf16.msra.mxu0 %v1783
      %1806 = vmatprep.subr.bf16.mxu0 0
      %1807 = vmatpush1.bf16.msra.mxu0 %v1784
      %1808 = vmatprep.subr.bf16.mxu0 0
      %1809 = vmatpush1.bf16.msra.mxu0 %v1785
      %1810 = vmatprep.subr.bf16.mxu0 0
      %1811 = vmatpush1.bf16.msra.mxu0 0
      %1812 = vmatprep.subr.bf16.mxu0 0
      %1813 = vmatpush1.bf16.msra.mxu0 0
      %1814 = vmatprep.subr.bf16.mxu0 0
      %1815 = vmatpush1.bf16.msra.mxu0 0
      %1816 = vmatprep.subr.bf16.mxu0 0
      %1817 = vmatpush1.bf16.msra.mxu0 0
      %1818 = vmatprep.subr.bf16.mxu0 0
      %1819 = vmatpush1.bf16.msra.mxu0 0
      %1820 = vmatprep.subr.bf16.mxu0 0
      %1821 = vmatpush1.bf16.msra.mxu0 0
      %1822 = vmatprep.subr.bf16.mxu0 0
      %1823 = vmatpush1.bf16.msra.mxu0 0
      %1824 = vmatprep.subr.bf16.mxu0 0
      %1825 = vmatpush1.bf16.msra.mxu0 0
      %1826 = vmatprep.mubr.bf16.mxu0 0
      %1827 = vmatmul.mubr.bf16.gmra.mrb[0].mxu0 %v1622
      %v1828 = vpop.f32.mrb[0].mxu0
      %v1829 = vadd.f32 %v1741, %v1828
      %v1830 = vpop.f32.mrb[0].mxu0
      %v1831 = vpop.f32.mrb[0].mxu0
      %v1832 = vpop.f32.mrb[0].mxu0
      %1833 = vdwg.mxu0
      %v1834 = vld [vmem:[%s11] sm:$0x1]
      %v1836 = vlaneseq
      %v1837 = vshrl.u32 %v1836, 7
      %v1838 = vsub.s32 0, %v1837
      %v1839 = vrot.slane %v1834, %v1838
      %v1841 = vadd.f32 %v1829, %v1839
      %v1842 = vmax.f32 %v1841, 0.0
      %1843 = vst [vmem:[#allocation5 + $0x8] sm:$0xff] %v1842
      %s1844 = scalar_lea.vmem %s4, 128
      %v1845 = vld [vmem:[%s1844] sm:$0xf]
      %v1846 = vld [vmem:[%s1844 + $0x4] sm:$0xf]
      %v1847 = vld [vmem:[%s1844 + $0x8] sm:$0xf]
      %v1848 = vld [vmem:[%s1844 + $0xc] sm:$0xf]
      %v1849 = vld [vmem:[%s1844 + $0x10] sm:$0xf]
      %v1850 = vld [vmem:[%s1844 + $0x14] sm:$0xf]
      %v1851 = vld [vmem:[%s1844 + $0x18] sm:$0xf]
      %v1852 = vld [vmem:[%s1844 + $0x1c] sm:$0xf]
      %v1853 = vld [vmem:[%s1844 + $0x20] sm:$0xf]
      %v1854 = vld [vmem:[%s1844 + $0x24] sm:$0xf]
      %v1855 = vld [vmem:[%s1844 + $0x28] sm:$0xf]
      %v1856 = vld [vmem:[%s1844 + $0x2c] sm:$0xf]
      %v1857 = vld [vmem:[%s1844 + $0x30] sm:$0xf]
      %v1858 = vld [vmem:[%s1844 + $0x34] sm:$0xf]
      %v1859 = vld [vmem:[%s1844 + $0x38] sm:$0xf]
      %v1860 = vld [vmem:[%s1844 + $0x3c] sm:$0xf]
      %s1861 = scalar_lea.vmem %s4, 192
      %v1862 = vld [vmem:[%s1861] sm:$0xf]
      %v1863 = vld [vmem:[%s1861 + $0x4] sm:$0xf]
      %v1864 = vld [vmem:[%s1861 + $0x8] sm:$0xf]
      %v1865 = vld [vmem:[%s1861 + $0xc] sm:$0xf]
      %v1866 = vld [vmem:[%s1861 + $0x10] sm:$0xf]
      %v1867 = vld [vmem:[%s1861 + $0x14] sm:$0xf]
      %v1868 = vld [vmem:[%s1861 + $0x18] sm:$0xf]
      %v1869 = vld [vmem:[%s1861 + $0x1c] sm:$0xf]
      %v1870 = vld [vmem:[%s1861 + $0x20] sm:$0xf]
      %v1871 = vld [vmem:[%s1861 + $0x24] sm:$0xf]
      %v1872 = vld [vmem:[%s1861 + $0x28] sm:$0xf]
      %v1873 = vld [vmem:[%s1861 + $0x2c] sm:$0xf]
      %v1874 = vld [vmem:[%s1861 + $0x30] sm:$0xf]
      %v1875 = vld [vmem:[%s1861 + $0x34] sm:$0xf]
      %v1876 = vld [vmem:[%s1861 + $0x38] sm:$0xf]
      %v1877 = vld [vmem:[%s1861 + $0x3c] sm:$0xf]
      %v1894 = vunpack.c.l.b16 %v1862
      %v1895 = vunpack.c.l.b16 %v1863
      %v1896 = vunpack.c.l.b16 %v1864
      %v1897 = vunpack.c.l.b16 %v1865
      %v1898 = vunpack.c.l.b16 %v1866
      %v1899 = vunpack.c.l.b16 %v1867
      %v1900 = vunpack.c.l.b16 %v1868
      %v1901 = vunpack.c.l.b16 %v1869
      %v1902 = vunpack.c.l.b16 %v1870
      %v1903 = vunpack.c.l.b16 %v1871
      %v1904 = vunpack.c.l.b16 %v1872
      %v1905 = vunpack.c.l.b16 %v1873
      %v1906 = vunpack.c.l.b16 %v1874
      %v1907 = vunpack.c.l.b16 %v1875
      %v1908 = vunpack.c.l.b16 %v1876
      %v1909 = vunpack.c.l.b16 %v1877
      %v1910 = vpack.c.b16 %v1895, %v1894
      %v1911 = vpack.c.b16 %v1897, %v1896
      %v1912 = vpack.c.b16 %v1899, %v1898
      %v1913 = vpack.c.b16 %v1901, %v1900
      %v1914 = vpack.c.b16 %v1903, %v1902
      %v1915 = vpack.c.b16 %v1905, %v1904
      %v1916 = vpack.c.b16 %v1907, %v1906
      %v1917 = vpack.c.b16 %v1909, %v1908
      %1926 = vmatprep.subr.bf16.mxu0 0
      %1927 = vmatpush1.bf16.msra.mxu0 %v1910
      %1928 = vmatprep.subr.bf16.mxu0 0
      %1929 = vmatpush1.bf16.msra.mxu0 %v1911
      %1930 = vmatprep.subr.bf16.mxu0 0
      %1931 = vmatpush1.bf16.msra.mxu0 %v1912
      %1932 = vmatprep.subr.bf16.mxu0 0
      %1933 = vmatpush1.bf16.msra.mxu0 %v1913
      %1934 = vmatprep.subr.bf16.mxu0 0
      %1935 = vmatpush1.bf16.msra.mxu0 %v1914
      %1936 = vmatprep.subr.bf16.mxu0 0
      %1937 = vmatpush1.bf16.msra.mxu0 %v1915
      %1938 = vmatprep.subr.bf16.mxu0 0
      %1939 = vmatpush1.bf16.msra.mxu0 %v1916
      %1940 = vmatprep.subr.bf16.mxu0 0
      %1941 = vmatpush1.bf16.msra.mxu0 %v1917
      %1942 = vmatprep.subr.bf16.mxu0 0
      %1943 = vmatpush1.bf16.msra.mxu0 0
      %1944 = vmatprep.subr.bf16.mxu0 0
      %1945 = vmatpush1.bf16.msra.mxu0 0
      %1946 = vmatprep.subr.bf16.mxu0 0
      %1947 = vmatpush1.bf16.msra.mxu0 0
      %1948 = vmatprep.subr.bf16.mxu0 0
      %1949 = vmatpush1.bf16.msra.mxu0 0
      %1950 = vmatprep.subr.bf16.mxu0 0
      %1951 = vmatpush1.bf16.msra.mxu0 0
      %1952 = vmatprep.subr.bf16.mxu0 0
      %1953 = vmatpush1.bf16.msra.mxu0 0
      %1954 = vmatprep.subr.bf16.mxu0 0
      %1955 = vmatpush1.bf16.msra.mxu0 0
      %1956 = vmatprep.subr.bf16.mxu0 0
      %1957 = vmatpush1.bf16.msra.mxu0 0
      %1958 = vmatprep.mubr.bf16.mxu0 0
      %1959 = vmatmul.mubr.bf16.gmra.mrb[0].mxu0 %v1624
      %v1960 = vpop.f32.mrb[0].mxu0
      %v1961 = vadd.f32 0.0, %v1960
      %v1962 = vpop.f32.mrb[0].mxu0
      %v1963 = vpop.f32.mrb[0].mxu0
      %v1964 = vpop.f32.mrb[0].mxu0
      %1965 = vdwg.mxu0
      %v1982 = vunpack.c.l.b16 %v1845
      %v1983 = vunpack.c.l.b16 %v1846
      %v1984 = vunpack.c.l.b16 %v1847
      %v1985 = vunpack.c.l.b16 %v1848
      %v1986 = vunpack.c.l.b16 %v1849
      %v1987 = vunpack.c.l.b16 %v1850
      %v1988 = vunpack.c.l.b16 %v1851
      %v1989 = vunpack.c.l.b16 %v1852
      %v1990 = vunpack.c.l.b16 %v1853
      %v1991 = vunpack.c.l.b16 %v1854
      %v1992 = vunpack.c.l.b16 %v1855
      %v1993 = vunpack.c.l.b16 %v1856
      %v1994 = vunpack.c.l.b16 %v1857
      %v1995 = vunpack.c.l.b16 %v1858
      %v1996 = vunpack.c.l.b16 %v1859
      %v1997 = vunpack.c.l.b16 %v1860
      %v1998 = vpack.c.b16 %v1983, %v1982
      %v1999 = vpack.c.b16 %v1985, %v1984
      %v2000 = vpack.c.b16 %v1987, %v1986
      %v2001 = vpack.c.b16 %v1989, %v1988
      %v2002 = vpack.c.b16 %v1991, %v1990
      %v2003 = vpack.c.b16 %v1993, %v1992
      %v2004 = vpack.c.b16 %v1995, %v1994
      %v2005 = vpack.c.b16 %v1997, %v1996
      %2014 = vmatprep.subr.bf16.mxu0 0
      %2015 = vmatpush1.bf16.msra.mxu0 %v1998
      %2016 = vmatprep.subr.bf16.mxu0 0
      %2017 = vmatpush1.bf16.msra.mxu0 %v1999
      %2018 = vmatprep.subr.bf16.mxu0 0
      %2019 = vmatpush1.bf16.msra.mxu0 %v2000
      %2020 = vmatprep.subr.bf16.mxu0 0
      %2021 = vmatpush1.bf16.msra.mxu0 %v2001
      %2022 = vmatprep.subr.bf16.mxu0 0
      %2023 = vmatpush1.bf16.msra.mxu0 %v2002
      %2024 = vmatprep.subr.bf16.mxu0 0
      %2025 = vmatpush1.bf16.msra.mxu0 %v2003
      %2026 = vmatprep.subr.bf16.mxu0 0
      %2027 = vmatpush1.bf16.msra.mxu0 %v2004
      %2028 = vmatprep.subr.bf16.mxu0 0
      %2029 = vmatpush1.bf16.msra.mxu0 %v2005
      %2030 = vmatprep.subr.bf16.mxu0 0
      %2031 = vmatpush1.bf16.msra.mxu0 0
      %2032 = vmatprep.subr.bf16.mxu0 0
      %2033 = vmatpush1.bf16.msra.mxu0 0
      %2034 = vmatprep.subr.bf16.mxu0 0
      %2035 = vmatpush1.bf16.msra.mxu0 0
      %2036 = vmatprep.subr.bf16.mxu0 0
      %2037 = vmatpush1.bf16.msra.mxu0 0
      %2038 = vmatprep.subr.bf16.mxu0 0
      %2039 = vmatpush1.bf16.msra.mxu0 0
      %2040 = vmatprep.subr.bf16.mxu0 0
      %2041 = vmatpush1.bf16.msra.mxu0 0
      %2042 = vmatprep.subr.bf16.mxu0 0
      %2043 = vmatpush1.bf16.msra.mxu0 0
      %2044 = vmatprep.subr.bf16.mxu0 0
      %2045 = vmatpush1.bf16.msra.mxu0 0
      %2046 = vmatprep.mubr.bf16.mxu0 0
      %2047 = vmatmul.mubr.bf16.gmra.mrb[0].mxu0 %v1620
      %v2048 = vpop.f32.mrb[0].mxu0
      %v2049 = vadd.f32 %v1961, %v2048
      %v2050 = vpop.f32.mrb[0].mxu0
      %v2051 = vpop.f32.mrb[0].mxu0
      %v2052 = vpop.f32.mrb[0].mxu0
      %2053 = vdwg.mxu0
      %v2054 = vld [vmem:[%s11] sm:$0x1]
      %v2056 = vlaneseq
      %v2057 = vshrl.u32 %v2056, 7
      %v2058 = vsub.s32 0, %v2057
      %v2059 = vrot.slane %v2054, %v2058
      %v2061 = vadd.f32 %v2049, %v2059
      %v2062 = vmax.f32 %v2061, 0.0
      %2063 = vst [vmem:[#allocation6 + $0x8] sm:$0xff] %v2062
      %v2064 = vpack.c.bf16 %v1842, %v1842
      %v2065 = vpack.c.bf16 %v2062, %v2062
      %v2066 = vld [vmem:[#allocation6 + $0x7] sm:$0xff]
      %v2067 = vpack.c.bf16 %v2066, %v2066
      %v2068 = vld [vmem:[#allocation5 + $0x9] sm:$0xff]
      %v2069 = vpack.c.bf16 %v2068, %v2068
      %v2070 = vld [vmem:[%s5] sm:$0xf]
      %v2071 = vld [vmem:[%s5 + $0x4] sm:$0xf]
      %v2072 = vld [vmem:[%s5 + $0x8] sm:$0xf]
      %v2073 = vld [vmem:[%s5 + $0xc] sm:$0xf]
      %v2074 = vld [vmem:[%s5 + $0x10] sm:$0xf]
      %v2075 = vld [vmem:[%s5 + $0x14] sm:$0xf]
      %v2076 = vld [vmem:[%s5 + $0x18] sm:$0xf]
      %v2077 = vld [vmem:[%s5 + $0x1c] sm:$0xf]
      %v2078 = vld [vmem:[%s5 + $0x20] sm:$0xf]
      %v2079 = vld [vmem:[%s5 + $0x24] sm:$0xf]
      %v2080 = vld [vmem:[%s5 + $0x28] sm:$0xf]
      %v2081 = vld [vmem:[%s5 + $0x2c] sm:$0xf]
      %v2082 = vld [vmem:[%s5 + $0x30] sm:$0xf]
      %v2083 = vld [vmem:[%s5 + $0x34] sm:$0xf]
      %v2084 = vld [vmem:[%s5 + $0x38] sm:$0xf]
      %v2085 = vld [vmem:[%s5 + $0x3c] sm:$0xf]
      %s2086 = scalar_lea.vmem %s5, 64
      %v2087 = vld [vmem:[%s2086] sm:$0xf]
      %v2088 = vld [vmem:[%s2086 + $0x4] sm:$0xf]
      %v2089 = vld [vmem:[%s2086 + $0x8] sm:$0xf]
      %v2090 = vld [vmem:[%s2086 + $0xc] sm:$0xf]
      %v2091 = vld [vmem:[%s2086 + $0x10] sm:$0xf]
      %v2092 = vld [vmem:[%s2086 + $0x14] sm:$0xf]
      %v2093 = vld [vmem:[%s2086 + $0x18] sm:$0xf]
      %v2094 = vld [vmem:[%s2086 + $0x1c] sm:$0xf]
      %v2095 = vld [vmem:[%s2086 + $0x20] sm:$0xf]
      %v2096 = vld [vmem:[%s2086 + $0x24] sm:$0xf]
      %v2097 = vld [vmem:[%s2086 + $0x28] sm:$0xf]
      %v2098 = vld [vmem:[%s2086 + $0x2c] sm:$0xf]
      %v2099 = vld [vmem:[%s2086 + $0x30] sm:$0xf]
      %v2100 = vld [vmem:[%s2086 + $0x34] sm:$0xf]
      %v2101 = vld [vmem:[%s2086 + $0x38] sm:$0xf]
      %v2102 = vld [vmem:[%s2086 + $0x3c] sm:$0xf]
      %v2119 = vunpack.c.l.b16 %v2087
      %v2120 = vunpack.c.l.b16 %v2088
      %v2121 = vunpack.c.l.b16 %v2089
      %v2122 = vunpack.c.l.b16 %v2090
      %v2123 = vunpack.c.l.b16 %v2091
      %v2124 = vunpack.c.l.b16 %v2092
      %v2125 = vunpack.c.l.b16 %v2093
      %v2126 = vunpack.c.l.b16 %v2094
      %v2127 = vunpack.c.l.b16 %v2095
      %v2128 = vunpack.c.l.b16 %v2096
      %v2129 = vunpack.c.l.b16 %v2097
      %v2130 = vunpack.c.l.b16 %v2098
      %v2131 = vunpack.c.l.b16 %v2099
      %v2132 = vunpack.c.l.b16 %v2100
      %v2133 = vunpack.c.l.b16 %v2101
      %v2134 = vunpack.c.l.b16 %v2102
      %v2135 = vpack.c.b16 %v2120, %v2119
      %v2136 = vpack.c.b16 %v2122, %v2121
      %v2137 = vpack.c.b16 %v2124, %v2123
      %v2138 = vpack.c.b16 %v2126, %v2125
      %v2139 = vpack.c.b16 %v2128, %v2127
      %v2140 = vpack.c.b16 %v2130, %v2129
      %v2141 = vpack.c.b16 %v2132, %v2131
      %v2142 = vpack.c.b16 %v2134, %v2133
      %2151 = vmatprep.subr.bf16.mxu0 0
      %2152 = vmatpush1.bf16.msra.mxu0 %v2135
      %2153 = vmatprep.subr.bf16.mxu0 0
      %2154 = vmatpush1.bf16.msra.mxu0 %v2136
      %2155 = vmatprep.subr.bf16.mxu0 0
      %2156 = vmatpush1.bf16.msra.mxu0 %v2137
      %2157 = vmatprep.subr.bf16.mxu0 0
      %2158 = vmatpush1.bf16.msra.mxu0 %v2138
      %2159 = vmatprep.subr.bf16.mxu0 0
      %2160 = vmatpush1.bf16.msra.mxu0 %v2139
      %2161 = vmatprep.subr.bf16.mxu0 0
      %2162 = vmatpush1.bf16.msra.mxu0 %v2140
      %2163 = vmatprep.subr.bf16.mxu0 0
      %2164 = vmatpush1.bf16.msra.mxu0 %v2141
      %2165 = vmatprep.subr.bf16.mxu0 0
      %2166 = vmatpush1.bf16.msra.mxu0 %v2142
      %2167 = vmatprep.subr.bf16.mxu0 0
      %2168 = vmatpush1.bf16.msra.mxu0 0
      %2169 = vmatprep.subr.bf16.mxu0 0
      %2170 = vmatpush1.bf16.msra.mxu0 0
      %2171 = vmatprep.subr.bf16.mxu0 0
      %2172 = vmatpush1.bf16.msra.mxu0 0
      %2173 = vmatprep.subr.bf16.mxu0 0
      %2174 = vmatpush1.bf16.msra.mxu0 0
      %2175 = vmatprep.subr.bf16.mxu0 0
      %2176 = vmatpush1.bf16.msra.mxu0 0
      %2177 = vmatprep.subr.bf16.mxu0 0
      %2178 = vmatpush1.bf16.msra.mxu0 0
      %2179 = vmatprep.subr.bf16.mxu0 0
      %2180 = vmatpush1.bf16.msra.mxu0 0
      %2181 = vmatprep.subr.bf16.mxu0 0
      %2182 = vmatpush1.bf16.msra.mxu0 0
      %2183 = vmatprep.mubr.bf16.mxu0 0
      %2184 = vmatmul.mubr.bf16.gmra.mrb[0].mxu0 %v2064
      %v2185 = vpop.f32.mrb[0].mxu0
      %v2186 = vadd.f32 0.0, %v2185
      %v2187 = vpop.f32.mrb[0].mxu0
      %v2188 = vpop.f32.mrb[0].mxu0
      %v2189 = vpop.f32.mrb[0].mxu0
      %2190 = vdwg.mxu0
      %v2207 = vunpack.c.l.b16 %v2070
      %v2208 = vunpack.c.l.b16 %v2071
      %v2209 = vunpack.c.l.b16 %v2072
      %v2210 = vunpack.c.l.b16 %v2073
      %v2211 = vunpack.c.l.b16 %v2074
      %v2212 = vunpack.c.l.b16 %v2075
      %v2213 = vunpack.c.l.b16 %v2076
      %v2214 = vunpack.c.l.b16 %v2077
      %v2215 = vunpack.c.l.b16 %v2078
      %v2216 = vunpack.c.l.b16 %v2079
      %v2217 = vunpack.c.l.b16 %v2080
      %v2218 = vunpack.c.l.b16 %v2081
      %v2219 = vunpack.c.l.b16 %v2082
      %v2220 = vunpack.c.l.b16 %v2083
      %v2221 = vunpack.c.l.b16 %v2084
      %v2222 = vunpack.c.l.b16 %v2085
      %v2223 = vpack.c.b16 %v2208, %v2207
      %v2224 = vpack.c.b16 %v2210, %v2209
      %v2225 = vpack.c.b16 %v2212, %v2211
      %v2226 = vpack.c.b16 %v2214, %v2213
      %v2227 = vpack.c.b16 %v2216, %v2215
      %v2228 = vpack.c.b16 %v2218, %v2217
      %v2229 = vpack.c.b16 %v2220, %v2219
      %v2230 = vpack.c.b16 %v2222, %v2221
      %2239 = vmatprep.subr.bf16.mxu0 0
      %2240 = vmatpush1.bf16.msra.mxu0 %v2223
      %2241 = vmatprep.subr.bf16.mxu0 0
      %2242 = vmatpush1.bf16.msra.mxu0 %v2224
      %2243 = vmatprep.subr.bf16.mxu0 0
      %2244 = vmatpush1.bf16.msra.mxu0 %v2225
      %2245 = vmatprep.subr.bf16.mxu0 0
      %2246 = vmatpush1.bf16.msra.mxu0 %v2226
      %2247 = vmatprep.subr.bf16.mxu0 0
      %2248 = vmatpush1.bf16.msra.mxu0 %v2227
      %2249 = vmatprep.subr.bf16.mxu0 0
      %2250 = vmatpush1.bf16.msra.mxu0 %v2228
      %2251 = vmatprep.subr.bf16.mxu0 0
      %2252 = vmatpush1.bf16.msra.mxu0 %v2229
      %2253 = vmatprep.subr.bf16.mxu0 0
      %2254 = vmatpush1.bf16.msra.mxu0 %v2230
      %2255 = vmatprep.subr.bf16.mxu0 0
      %2256 = vmatpush1.bf16.msra.mxu0 0
      %2257 = vmatprep.subr.bf16.mxu0 0
      %2258 = vmatpush1.bf16.msra.mxu0 0
      %2259 = vmatprep.subr.bf16.mxu0 0
      %2260 = vmatpush1.bf16.msra.mxu0 0
      %2261 = vmatprep.subr.bf16.mxu0 0
      %2262 = vmatpush1.bf16.msra.mxu0 0
      %2263 = vmatprep.subr.bf16.mxu0 0
      %2264 = vmatpush1.bf16.msra.mxu0 0
      %2265 = vmatprep.subr.bf16.mxu0 0
      %2266 = vmatpush1.bf16.msra.mxu0 0
      %2267 = vmatprep.subr.bf16.mxu0 0
      %2268 = vmatpush1.bf16.msra.mxu0 0
      %2269 = vmatprep.subr.bf16.mxu0 0
      %2270 = vmatpush1.bf16.msra.mxu0 0
      %2271 = vmatprep.mubr.bf16.mxu0 0
      %2272 = vmatmul.mubr.bf16.gmra.mrb[0].mxu0 %v2067
      %v2273 = vpop.f32.mrb[0].mxu0
      %v2274 = vadd.f32 %v2186, %v2273
      %v2275 = vpop.f32.mrb[0].mxu0
      %v2276 = vpop.f32.mrb[0].mxu0
      %v2277 = vpop.f32.mrb[0].mxu0
      %2278 = vdwg.mxu0
      %s2279 = scalar_lea.vmem %s5, 128
      %v2280 = vld [vmem:[%s2279] sm:$0xf]
      %v2281 = vld [vmem:[%s2279 + $0x4] sm:$0xf]
      %v2282 = vld [vmem:[%s2279 + $0x8] sm:$0xf]
      %v2283 = vld [vmem:[%s2279 + $0xc] sm:$0xf]
      %v2284 = vld [vmem:[%s2279 + $0x10] sm:$0xf]
      %v2285 = vld [vmem:[%s2279 + $0x14] sm:$0xf]
      %v2286 = vld [vmem:[%s2279 + $0x18] sm:$0xf]
      %v2287 = vld [vmem:[%s2279 + $0x1c] sm:$0xf]
      %v2288 = vld [vmem:[%s2279 + $0x20] sm:$0xf]
      %v2289 = vld [vmem:[%s2279 + $0x24] sm:$0xf]
      %v2290 = vld [vmem:[%s2279 + $0x28] sm:$0xf]
      %v2291 = vld [vmem:[%s2279 + $0x2c] sm:$0xf]
      %v2292 = vld [vmem:[%s2279 + $0x30] sm:$0xf]
      %v2293 = vld [vmem:[%s2279 + $0x34] sm:$0xf]
      %v2294 = vld [vmem:[%s2279 + $0x38] sm:$0xf]
      %v2295 = vld [vmem:[%s2279 + $0x3c] sm:$0xf]
      %v2312 = vunpack.c.l.b16 %v2280
      %v2313 = vunpack.c.l.b16 %v2281
      %v2314 = vunpack.c.l.b16 %v2282
      %v2315 = vunpack.c.l.b16 %v2283
      %v2316 = vunpack.c.l.b16 %v2284
      %v2317 = vunpack.c.l.b16 %v2285
      %v2318 = vunpack.c.l.b16 %v2286
      %v2319 = vunpack.c.l.b16 %v2287
      %v2320 = vunpack.c.l.b16 %v2288
      %v2321 = vunpack.c.l.b16 %v2289
      %v2322 = vunpack.c.l.b16 %v2290
      %v2323 = vunpack.c.l.b16 %v2291
      %v2324 = vunpack.c.l.b16 %v2292
      %v2325 = vunpack.c.l.b16 %v2293
      %v2326 = vunpack.c.l.b16 %v2294
      %v2327 = vunpack.c.l.b16 %v2295
      %v2328 = vpack.c.b16 %v2313, %v2312
      %v2329 = vpack.c.b16 %v2315, %v2314
      %v2330 = vpack.c.b16 %v2317, %v2316
      %v2331 = vpack.c.b16 %v2319, %v2318
      %v2332 = vpack.c.b16 %v2321, %v2320
      %v2333 = vpack.c.b16 %v2323, %v2322
      %v2334 = vpack.c.b16 %v2325, %v2324
      %v2335 = vpack.c.b16 %v2327, %v2326
      %2344 = vmatprep.subr.bf16.mxu0 0
      %2345 = vmatpush1.bf16.msra.mxu0 %v2328
      %2346 = vmatprep.subr.bf16.mxu0 0
      %2347 = vmatpush1.bf16.msra.mxu0 %v2329
      %2348 = vmatprep.subr.bf16.mxu0 0
      %2349 = vmatpush1.bf16.msra.mxu0 %v2330
      %2350 = vmatprep.subr.bf16.mxu0 0
      %2351 = vmatpush1.bf16.msra.mxu0 %v2331
      %2352 = vmatprep.subr.bf16.mxu0 0
      %2353 = vmatpush1.bf16.msra.mxu0 %v2332
      %2354 = vmatprep.subr.bf16.mxu0 0
      %2355 = vmatpush1.bf16.msra.mxu0 %v2333
      %2356 = vmatprep.subr.bf16.mxu0 0
      %2357 = vmatpush1.bf16.msra.mxu0 %v2334
      %2358 = vmatprep.subr.bf16.mxu0 0
      %2359 = vmatpush1.bf16.msra.mxu0 %v2335
      %2360 = vmatprep.subr.bf16.mxu0 0
      %2361 = vmatpush1.bf16.msra.mxu0 0
      %2362 = vmatprep.subr.bf16.mxu0 0
      %2363 = vmatpush1.bf16.msra.mxu0 0
      %2364 = vmatprep.subr.bf16.mxu0 0
      %2365 = vmatpush1.bf16.msra.mxu0 0
      %2366 = vmatprep.subr.bf16.mxu0 0
      %2367 = vmatpush1.bf16.msra.mxu0 0
      %2368 = vmatprep.subr.bf16.mxu0 0
      %2369 = vmatpush1.bf16.msra.mxu0 0
      %2370 = vmatprep.subr.bf16.mxu0 0
      %2371 = vmatpush1.bf16.msra.mxu0 0
      %2372 = vmatprep.subr.bf16.mxu0 0
      %2373 = vmatpush1.bf16.msra.mxu0 0
      %2374 = vmatprep.subr.bf16.mxu0 0
      %2375 = vmatpush1.bf16.msra.mxu0 0
      %2376 = vmatprep.mubr.bf16.mxu0 0
      %2377 = vmatmul.mubr.bf16.gmra.mrb[0].mxu0 %v2065
      %v2378 = vpop.f32.mrb[0].mxu0
      %v2379 = vadd.f32 0.0, %v2378
      %v2380 = vpop.f32.mrb[0].mxu0
      %v2381 = vpop.f32.mrb[0].mxu0
      %v2382 = vpop.f32.mrb[0].mxu0
      %2383 = vdwg.mxu0
      %v2384 = vadd.f32 %v2274, %v2379
      %v2385 = vld [vmem:[%s6] sm:$0xf]
      %v2386 = vld [vmem:[%s6 + $0x4] sm:$0xf]
      %v2387 = vld [vmem:[%s6 + $0x8] sm:$0xf]
      %v2388 = vld [vmem:[%s6 + $0xc] sm:$0xf]
      %v2389 = vld [vmem:[%s6 + $0x10] sm:$0xf]
      %v2390 = vld [vmem:[%s6 + $0x14] sm:$0xf]
      %v2391 = vld [vmem:[%s6 + $0x18] sm:$0xf]
      %v2392 = vld [vmem:[%s6 + $0x1c] sm:$0xf]
      %v2393 = vld [vmem:[%s6 + $0x20] sm:$0xf]
      %v2394 = vld [vmem:[%s6 + $0x24] sm:$0xf]
      %v2395 = vld [vmem:[%s6 + $0x28] sm:$0xf]
      %v2396 = vld [vmem:[%s6 + $0x2c] sm:$0xf]
      %v2397 = vld [vmem:[%s6 + $0x30] sm:$0xf]
      %v2398 = vld [vmem:[%s6 + $0x34] sm:$0xf]
      %v2399 = vld [vmem:[%s6 + $0x38] sm:$0xf]
      %v2400 = vld [vmem:[%s6 + $0x3c] sm:$0xf]
      %v2417 = vunpack.c.l.b16 %v2385
      %v2418 = vunpack.c.l.b16 %v2386
      %v2419 = vunpack.c.l.b16 %v2387
      %v2420 = vunpack.c.l.b16 %v2388
      %v2421 = vunpack.c.l.b16 %v2389
      %v2422 = vunpack.c.l.b16 %v2390
      %v2423 = vunpack.c.l.b16 %v2391
      %v2424 = vunpack.c.l.b16 %v2392
      %v2425 = vunpack.c.l.b16 %v2393
      %v2426 = vunpack.c.l.b16 %v2394
      %v2427 = vunpack.c.l.b16 %v2395
      %v2428 = vunpack.c.l.b16 %v2396
      %v2429 = vunpack.c.l.b16 %v2397
      %v2430 = vunpack.c.l.b16 %v2398
      %v2431 = vunpack.c.l.b16 %v2399
      %v2432 = vunpack.c.l.b16 %v2400
      %v2433 = vpack.c.b16 %v2418, %v2417
      %v2434 = vpack.c.b16 %v2420, %v2419
      %v2435 = vpack.c.b16 %v2422, %v2421
      %v2436 = vpack.c.b16 %v2424, %v2423
      %v2437 = vpack.c.b16 %v2426, %v2425
      %v2438 = vpack.c.b16 %v2428, %v2427
      %v2439 = vpack.c.b16 %v2430, %v2429
      %v2440 = vpack.c.b16 %v2432, %v2431
      %2449 = vmatprep.subr.bf16.mxu0 0
      %2450 = vmatpush1.bf16.msra.mxu0 %v2433
      %2451 = vmatprep.subr.bf16.mxu0 0
      %2452 = vmatpush1.bf16.msra.mxu0 %v2434
      %2453 = vmatprep.subr.bf16.mxu0 0
      %2454 = vmatpush1.bf16.msra.mxu0 %v2435
      %2455 = vmatprep.subr.bf16.mxu0 0
      %2456 = vmatpush1.bf16.msra.mxu0 %v2436
      %2457 = vmatprep.subr.bf16.mxu0 0
      %2458 = vmatpush1.bf16.msra.mxu0 %v2437
      %2459 = vmatprep.subr.bf16.mxu0 0
      %2460 = vmatpush1.bf16.msra.mxu0 %v2438
      %2461 = vmatprep.subr.bf16.mxu0 0
      %2462 = vmatpush1.bf16.msra.mxu0 %v2439
      %2463 = vmatprep.subr.bf16.mxu0 0
      %2464 = vmatpush1.bf16.msra.mxu0 %v2440
      %2465 = vmatprep.subr.bf16.mxu0 0
      %2466 = vmatpush1.bf16.msra.mxu0 0
      %2467 = vmatprep.subr.bf16.mxu0 0
      %2468 = vmatpush1.bf16.msra.mxu0 0
      %2469 = vmatprep.subr.bf16.mxu0 0
      %2470 = vmatpush1.bf16.msra.mxu0 0
      %2471 = vmatprep.subr.bf16.mxu0 0
      %2472 = vmatpush1.bf16.msra.mxu0 0
      %2473 = vmatprep.subr.bf16.mxu0 0
      %2474 = vmatpush1.bf16.msra.mxu0 0
      %2475 = vmatprep.subr.bf16.mxu0 0
      %2476 = vmatpush1.bf16.msra.mxu0 0
      %2477 = vmatprep.subr.bf16.mxu0 0
      %2478 = vmatpush1.bf16.msra.mxu0 0
      %2479 = vmatprep.subr.bf16.mxu0 0
      %2480 = vmatpush1.bf16.msra.mxu0 0
      %2481 = vmatprep.mubr.bf16.mxu0 0
      %2482 = vmatmul.mubr.bf16.gmra.mrb[0].mxu0 %v962
      %v2483 = vpop.f32.mrb[0].mxu0
      %v2484 = vadd.f32 0.0, %v2483
      %v2485 = vpop.f32.mrb[0].mxu0
      %v2486 = vpop.f32.mrb[0].mxu0
      %v2487 = vpop.f32.mrb[0].mxu0
      %2488 = vdwg.mxu0
      %v2489 = vadd.f32 %v2384, %v2484
      %s2490 = scalar_lea.vmem %s6, 64
      %v2491 = vld [vmem:[%s2490] sm:$0xf]
      %v2492 = vld [vmem:[%s2490 + $0x4] sm:$0xf]
      %v2493 = vld [vmem:[%s2490 + $0x8] sm:$0xf]
      %v2494 = vld [vmem:[%s2490 + $0xc] sm:$0xf]
      %v2495 = vld [vmem:[%s2490 + $0x10] sm:$0xf]
      %v2496 = vld [vmem:[%s2490 + $0x14] sm:$0xf]
      %v2497 = vld [vmem:[%s2490 + $0x18] sm:$0xf]
      %v2498 = vld [vmem:[%s2490 + $0x1c] sm:$0xf]
      %v2499 = vld [vmem:[%s2490 + $0x20] sm:$0xf]
      %v2500 = vld [vmem:[%s2490 + $0x24] sm:$0xf]
      %v2501 = vld [vmem:[%s2490 + $0x28] sm:$0xf]
      %v2502 = vld [vmem:[%s2490 + $0x2c] sm:$0xf]
      %v2503 = vld [vmem:[%s2490 + $0x30] sm:$0xf]
      %v2504 = vld [vmem:[%s2490 + $0x34] sm:$0xf]
      %v2505 = vld [vmem:[%s2490 + $0x38] sm:$0xf]
      %v2506 = vld [vmem:[%s2490 + $0x3c] sm:$0xf]
      %v2523 = vunpack.c.l.b16 %v2491
      %v2524 = vunpack.c.l.b16 %v2492
      %v2525 = vunpack.c.l.b16 %v2493
      %v2526 = vunpack.c.l.b16 %v2494
      %v2527 = vunpack.c.l.b16 %v2495
      %v2528 = vunpack.c.l.b16 %v2496
      %v2529 = vunpack.c.l.b16 %v2497
      %v2530 = vunpack.c.l.b16 %v2498
      %v2531 = vunpack.c.l.b16 %v2499
      %v2532 = vunpack.c.l.b16 %v2500
      %v2533 = vunpack.c.l.b16 %v2501
      %v2534 = vunpack.c.l.b16 %v2502
      %v2535 = vunpack.c.l.b16 %v2503
      %v2536 = vunpack.c.l.b16 %v2504
      %v2537 = vunpack.c.l.b16 %v2505
      %v2538 = vunpack.c.l.b16 %v2506
      %v2539 = vpack.c.b16 %v2524, %v2523
      %v2540 = vpack.c.b16 %v2526, %v2525
      %v2541 = vpack.c.b16 %v2528, %v2527
      %v2542 = vpack.c.b16 %v2530, %v2529
      %v2543 = vpack.c.b16 %v2532, %v2531
      %v2544 = vpack.c.b16 %v2534, %v2533
      %v2545 = vpack.c.b16 %v2536, %v2535
      %v2546 = vpack.c.b16 %v2538, %v2537
      %2555 = vmatprep.subr.bf16.mxu0 0
      %2556 = vmatpush1.bf16.msra.mxu0 %v2539
      %2557 = vmatprep.subr.bf16.mxu0 0
      %2558 = vmatpush1.bf16.msra.mxu0 %v2540
      %2559 = vmatprep.subr.bf16.mxu0 0
      %2560 = vmatpush1.bf16.msra.mxu0 %v2541
      %2561 = vmatprep.subr.bf16.mxu0 0
      %2562 = vmatpush1.bf16.msra.mxu0 %v2542
      %2563 = vmatprep.subr.bf16.mxu0 0
      %2564 = vmatpush1.bf16.msra.mxu0 %v2543
      %2565 = vmatprep.subr.bf16.mxu0 0
      %2566 = vmatpush1.bf16.msra.mxu0 %v2544
      %2567 = vmatprep.subr.bf16.mxu0 0
      %2568 = vmatpush1.bf16.msra.mxu0 %v2545
      %2569 = vmatprep.subr.bf16.mxu0 0
      %2570 = vmatpush1.bf16.msra.mxu0 %v2546
      %2571 = vmatprep.subr.bf16.mxu0 0
      %2572 = vmatpush1.bf16.msra.mxu0 0
      %2573 = vmatprep.subr.bf16.mxu0 0
      %2574 = vmatpush1.bf16.msra.mxu0 0
      %2575 = vmatprep.subr.bf16.mxu0 0
      %2576 = vmatpush1.bf16.msra.mxu0 0
      %2577 = vmatprep.subr.bf16.mxu0 0
      %2578 = vmatpush1.bf16.msra.mxu0 0
      %2579 = vmatprep.subr.bf16.mxu0 0
      %2580 = vmatpush1.bf16.msra.mxu0 0
      %2581 = vmatprep.subr.bf16.mxu0 0
      %2582 = vmatpush1.bf16.msra.mxu0 0
      %2583 = vmatprep.subr.bf16.mxu0 0
      %2584 = vmatpush1.bf16.msra.mxu0 0
      %2585 = vmatprep.subr.bf16.mxu0 0
      %2586 = vmatpush1.bf16.msra.mxu0 0
      %2587 = vmatprep.mubr.bf16.mxu0 0
      %2588 = vmatmul.mubr.bf16.gmra.mrb[0].mxu0 %v959
      %v2589 = vpop.f32.mrb[0].mxu0
      %v2590 = vadd.f32 0.0, %v2589
      %v2591 = vpop.f32.mrb[0].mxu0
      %v2592 = vpop.f32.mrb[0].mxu0
      %v2593 = vpop.f32.mrb[0].mxu0
      %2594 = vdwg.mxu0
      %v2595 = vadd.f32 %v2489, %v2590
      %s2596 = scalar_lea.vmem %s6, 128
      %v2597 = vld [vmem:[%s2596] sm:$0xf]
      %v2598 = vld [vmem:[%s2596 + $0x4] sm:$0xf]
      %v2599 = vld [vmem:[%s2596 + $0x8] sm:$0xf]
      %v2600 = vld [vmem:[%s2596 + $0xc] sm:$0xf]
      %v2601 = vld [vmem:[%s2596 + $0x10] sm:$0xf]
      %v2602 = vld [vmem:[%s2596 + $0x14] sm:$0xf]
      %v2603 = vld [vmem:[%s2596 + $0x18] sm:$0xf]
      %v2604 = vld [vmem:[%s2596 + $0x1c] sm:$0xf]
      %v2605 = vld [vmem:[%s2596 + $0x20] sm:$0xf]
      %v2606 = vld [vmem:[%s2596 + $0x24] sm:$0xf]
      %v2607 = vld [vmem:[%s2596 + $0x28] sm:$0xf]
      %v2608 = vld [vmem:[%s2596 + $0x2c] sm:$0xf]
      %v2609 = vld [vmem:[%s2596 + $0x30] sm:$0xf]
      %v2610 = vld [vmem:[%s2596 + $0x34] sm:$0xf]
      %v2611 = vld [vmem:[%s2596 + $0x38] sm:$0xf]
      %v2612 = vld [vmem:[%s2596 + $0x3c] sm:$0xf]
      %v2629 = vunpack.c.l.b16 %v2597
      %v2630 = vunpack.c.l.b16 %v2598
      %v2631 = vunpack.c.l.b16 %v2599
      %v2632 = vunpack.c.l.b16 %v2600
      %v2633 = vunpack.c.l.b16 %v2601
      %v2634 = vunpack.c.l.b16 %v2602
      %v2635 = vunpack.c.l.b16 %v2603
      %v2636 = vunpack.c.l.b16 %v2604
      %v2637 = vunpack.c.l.b16 %v2605
      %v2638 = vunpack.c.l.b16 %v2606
      %v2639 = vunpack.c.l.b16 %v2607
      %v2640 = vunpack.c.l.b16 %v2608
      %v2641 = vunpack.c.l.b16 %v2609
      %v2642 = vunpack.c.l.b16 %v2610
      %v2643 = vunpack.c.l.b16 %v2611
      %v2644 = vunpack.c.l.b16 %v2612
      %v2645 = vpack.c.b16 %v2630, %v2629
      %v2646 = vpack.c.b16 %v2632, %v2631
      %v2647 = vpack.c.b16 %v2634, %v2633
      %v2648 = vpack.c.b16 %v2636, %v2635
      %v2649 = vpack.c.b16 %v2638, %v2637
      %v2650 = vpack.c.b16 %v2640, %v2639
      %v2651 = vpack.c.b16 %v2642, %v2641
      %v2652 = vpack.c.b16 %v2644, %v2643
      %2661 = vmatprep.subr.bf16.mxu0 0
      %2662 = vmatpush1.bf16.msra.mxu0 %v2645
      %2663 = vmatprep.subr.bf16.mxu0 0
      %2664 = vmatpush1.bf16.msra.mxu0 %v2646
      %2665 = vmatprep.subr.bf16.mxu0 0
      %2666 = vmatpush1.bf16.msra.mxu0 %v2647
      %2667 = vmatprep.subr.bf16.mxu0 0
      %2668 = vmatpush1.bf16.msra.mxu0 %v2648
      %2669 = vmatprep.subr.bf16.mxu0 0
      %2670 = vmatpush1.bf16.msra.mxu0 %v2649
      %2671 = vmatprep.subr.bf16.mxu0 0
      %2672 = vmatpush1.bf16.msra.mxu0 %v2650
      %2673 = vmatprep.subr.bf16.mxu0 0
      %2674 = vmatpush1.bf16.msra.mxu0 %v2651
      %2675 = vmatprep.subr.bf16.mxu0 0
      %2676 = vmatpush1.bf16.msra.mxu0 %v2652
      %2677 = vmatprep.subr.bf16.mxu0 0
      %2678 = vmatpush1.bf16.msra.mxu0 0
      %2679 = vmatprep.subr.bf16.mxu0 0
      %2680 = vmatpush1.bf16.msra.mxu0 0
      %2681 = vmatprep.subr.bf16.mxu0 0
      %2682 = vmatpush1.bf16.msra.mxu0 0
      %2683 = vmatprep.subr.bf16.mxu0 0
      %2684 = vmatpush1.bf16.msra.mxu0 0
      %2685 = vmatprep.subr.bf16.mxu0 0
      %2686 = vmatpush1.bf16.msra.mxu0 0
      %2687 = vmatprep.subr.bf16.mxu0 0
      %2688 = vmatpush1.bf16.msra.mxu0 0
      %2689 = vmatprep.subr.bf16.mxu0 0
      %2690 = vmatpush1.bf16.msra.mxu0 0
      %2691 = vmatprep.subr.bf16.mxu0 0
      %2692 = vmatpush1.bf16.msra.mxu0 0
      %2693 = vmatprep.mubr.bf16.mxu0 0
      %2694 = vmatmul.mubr.bf16.gmra.mrb[0].mxu0 %v960
      %v2695 = vpop.f32.mrb[0].mxu0
      %v2696 = vadd.f32 0.0, %v2695
      %v2697 = vpop.f32.mrb[0].mxu0
      %v2698 = vpop.f32.mrb[0].mxu0
      %v2699 = vpop.f32.mrb[0].mxu0
      %2700 = vdwg.mxu0
      %v2701 = vadd.f32 %v2595, %v2696
      %v2702 = vld [vmem:[%s12] sm:$0x1]
      %v2704 = vlaneseq
      %v2705 = vshrl.u32 %v2704, 7
      %v2706 = vsub.s32 0, %v2705
      %v2707 = vrot.slane %v2702, %v2706
      %v2709 = vadd.f32 %v2701, %v2707
      %v2710 = vmax.f32 %v2709, 0.0
      %v2711 = vpack.c.bf16 %v2710, %v2710
      %2712 = vmatprep.subr.bf16.mxu0 0
      %2713 = vmatpush1.bf16.msra.mxu0 %v2135
      %2714 = vmatprep.subr.bf16.mxu0 0
      %2715 = vmatpush1.bf16.msra.mxu0 %v2136
      %2716 = vmatprep.subr.bf16.mxu0 0
      %2717 = vmatpush1.bf16.msra.mxu0 %v2137
      %2718 = vmatprep.subr.bf16.mxu0 0
      %2719 = vmatpush1.bf16.msra.mxu0 %v2138
      %2720 = vmatprep.subr.bf16.mxu0 0
      %2721 = vmatpush1.bf16.msra.mxu0 %v2139
      %2722 = vmatprep.subr.bf16.mxu0 0
      %2723 = vmatpush1.bf16.msra.mxu0 %v2140
      %2724 = vmatprep.subr.bf16.mxu0 0
      %2725 = vmatpush1.bf16.msra.mxu0 %v2141
      %2726 = vmatprep.subr.bf16.mxu0 0
      %2727 = vmatpush1.bf16.msra.mxu0 %v2142
      %2728 = vmatprep.subr.bf16.mxu0 0
      %2729 = vmatpush1.bf16.msra.mxu0 0
      %2730 = vmatprep.subr.bf16.mxu0 0
      %2731 = vmatpush1.bf16.msra.mxu0 0
      %2732 = vmatprep.subr.bf16.mxu0 0
      %2733 = vmatpush1.bf16.msra.mxu0 0
      %2734 = vmatprep.subr.bf16.mxu0 0
      %2735 = vmatpush1.bf16.msra.mxu0 0
      %2736 = vmatprep.subr.bf16.mxu0 0
      %2737 = vmatpush1.bf16.msra.mxu0 0
      %2738 = vmatprep.subr.bf16.mxu0 0
      %2739 = vmatpush1.bf16.msra.mxu0 0
      %2740 = vmatprep.subr.bf16.mxu0 0
      %2741 = vmatpush1.bf16.msra.mxu0 0
      %2742 = vmatprep.subr.bf16.mxu0 0
      %2743 = vmatpush1.bf16.msra.mxu0 0
      %2744 = vmatprep.mubr.bf16.mxu0 0
      %2745 = vmatmul.mubr.bf16.gmra.mrb[0].mxu0 %v2065
      %v2746 = vpop.f32.mrb[0].mxu0
      %v2747 = vadd.f32 0.0, %v2746
      %v2748 = vpop.f32.mrb[0].mxu0
      %v2749 = vpop.f32.mrb[0].mxu0
      %v2750 = vpop.f32.mrb[0].mxu0
      %2751 = vdwg.mxu0
      %2752 = vmatprep.subr.bf16.mxu0 0
      %2753 = vmatpush1.bf16.msra.mxu0 %v2223
      %2754 = vmatprep.subr.bf16.mxu0 0
      %2755 = vmatpush1.bf16.msra.mxu0 %v2224
      %2756 = vmatprep.subr.bf16.mxu0 0
      %2757 = vmatpush1.bf16.msra.mxu0 %v2225
      %2758 = vmatprep.subr.bf16.mxu0 0
      %2759 = vmatpush1.bf16.msra.mxu0 %v2226
      %2760 = vmatprep.subr.bf16.mxu0 0
      %2761 = vmatpush1.bf16.msra.mxu0 %v2227
      %2762 = vmatprep.subr.bf16.mxu0 0
      %2763 = vmatpush1.bf16.msra.mxu0 %v2228
      %2764 = vmatprep.subr.bf16.mxu0 0
      %2765 = vmatpush1.bf16.msra.mxu0 %v2229
      %2766 = vmatprep.subr.bf16.mxu0 0
      %2767 = vmatpush1.bf16.msra.mxu0 %v2230
      %2768 = vmatprep.subr.bf16.mxu0 0
      %2769 = vmatpush1.bf16.msra.mxu0 0
      %2770 = vmatprep.subr.bf16.mxu0 0
      %2771 = vmatpush1.bf16.msra.mxu0 0
      %2772 = vmatprep.subr.bf16.mxu0 0
      %2773 = vmatpush1.bf16.msra.mxu0 0
      %2774 = vmatprep.subr.bf16.mxu0 0
      %2775 = vmatpush1.bf16.msra.mxu0 0
      %2776 = vmatprep.subr.bf16.mxu0 0
      %2777 = vmatpush1.bf16.msra.mxu0 0
      %2778 = vmatprep.subr.bf16.mxu0 0
      %2779 = vmatpush1.bf16.msra.mxu0 0
      %2780 = vmatprep.subr.bf16.mxu0 0
      %2781 = vmatpush1.bf16.msra.mxu0 0
      %2782 = vmatprep.subr.bf16.mxu0 0
      %2783 = vmatpush1.bf16.msra.mxu0 0
      %2784 = vmatprep.mubr.bf16.mxu0 0
      %2785 = vmatmul.mubr.bf16.gmra.mrb[0].mxu0 %v2064
      %v2786 = vpop.f32.mrb[0].mxu0
      %v2787 = vadd.f32 %v2747, %v2786
      %v2788 = vpop.f32.mrb[0].mxu0
      %v2789 = vpop.f32.mrb[0].mxu0
      %v2790 = vpop.f32.mrb[0].mxu0
      %2791 = vdwg.mxu0
      %2792 = vmatprep.subr.bf16.mxu0 0
      %2793 = vmatpush1.bf16.msra.mxu0 %v2328
      %2794 = vmatprep.subr.bf16.mxu0 0
      %2795 = vmatpush1.bf16.msra.mxu0 %v2329
      %2796 = vmatprep.subr.bf16.mxu0 0
      %2797 = vmatpush1.bf16.msra.mxu0 %v2330
      %2798 = vmatprep.subr.bf16.mxu0 0
      %2799 = vmatpush1.bf16.msra.mxu0 %v2331
      %2800 = vmatprep.subr.bf16.mxu0 0
      %2801 = vmatpush1.bf16.msra.mxu0 %v2332
      %2802 = vmatprep.subr.bf16.mxu0 0
      %2803 = vmatpush1.bf16.msra.mxu0 %v2333
      %2804 = vmatprep.subr.bf16.mxu0 0
      %2805 = vmatpush1.bf16.msra.mxu0 %v2334
      %2806 = vmatprep.subr.bf16.mxu0 0
      %2807 = vmatpush1.bf16.msra.mxu0 %v2335
      %2808 = vmatprep.subr.bf16.mxu0 0
      %2809 = vmatpush1.bf16.msra.mxu0 0
      %2810 = vmatprep.subr.bf16.mxu0 0
      %2811 = vmatpush1.bf16.msra.mxu0 0
      %2812 = vmatprep.subr.bf16.mxu0 0
      %2813 = vmatpush1.bf16.msra.mxu0 0
      %2814 = vmatprep.subr.bf16.mxu0 0
      %2815 = vmatpush1.bf16.msra.mxu0 0
      %2816 = vmatprep.subr.bf16.mxu0 0
      %2817 = vmatpush1.bf16.msra.mxu0 0
      %2818 = vmatprep.subr.bf16.mxu0 0
      %2819 = vmatpush1.bf16.msra.mxu0 0
      %2820 = vmatprep.subr.bf16.mxu0 0
      %2821 = vmatpush1.bf16.msra.mxu0 0
      %2822 = vmatprep.subr.bf16.mxu0 0
      %2823 = vmatpush1.bf16.msra.mxu0 0
      %2824 = vmatprep.mubr.bf16.mxu0 0
      %2825 = vmatmul.mubr.bf16.gmra.mrb[0].mxu0 %v2069
      %v2826 = vpop.f32.mrb[0].mxu0
      %v2827 = vadd.f32 0.0, %v2826
      %v2828 = vpop.f32.mrb[0].mxu0
      %v2829 = vpop.f32.mrb[0].mxu0
      %v2830 = vpop.f32.mrb[0].mxu0
      %2831 = vdwg.mxu0
      %v2832 = vadd.f32 %v2787, %v2827
      %2833 = vmatprep.subr.bf16.mxu0 0
      %2834 = vmatpush1.bf16.msra.mxu0 %v2433
      %2835 = vmatprep.subr.bf16.mxu0 0
      %2836 = vmatpush1.bf16.msra.mxu0 %v2434
      %2837 = vmatprep.subr.bf16.mxu0 0
      %2838 = vmatpush1.bf16.msra.mxu0 %v2435
      %2839 = vmatprep.subr.bf16.mxu0 0
      %2840 = vmatpush1.bf16.msra.mxu0 %v2436
      %2841 = vmatprep.subr.bf16.mxu0 0
      %2842 = vmatpush1.bf16.msra.mxu0 %v2437
      %2843 = vmatprep.subr.bf16.mxu0 0
      %2844 = vmatpush1.bf16.msra.mxu0 %v2438
      %2845 = vmatprep.subr.bf16.mxu0 0
      %2846 = vmatpush1.bf16.msra.mxu0 %v2439
      %2847 = vmatprep.subr.bf16.mxu0 0
      %2848 = vmatpush1.bf16.msra.mxu0 %v2440
      %2849 = vmatprep.subr.bf16.mxu0 0
      %2850 = vmatpush1.bf16.msra.mxu0 0
      %2851 = vmatprep.subr.bf16.mxu0 0
      %2852 = vmatpush1.bf16.msra.mxu0 0
      %2853 = vmatprep.subr.bf16.mxu0 0
      %2854 = vmatpush1.bf16.msra.mxu0 0
      %2855 = vmatprep.subr.bf16.mxu0 0
      %2856 = vmatpush1.bf16.msra.mxu0 0
      %2857 = vmatprep.subr.bf16.mxu0 0
      %2858 = vmatpush1.bf16.msra.mxu0 0
      %2859 = vmatprep.subr.bf16.mxu0 0
      %2860 = vmatpush1.bf16.msra.mxu0 0
      %2861 = vmatprep.subr.bf16.mxu0 0
      %2862 = vmatpush1.bf16.msra.mxu0 0
      %2863 = vmatprep.subr.bf16.mxu0 0
      %2864 = vmatpush1.bf16.msra.mxu0 0
      %2865 = vmatprep.mubr.bf16.mxu0 0
      %2866 = vmatmul.mubr.bf16.gmra.mrb[0].mxu0 %v959
      %v2867 = vpop.f32.mrb[0].mxu0
      %v2868 = vadd.f32 0.0, %v2867
      %v2869 = vpop.f32.mrb[0].mxu0
      %v2870 = vpop.f32.mrb[0].mxu0
      %v2871 = vpop.f32.mrb[0].mxu0
      %2872 = vdwg.mxu0
      %v2873 = vadd.f32 %v2832, %v2868
      %2874 = vmatprep.subr.bf16.mxu0 0
      %2875 = vmatpush1.bf16.msra.mxu0 %v2539
      %2876 = vmatprep.subr.bf16.mxu0 0
      %2877 = vmatpush1.bf16.msra.mxu0 %v2540
      %2878 = vmatprep.subr.bf16.mxu0 0
      %2879 = vmatpush1.bf16.msra.mxu0 %v2541
      %2880 = vmatprep.subr.bf16.mxu0 0
      %2881 = vmatpush1.bf16.msra.mxu0 %v2542
      %2882 = vmatprep.subr.bf16.mxu0 0
      %2883 = vmatpush1.bf16.msra.mxu0 %v2543
      %2884 = vmatprep.subr.bf16.mxu0 0
      %2885 = vmatpush1.bf16.msra.mxu0 %v2544
      %2886 = vmatprep.subr.bf16.mxu0 0
      %2887 = vmatpush1.bf16.msra.mxu0 %v2545
      %2888 = vmatprep.subr.bf16.mxu0 0
      %2889 = vmatpush1.bf16.msra.mxu0 %v2546
      %2890 = vmatprep.subr.bf16.mxu0 0
      %2891 = vmatpush1.bf16.msra.mxu0 0
      %2892 = vmatprep.subr.bf16.mxu0 0
      %2893 = vmatpush1.bf16.msra.mxu0 0
      %2894 = vmatprep.subr.bf16.mxu0 0
      %2895 = vmatpush1.bf16.msra.mxu0 0
      %2896 = vmatprep.subr.bf16.mxu0 0
      %2897 = vmatpush1.bf16.msra.mxu0 0
      %2898 = vmatprep.subr.bf16.mxu0 0
      %2899 = vmatpush1.bf16.msra.mxu0 0
      %2900 = vmatprep.subr.bf16.mxu0 0
      %2901 = vmatpush1.bf16.msra.mxu0 0
      %2902 = vmatprep.subr.bf16.mxu0 0
      %2903 = vmatpush1.bf16.msra.mxu0 0
      %2904 = vmatprep.subr.bf16.mxu0 0
      %2905 = vmatpush1.bf16.msra.mxu0 0
      %2906 = vmatprep.mubr.bf16.mxu0 0
      %2907 = vmatmul.mubr.bf16.gmra.mrb[0].mxu0 %v960
      %v2908 = vpop.f32.mrb[0].mxu0
      %v2909 = vadd.f32 0.0, %v2908
      %v2910 = vpop.f32.mrb[0].mxu0
      %v2911 = vpop.f32.mrb[0].mxu0
      %v2912 = vpop.f32.mrb[0].mxu0
      %2913 = vdwg.mxu0
      %v2914 = vadd.f32 %v2873, %v2909
      %2915 = vmatprep.subr.bf16.mxu0 0
      %2916 = vmatpush1.bf16.msra.mxu0 %v2645
      %2917 = vmatprep.subr.bf16.mxu0 0
      %2918 = vmatpush1.bf16.msra.mxu0 %v2646
      %2919 = vmatprep.subr.bf16.mxu0 0
      %2920 = vmatpush1.bf16.msra.mxu0 %v2647
      %2921 = vmatprep.subr.bf16.mxu0 0
      %2922 = vmatpush1.bf16.msra.mxu0 %v2648
      %2923 = vmatprep.subr.bf16.mxu0 0
      %2924 = vmatpush1.bf16.msra.mxu0 %v2649
      %2925 = vmatprep.subr.bf16.mxu0 0
      %2926 = vmatpush1.bf16.msra.mxu0 %v2650
      %2927 = vmatprep.subr.bf16.mxu0 0
      %2928 = vmatpush1.bf16.msra.mxu0 %v2651
      %2929 = vmatprep.subr.bf16.mxu0 0
      %2930 = vmatpush1.bf16.msra.mxu0 %v2652
      %2931 = vmatprep.subr.bf16.mxu0 0
      %2932 = vmatpush1.bf16.msra.mxu0 0
      %2933 = vmatprep.subr.bf16.mxu0 0
      %2934 = vmatpush1.bf16.msra.mxu0 0
      %2935 = vmatprep.subr.bf16.mxu0 0
      %2936 = vmatpush1.bf16.msra.mxu0 0
      %2937 = vmatprep.subr.bf16.mxu0 0
      %2938 = vmatpush1.bf16.msra.mxu0 0
      %2939 = vmatprep.subr.bf16.mxu0 0
      %2940 = vmatpush1.bf16.msra.mxu0 0
      %2941 = vmatprep.subr.bf16.mxu0 0
      %2942 = vmatpush1.bf16.msra.mxu0 0
      %2943 = vmatprep.subr.bf16.mxu0 0
      %2944 = vmatpush1.bf16.msra.mxu0 0
      %2945 = vmatprep.subr.bf16.mxu0 0
      %2946 = vmatpush1.bf16.msra.mxu0 0
      %2947 = vmatprep.mubr.bf16.mxu0 0
      %2948 = vmatmul.mubr.bf16.gmra.mrb[0].mxu0 %v964
      %v2949 = vpop.f32.mrb[0].mxu0
      %v2950 = vadd.f32 0.0, %v2949
      %v2951 = vpop.f32.mrb[0].mxu0
      %v2952 = vpop.f32.mrb[0].mxu0
      %v2953 = vpop.f32.mrb[0].mxu0
      %2954 = vdwg.mxu0
      %v2955 = vadd.f32 %v2914, %v2950
      %v2956 = vadd.f32 %v2955, %v2707
      %v2957 = vmax.f32 %v2956, 0.0
      %v2958 = vpack.c.bf16 %v2957, %v2957
      %v2959 = vld [vmem:[%s7] sm:$0xf]
      %v2960 = vld [vmem:[%s7 + $0x4] sm:$0xf]
      %v2961 = vld [vmem:[%s7 + $0x8] sm:$0xf]
      %v2962 = vld [vmem:[%s7 + $0xc] sm:$0xf]
      %v2963 = vld [vmem:[%s7 + $0x10] sm:$0xf]
      %v2964 = vld [vmem:[%s7 + $0x14] sm:$0xf]
      %v2965 = vld [vmem:[%s7 + $0x18] sm:$0xf]
      %v2966 = vld [vmem:[%s7 + $0x1c] sm:$0xf]
      %v2967 = vld [vmem:[%s7 + $0x20] sm:$0xf]
      %v2968 = vld [vmem:[%s7 + $0x24] sm:$0xf]
      %v2969 = vld [vmem:[%s7 + $0x28] sm:$0xf]
      %v2970 = vld [vmem:[%s7 + $0x2c] sm:$0xf]
      %v2971 = vld [vmem:[%s7 + $0x30] sm:$0xf]
      %v2972 = vld [vmem:[%s7 + $0x34] sm:$0xf]
      %v2973 = vld [vmem:[%s7 + $0x38] sm:$0xf]
      %v2974 = vld [vmem:[%s7 + $0x3c] sm:$0xf]
      %v2975 = vld [vmem:[%s13] sm:$0x1]
      %v2977 = vlaneseq
      %v2978 = vshrl.u32 %v2977, 7
      %v2979 = vsub.s32 0, %v2978
      %v2980 = vrot.slane %v2975, %v2979
      %v2998 = vunpack.c.l.b16 %v2959
      %v2999 = vunpack.c.l.b16 %v2960
      %v3000 = vunpack.c.l.b16 %v2961
      %v3001 = vunpack.c.l.b16 %v2962
      %v3002 = vunpack.c.l.b16 %v2963
      %v3003 = vunpack.c.l.b16 %v2964
      %v3004 = vunpack.c.l.b16 %v2965
      %v3005 = vunpack.c.l.b16 %v2966
      %v3006 = vunpack.c.l.b16 %v2967
      %v3007 = vunpack.c.l.b16 %v2968
      %v3008 = vunpack.c.l.b16 %v2969
      %v3009 = vunpack.c.l.b16 %v2970
      %v3010 = vunpack.c.l.b16 %v2971
      %v3011 = vunpack.c.l.b16 %v2972
      %v3012 = vunpack.c.l.b16 %v2973
      %v3013 = vunpack.c.l.b16 %v2974
      %v3014 = vpack.c.b16 %v2999, %v2998
      %v3015 = vpack.c.b16 %v3001, %v3000
      %v3016 = vpack.c.b16 %v3003, %v3002
      %v3017 = vpack.c.b16 %v3005, %v3004
      %v3018 = vpack.c.b16 %v3007, %v3006
      %v3019 = vpack.c.b16 %v3009, %v3008
      %v3020 = vpack.c.b16 %v3011, %v3010
      %v3021 = vpack.c.b16 %v3013, %v3012
      %3030 = vmatprep.subr.bf16.mxu0 0
      %3031 = vmatpush1.bf16.msra.mxu0 %v3014
      %3032 = vmatprep.subr.bf16.mxu0 0
      %3033 = vmatpush1.bf16.msra.mxu0 %v3015
      %3034 = vmatprep.subr.bf16.mxu0 0
      %3035 = vmatpush1.bf16.msra.mxu0 %v3016
      %3036 = vmatprep.subr.bf16.mxu0 0
      %3037 = vmatpush1.bf16.msra.mxu0 %v3017
      %3038 = vmatprep.subr.bf16.mxu0 0
      %3039 = vmatpush1.bf16.msra.mxu0 %v3018
      %3040 = vmatprep.subr.bf16.mxu0 0
      %3041 = vmatpush1.bf16.msra.mxu0 %v3019
      %3042 = vmatprep.subr.bf16.mxu0 0
      %3043 = vmatpush1.bf16.msra.mxu0 %v3020
      %3044 = vmatprep.subr.bf16.mxu0 0
      %3045 = vmatpush1.bf16.msra.mxu0 %v3021
      %3046 = vmatprep.subr.bf16.mxu0 0
      %3047 = vmatpush1.bf16.msra.mxu0 0
      %3048 = vmatprep.subr.bf16.mxu0 0
      %3049 = vmatpush1.bf16.msra.mxu0 0
      %3050 = vmatprep.subr.bf16.mxu0 0
      %3051 = vmatpush1.bf16.msra.mxu0 0
      %3052 = vmatprep.subr.bf16.mxu0 0
      %3053 = vmatpush1.bf16.msra.mxu0 0
      %3054 = vmatprep.subr.bf16.mxu0 0
      %3055 = vmatpush1.bf16.msra.mxu0 0
      %3056 = vmatprep.subr.bf16.mxu0 0
      %3057 = vmatpush1.bf16.msra.mxu0 0
      %3058 = vmatprep.subr.bf16.mxu0 0
      %3059 = vmatpush1.bf16.msra.mxu0 0
      %3060 = vmatprep.subr.bf16.mxu0 0
      %3061 = vmatpush1.bf16.msra.mxu0 0
      %3062 = vmatprep.mubr.bf16.mxu0 0
      %3063 = vmatmul.mubr.bf16.gmra.mrb[0].mxu0 %v2711
      %v3064 = vpop.f32.mrb[0].mxu0
      %v3065 = vadd.f32 %v2980, %v3064
      %v3066 = vpop.f32.mrb[0].mxu0
      %v3067 = vpop.f32.mrb[0].mxu0
      %v3068 = vpop.f32.mrb[0].mxu0
      %3069 = vdwg.mxu0
      %v3070 = vmax.f32 %v3065, 0.0
      %3071 = vst.msk [vmem:[%s472] sm:$0xff] %vm531, %v3070
      %v3072 = vld [vmem:[%s13] sm:$0x1]
      %v3074 = vlaneseq
      %v3075 = vshrl.u32 %v3074, 7
      %v3076 = vsub.s32 0, %v3075
      %v3077 = vrot.slane %v3072, %v3076
      %3079 = vmatprep.subr.bf16.mxu0 0
      %3080 = vmatpush1.bf16.msra.mxu0 %v3014
      %3081 = vmatprep.subr.bf16.mxu0 0
      %3082 = vmatpush1.bf16.msra.mxu0 %v3015
      %3083 = vmatprep.subr.bf16.mxu0 0
      %3084 = vmatpush1.bf16.msra.mxu0 %v3016
      %3085 = vmatprep.subr.bf16.mxu0 0
      %3086 = vmatpush1.bf16.msra.mxu0 %v3017
      %3087 = vmatprep.subr.bf16.mxu0 0
      %3088 = vmatpush1.bf16.msra.mxu0 %v3018
      %3089 = vmatprep.subr.bf16.mxu0 0
      %3090 = vmatpush1.bf16.msra.mxu0 %v3019
      %3091 = vmatprep.subr.bf16.mxu0 0
      %3092 = vmatpush1.bf16.msra.mxu0 %v3020
      %3093 = vmatprep.subr.bf16.mxu0 0
      %3094 = vmatpush1.bf16.msra.mxu0 %v3021
      %3095 = vmatprep.subr.bf16.mxu0 0
      %3096 = vmatpush1.bf16.msra.mxu0 0
      %3097 = vmatprep.subr.bf16.mxu0 0
      %3098 = vmatpush1.bf16.msra.mxu0 0
      %3099 = vmatprep.subr.bf16.mxu0 0
      %3100 = vmatpush1.bf16.msra.mxu0 0
      %3101 = vmatprep.subr.bf16.mxu0 0
      %3102 = vmatpush1.bf16.msra.mxu0 0
      %3103 = vmatprep.subr.bf16.mxu0 0
      %3104 = vmatpush1.bf16.msra.mxu0 0
      %3105 = vmatprep.subr.bf16.mxu0 0
      %3106 = vmatpush1.bf16.msra.mxu0 0
      %3107 = vmatprep.subr.bf16.mxu0 0
      %3108 = vmatpush1.bf16.msra.mxu0 0
      %3109 = vmatprep.subr.bf16.mxu0 0
      %3110 = vmatpush1.bf16.msra.mxu0 0
      %3111 = vmatprep.mubr.bf16.mxu0 0
      %3112 = vmatmul.mubr.bf16.gmra.mrb[0].mxu0 %v2958
      %v3113 = vpop.f32.mrb[0].mxu0
      %v3114 = vadd.f32 %v3077, %v3113
      %v3115 = vpop.f32.mrb[0].mxu0
      %v3116 = vpop.f32.mrb[0].mxu0
      %v3117 = vpop.f32.mrb[0].mxu0
      %3118 = vdwg.mxu0
      %v3119 = vmax.f32 %v3114, 0.0
      %s3120 = scalar_lea.vmem %s472, 8
      %3121 = vst.msk [vmem:[%s3120] sm:$0xff] %vm531, %v3119
      %s3122 = smul.u32 2, %s25
      %p3123 = scmp.lt.s32.totalorder %s3122, 3
      %s3124 = scalar_select %p3123, %s3122, 3
      %s3125 = smul.addr %s3124, 8
      %s3126 = scalar_lea.vmem %s14, %s3125
      // Predicated region
      $region77: #{generator_forward.1} parent=75 // pred_check
        %p3127 = pneg %p342
      $region78: #{generator_forward.1} parent=75 // pred_check_branch
        %3129 = sbr.rel (%p3127) target = $region80
      $region79: #{generator_forward.1} parent=75 // pred_region
        %s3130 = smul.u32 2, %s25
      $region80: #{generator_forward.1} parent=75 // pred_fallthru
        _
    $region76: #{generator_forward.1} parent=5 // pred_fallthru
      _
    %p3131 = scmp.le.s32.totalorder 2, %s20
    // Predicated region
    $region81: #{generator_forward.1} parent=5 // pred_check
      %p3132 = pneg %p3131
    $region82: #{generator_forward.1} parent=5 // pred_check_branch
      %3134 = sbr.rel (%p3132) target = $region84
    $region83: #{generator_forward.1} parent=5 // pred_region
      %s3135 = ssub.s32 %s20, 2
      // Predicated region
      $region85: #{generator_forward.1} parent=83 // pred_check
        %p3136 = pneg %p348
      $region86: #{generator_forward.1} parent=83 // pred_check_branch
        %3138 = sbr.rel (%p3136) target = $region88
      $region87: #{generator_forward.1} parent=83 // pred_region
        %s3139 = smul.u32 2, %s26
        %p3140 = scmp.lt.s32.totalorder %s3139, 3
        %s3141 = scalar_select %p3140, %s3139, 3
        %s3142 = smul.addr %s3141, 8
        %s3143 = scalar_lea.vmem %s14, %s3142
      $region88: #{generator_forward.1} parent=83 // pred_fallthru
        _
    $region84: #{generator_forward.1} parent=5 // pred_fallthru
      _
  $region6: #{generator_forward.1} parent=0 // loop_footer
    %s24 = sadd.s32 1, %s20
  $region7: #{generator_forward.1} parent=0 // loop_footer_branch
    %19 = sbr.rel target = $region3
  $region8: #{generator_forward.1} parent=0 // loop_exit
    _

</llo_original>
